<compile_context>
chip_gen: v5e
topology: v5e:2x2
jax: 0.10.0
libtpu: 0.0.40
codegen_flags: <defaults>
</compile_context>

<pallas_src>
import jax
import jax.numpy as jnp
from jax.experimental import pallas as pl
from jax.experimental.pallas import tpu as pltpu

EPS = 1e-5
KSIZE = 7  # BasicBlock kernel_size (padding = 3, stride = 1 => same length)


# ----------------------------------------------------------------------------
# Shared forward math: used inside the Pallas kernel AND as the pure-JAX
# reference (guarantees the kernel plumbing is validated against identical math)
# ----------------------------------------------------------------------------
def _conv_bn_act(x2d, w, bias, *, B, L, K, relu):
    """Same-padded 1-D conv (stride 1) with BN scale folded into w.

    x2d  : (B*L, Cin)    f32, batch-major rows
    w    : (K*Cin, Cout) bf16 (BN scale folded in)
    bias : (1, Cout)     f32 (folded BN bias)
    returns (B*L, Cout)  f32
    """
    cin = x2d.shape[-1]
    pad = K // 2
    rows = []
    for b in range(B):  # tiny static batch: cheap staging only (VPU/XLU work)
        xb = x2d[b * L:(b + 1) * L, :]                           # (L, Cin)
        z = jnp.zeros((pad, cin), jnp.float32)
        xpb = jnp.concatenate([z, xb, z], axis=0)                # (L+K-1, Cin)
        rows.append(jnp.concatenate([xpb[k:k + L, :] for k in range(K)],
                                    axis=-1))                    # (L, K*Cin)
    # Batch folded into matmul rows -> one MXU push, contraction depth K*Cin.
    xcol = jnp.concatenate(rows, axis=0).astype(jnp.bfloat16)    # (B*L, K*Cin)
    out = jnp.dot(xcol, w, preferred_element_type=jnp.float32) + bias
    return jnp.maximum(out, 0.0) if relu else out


def _forward_math(x2d, blocks, wout, bout, *, B, L, K):
    x = x2d                                                      # (B*L, C) f32
    for blk in blocks:
        # relu(bn1(conv1(x)))
        h = _conv_bn_act(x, blk['w1'], blk['b1'], B=B, L=L, K=K, relu=True)
        # shortcut(x)
        if blk['has_sc']:  # 1x1 conv + BN (bf16 matmul, f32 accumulate)
            sc = jnp.dot(x.astype(jnp.bfloat16), blk['wsc'],
                         preferred_element_type=jnp.float32) + blk['bsc']
        else:              # identity shortcut, exact f32
            sc = x
        # relu(bn2(conv2(h)) + shortcut(x))
        h2 = _conv_bn_act(h, blk['w2'], blk['b2'], B=B, L=L, K=K, relu=False)
        x = jnp.maximum(h2 + sc, 0.0)
    # adaptive_avg_pool1d(x, 1).squeeze(-1)
    pooled = jnp.concatenate(
        [jnp.mean(x[b * L:(b + 1) * L, :], axis=0, keepdims=True)
         for b in range(B)], axis=0)                             # (B, C)
    # output Linear
    return jnp.dot(pooled.astype(jnp.bfloat16), wout,
                   preferred_element_type=jnp.float32) + bout    # (B, Dout)


# ----------------------------------------------------------------------------
# Single fused Pallas kernel: whole network, activations VMEM-resident
# ----------------------------------------------------------------------------
def _make_fused_kernel(shortcut_flags, *, B, L, K):
    def kernel(*refs):
        o_ref = refs[-1]
        it = iter(refs[:-1])
        x2d = next(it)[...]                                      # (B*L, Cin0) f32
        blocks = []
        for has_sc in shortcut_flags:
            blk = dict(w1=next(it)[...], b1=next(it)[...],
                       w2=next(it)[...], b2=next(it)[...], has_sc=has_sc)
            if has_sc:
                blk['wsc'] = next(it)[...]
                blk['bsc'] = next(it)[...]
            blocks.append(blk)
        wout = next(it)[...]
        bout = next(it)[...]
        out = _forward_math(x2d, blocks, wout, bout, B=B, L=L, K=K)
        o_ref[...] = out.astype(o_ref.dtype)
    return kernel


def _full_spec(shape):
    return pl.BlockSpec(shape, lambda i, _n=len(shape): (0,) * _n)


def resnet1d_forward(x_bl, params):
    """x: (B, L) -> (B, Dout) with ONE pallas_call for the whole network."""
    B, L = x_bl.shape
    x2d = x_bl.reshape(B * L, 1).astype(jnp.float32)  # x.unsqueeze(1), NCL->NLC

    inputs = [x2d]
    shortcut_flags = []
    for blk in params['blocks']:
        inputs += [blk['w1'], blk['b1'], blk['w2'], blk['b2']]
        if blk['has_sc']:
            inputs += [blk['wsc'], blk['bsc']]
        shortcut_flags.append(blk['has_sc'])
    inputs += [params['wout'], params['bout']]
    Dout = params['wout'].shape[-1]

    kernel = _make_fused_kernel(tuple(shortcut_flags), B=B, L=L, K=KSIZE)
    # TODO(synk): for production-sized B/L, add a leading batch grid axis with
    # dimension_semantics=("parallel",) so both v7x TensorCores are used.
    return pl.pallas_call(
        kernel,
        grid=(1,),
        in_specs=[_full_spec(a.shape) for a in inputs],
        out_specs=_full_spec((B, Dout)),
        out_shape=jax.ShapeDtypeStruct((B, Dout), jnp.float32),
        compiler_params=pltpu.CompilerParams(dimension_semantics=("arbitrary",)),
    )(*inputs)


def resnet1d_reference(x_bl, params):
    """Pure-JAX reference (same math, no Pallas) for correctness checking."""
    B, L = x_bl.shape
    x2d = x_bl.reshape(B * L, 1).astype(jnp.float32)
    return _forward_math(x2d, params['blocks'], params['wout'], params['bout'],
                         B=B, L=L, K=KSIZE)


# ----------------------------------------------------------------------------
# Parameter init (deterministic, synthetic), BN folded at init time
# ----------------------------------------------------------------------------
def _bn_fold(key, c):
    k1, k2, k3, k4 = jax.random.split(key, 4)
    gamma = 1.0 + 0.1 * jax.random.normal(k1, (c,), jnp.float32)
    beta = 0.1 * jax.random.normal(k2, (c,), jnp.float32)
    mean = 0.1 * jax.random.normal(k3, (c,), jnp.float32)
    var = 1.0 + 0.1 * jnp.abs(jax.random.normal(k4, (c,), jnp.float32))
    scale = gamma / jnp.sqrt(var + EPS)
    bias = beta - mean * scale
    return scale, bias


def init_block_params(key, cin, cout, K=KSIZE):
    ks = jax.random.split(key, 6)
    w1 = jax.random.normal(ks[0], (K, cin, cout), jnp.float32) / jnp.sqrt(cin * K)
    s1, b1 = _bn_fold(ks[1], cout)
    w2 = jax.random.normal(ks[2], (K, cout, cout), jnp.float32) / jnp.sqrt(cout * K)
    s2, b2 = _bn_fold(ks[3], cout)
    p = dict(
        # BN scale folded into conv weights; weights stored bf16 (MXU operands),
        # reshaped to (K*Cin, Cout) to match the im2col column ordering.
        w1=(w1 * s1).reshape(K * cin, cout).astype(jnp.bfloat16),
        b1=b1.reshape(1, cout),
        w2=(w2 * s2).reshape(K * cout, cout).astype(jnp.bfloat16),
        b2=b2.reshape(1, cout),
        has_sc=(cin != cout))
    if cin != cout:  # 1x1 conv + BN shortcut
        wsc = jax.random.normal(ks[4], (cin, cout), jnp.float32) / jnp.sqrt(cin)
        ssc, bsc = _bn_fold(ks[5], cout)
        p['wsc'] = (wsc * ssc).astype(jnp.bfloat16)
        p['bsc'] = bsc.reshape(1, cout)
    return p


def init_resnet_params(key, in_channels=1, num_blocks=(2, 2, 2),
                       base_channels=16, out_dim=16):
    widths = [base_channels, base_channels * 2, base_channels * 4]
    kb, kl = jax.random.split(key)
    bkeys = jax.random.split(kb, sum(num_blocks))
    blocks, cin, idx = [], in_channels, 0
    for width, n in zip(widths, num_blocks):
        for _ in range(n):
            blocks.append(init_block_params(bkeys[idx], cin, width))
            cin = width
            idx += 1
    k1, k2 = jax.random.split(kl)
    wout = (jax.random.normal(k1, (cin, out_dim), jnp.float32)
            / jnp.sqrt(cin)).astype(jnp.bfloat16)
    bout = 0.01 * jax.random.normal(k2, (1, out_dim), jnp.float32)
    return dict(blocks=blocks, wout=wout, bout=bout)


# ----------------------------------------------------------------------------
if __name__ == "__main__":
    key = jax.random.PRNGKey(0)
    kx, kp = jax.random.split(key)

    B, L = 2, 16                 # batch, sequence length (samples.shape[1] == L)
    base_channels = 16           # small but structurally identical to the module
    params = init_resnet_params(kp, in_channels=1, num_blocks=(2, 2, 2),
                                base_channels=base_channels, out_dim=L)

    x = jax.random.normal(kx, (B, L), jnp.float32)
    out = jax.block_until_ready(resnet1d_forward(x, params))
    ref = jax.block_until_ready(resnet1d_reference(x, params))

    assert out.shape == (B, L), out.shape
    assert bool(jnp.all(jnp.isfinite(out)))
    assert bool(jnp.allclose(out, ref, atol=2e-2, rtol=2e-2)), \
        float(jnp.max(jnp.abs(out - ref)))
    print("KERNEL_OK")
</pallas_src>

<mosaic_0001>
module attributes {stable_mosaic.version = 11 : i64} {
  func.func @kernel(%arg0: i32, %arg1: memref<32x1xf32, #tpu.memory_space<vmem>>, %arg2: memref<7x16xbf16, #tpu.memory_space<vmem>>, %arg3: memref<1x16xf32, #tpu.memory_space<vmem>>, %arg4: memref<112x16xbf16, #tpu.memory_space<vmem>>, %arg5: memref<1x16xf32, #tpu.memory_space<vmem>>, %arg6: memref<1x16xbf16, #tpu.memory_space<vmem>>, %arg7: memref<1x16xf32, #tpu.memory_space<vmem>>, %arg8: memref<112x16xbf16, #tpu.memory_space<vmem>>, %arg9: memref<1x16xf32, #tpu.memory_space<vmem>>, %arg10: memref<112x16xbf16, #tpu.memory_space<vmem>>, %arg11: memref<1x16xf32, #tpu.memory_space<vmem>>, %arg12: memref<112x32xbf16, #tpu.memory_space<vmem>>, %arg13: memref<1x32xf32, #tpu.memory_space<vmem>>, %arg14: memref<224x32xbf16, #tpu.memory_space<vmem>>, %arg15: memref<1x32xf32, #tpu.memory_space<vmem>>, %arg16: memref<16x32xbf16, #tpu.memory_space<vmem>>, %arg17: memref<1x32xf32, #tpu.memory_space<vmem>>, %arg18: memref<224x32xbf16, #tpu.memory_space<vmem>>, %arg19: memref<1x32xf32, #tpu.memory_space<vmem>>, %arg20: memref<224x32xbf16, #tpu.memory_space<vmem>>, %arg21: memref<1x32xf32, #tpu.memory_space<vmem>>, %arg22: memref<224x64xbf16, #tpu.memory_space<vmem>>, %arg23: memref<1x64xf32, #tpu.memory_space<vmem>>, %arg24: memref<448x64xbf16, #tpu.memory_space<vmem>>, %arg25: memref<1x64xf32, #tpu.memory_space<vmem>>, %arg26: memref<32x64xbf16, #tpu.memory_space<vmem>>, %arg27: memref<1x64xf32, #tpu.memory_space<vmem>>, %arg28: memref<448x64xbf16, #tpu.memory_space<vmem>>, %arg29: memref<1x64xf32, #tpu.memory_space<vmem>>, %arg30: memref<448x64xbf16, #tpu.memory_space<vmem>>, %arg31: memref<1x64xf32, #tpu.memory_space<vmem>>, %arg32: memref<64x16xbf16, #tpu.memory_space<vmem>>, %arg33: memref<1x16xf32, #tpu.memory_space<vmem>>, %arg34: memref<2x16xf32, #tpu.memory_space<vmem>>) attributes {dimension_semantics = [#tpu.dimension_semantics<arbitrary>], iteration_bounds = array<i64: 1>, scalar_prefetch = 0 : i64, scratch_operands = 0 : i64, tpu.core_type = #tpu.core_type<tc>, window_params = [{pipeline_mode = #tpu.pipeline_mode<synchronous>, transform_indices = @transform_0, window_bounds = array<i64: 32, 1>}, {pipeline_mode = #tpu.pipeline_mode<synchronous>, transform_indices = @transform_1, window_bounds = array<i64: 7, 16>}, {pipeline_mode = #tpu.pipeline_mode<synchronous>, transform_indices = @transform_2, window_bounds = array<i64: 1, 16>}, {pipeline_mode = #tpu.pipeline_mode<synchronous>, transform_indices = @transform_3, window_bounds = array<i64: 112, 16>}, {pipeline_mode = #tpu.pipeline_mode<synchronous>, transform_indices = @transform_4, window_bounds = array<i64: 1, 16>}, {pipeline_mode = #tpu.pipeline_mode<synchronous>, transform_indices = @transform_5, window_bounds = array<i64: 1, 16>}, {pipeline_mode = #tpu.pipeline_mode<synchronous>, transform_indices = @transform_6, window_bounds = array<i64: 1, 16>}, {pipeline_mode = #tpu.pipeline_mode<synchronous>, transform_indices = @transform_7, window_bounds = array<i64: 112, 16>}, {pipeline_mode = #tpu.pipeline_mode<synchronous>, transform_indices = @transform_8, window_bounds = array<i64: 1, 16>}, {pipeline_mode = #tpu.pipeline_mode<synchronous>, transform_indices = @transform_9, window_bounds = array<i64: 112, 16>}, {pipeline_mode = #tpu.pipeline_mode<synchronous>, transform_indices = @transform_10, window_bounds = array<i64: 1, 16>}, {pipeline_mode = #tpu.pipeline_mode<synchronous>, transform_indices = @transform_11, window_bounds = array<i64: 112, 32>}, {pipeline_mode = #tpu.pipeline_mode<synchronous>, transform_indices = @transform_12, window_bounds = array<i64: 1, 32>}, {pipeline_mode = #tpu.pipeline_mode<synchronous>, transform_indices = @transform_13, window_bounds = array<i64: 224, 32>}, {pipeline_mode = #tpu.pipeline_mode<synchronous>, transform_indices = @transform_14, window_bounds = array<i64: 1, 32>}, {pipeline_mode = #tpu.pipeline_mode<synchronous>, transform_indices = @transform_15, window_bounds = array<i64: 16, 32>}, {pipeline_mode = #tpu.pipeline_mode<synchronous>, transform_indices = @transform_16, window_bounds = array<i64: 1, 32>}, {pipeline_mode = #tpu.pipeline_mode<synchronous>, transform_indices = @transform_17, window_bounds = array<i64: 224, 32>}, {pipeline_mode = #tpu.pipeline_mode<synchronous>, transform_indices = @transform_18, window_bounds = array<i64: 1, 32>}, {pipeline_mode = #tpu.pipeline_mode<synchronous>, transform_indices = @transform_19, window_bounds = array<i64: 224, 32>}, {pipeline_mode = #tpu.pipeline_mode<synchronous>, transform_indices = @transform_20, window_bounds = array<i64: 1, 32>}, {pipeline_mode = #tpu.pipeline_mode<synchronous>, transform_indices = @transform_21, window_bounds = array<i64: 224, 64>}, {pipeline_mode = #tpu.pipeline_mode<synchronous>, transform_indices = @transform_22, window_bounds = array<i64: 1, 64>}, {pipeline_mode = #tpu.pipeline_mode<synchronous>, transform_indices = @transform_23, window_bounds = array<i64: 448, 64>}, {pipeline_mode = #tpu.pipeline_mode<synchronous>, transform_indices = @transform_24, window_bounds = array<i64: 1, 64>}, {pipeline_mode = #tpu.pipeline_mode<synchronous>, transform_indices = @transform_25, window_bounds = array<i64: 32, 64>}, {pipeline_mode = #tpu.pipeline_mode<synchronous>, transform_indices = @transform_26, window_bounds = array<i64: 1, 64>}, {pipeline_mode = #tpu.pipeline_mode<synchronous>, transform_indices = @transform_27, window_bounds = array<i64: 448, 64>}, {pipeline_mode = #tpu.pipeline_mode<synchronous>, transform_indices = @transform_28, window_bounds = array<i64: 1, 64>}, {pipeline_mode = #tpu.pipeline_mode<synchronous>, transform_indices = @transform_29, window_bounds = array<i64: 448, 64>}, {pipeline_mode = #tpu.pipeline_mode<synchronous>, transform_indices = @transform_30, window_bounds = array<i64: 1, 64>}, {pipeline_mode = #tpu.pipeline_mode<synchronous>, transform_indices = @transform_31, window_bounds = array<i64: 64, 16>}, {pipeline_mode = #tpu.pipeline_mode<synchronous>, transform_indices = @transform_32, window_bounds = array<i64: 1, 16>}, {pipeline_mode = #tpu.pipeline_mode<synchronous>, transform_indices = @transform_33, window_bounds = array<i64: 2, 16>}]} {
    %c0 = arith.constant 0 : index
    %c0_0 = arith.constant 0 : index
    %0 = vector.load %arg1[%c0, %c0_0] : memref<32x1xf32, #tpu.memory_space<vmem>>, vector<32x1xf32>
    %c0_1 = arith.constant 0 : index
    %c0_2 = arith.constant 0 : index
    %1 = vector.load %arg2[%c0_1, %c0_2] : memref<7x16xbf16, #tpu.memory_space<vmem>>, vector<7x16xbf16>
    %c0_3 = arith.constant 0 : index
    %c0_4 = arith.constant 0 : index
    %2 = vector.load %arg3[%c0_3, %c0_4] : memref<1x16xf32, #tpu.memory_space<vmem>>, vector<1x16xf32>
    %c0_5 = arith.constant 0 : index
    %c0_6 = arith.constant 0 : index
    %3 = vector.load %arg4[%c0_5, %c0_6] : memref<112x16xbf16, #tpu.memory_space<vmem>>, vector<112x16xbf16>
    %c0_7 = arith.constant 0 : index
    %c0_8 = arith.constant 0 : index
    %4 = vector.load %arg5[%c0_7, %c0_8] : memref<1x16xf32, #tpu.memory_space<vmem>>, vector<1x16xf32>
    %c0_9 = arith.constant 0 : index
    %c0_10 = arith.constant 0 : index
    %5 = vector.load %arg6[%c0_9, %c0_10] : memref<1x16xbf16, #tpu.memory_space<vmem>>, vector<1x16xbf16>
    %c0_11 = arith.constant 0 : index
    %c0_12 = arith.constant 0 : index
    %6 = vector.load %arg7[%c0_11, %c0_12] : memref<1x16xf32, #tpu.memory_space<vmem>>, vector<1x16xf32>
    %c0_13 = arith.constant 0 : index
    %c0_14 = arith.constant 0 : index
    %7 = vector.load %arg8[%c0_13, %c0_14] : memref<112x16xbf16, #tpu.memory_space<vmem>>, vector<112x16xbf16>
    %c0_15 = arith.constant 0 : index
    %c0_16 = arith.constant 0 : index
    %8 = vector.load %arg9[%c0_15, %c0_16] : memref<1x16xf32, #tpu.memory_space<vmem>>, vector<1x16xf32>
    %c0_17 = arith.constant 0 : index
    %c0_18 = arith.constant 0 : index
    %9 = vector.load %arg10[%c0_17, %c0_18] : memref<112x16xbf16, #tpu.memory_space<vmem>>, vector<112x16xbf16>
    %c0_19 = arith.constant 0 : index
    %c0_20 = arith.constant 0 : index
    %10 = vector.load %arg11[%c0_19, %c0_20] : memref<1x16xf32, #tpu.memory_space<vmem>>, vector<1x16xf32>
    %c0_21 = arith.constant 0 : index
    %c0_22 = arith.constant 0 : index
    %11 = vector.load %arg12[%c0_21, %c0_22] : memref<112x32xbf16, #tpu.memory_space<vmem>>, vector<112x32xbf16>
    %c0_23 = arith.constant 0 : index
    %c0_24 = arith.constant 0 : index
    %12 = vector.load %arg13[%c0_23, %c0_24] : memref<1x32xf32, #tpu.memory_space<vmem>>, vector<1x32xf32>
    %c0_25 = arith.constant 0 : index
    %c0_26 = arith.constant 0 : index
    %13 = vector.load %arg14[%c0_25, %c0_26] : memref<224x32xbf16, #tpu.memory_space<vmem>>, vector<224x32xbf16>
    %c0_27 = arith.constant 0 : index
    %c0_28 = arith.constant 0 : index
    %14 = vector.load %arg15[%c0_27, %c0_28] : memref<1x32xf32, #tpu.memory_space<vmem>>, vector<1x32xf32>
    %c0_29 = arith.constant 0 : index
    %c0_30 = arith.constant 0 : index
    %15 = vector.load %arg16[%c0_29, %c0_30] : memref<16x32xbf16, #tpu.memory_space<vmem>>, vector<16x32xbf16>
    %c0_31 = arith.constant 0 : index
    %c0_32 = arith.constant 0 : index
    %16 = vector.load %arg17[%c0_31, %c0_32] : memref<1x32xf32, #tpu.memory_space<vmem>>, vector<1x32xf32>
    %c0_33 = arith.constant 0 : index
    %c0_34 = arith.constant 0 : index
    %17 = vector.load %arg18[%c0_33, %c0_34] : memref<224x32xbf16, #tpu.memory_space<vmem>>, vector<224x32xbf16>
    %c0_35 = arith.constant 0 : index
    %c0_36 = arith.constant 0 : index
    %18 = vector.load %arg19[%c0_35, %c0_36] : memref<1x32xf32, #tpu.memory_space<vmem>>, vector<1x32xf32>
    %c0_37 = arith.constant 0 : index
    %c0_38 = arith.constant 0 : index
    %19 = vector.load %arg20[%c0_37, %c0_38] : memref<224x32xbf16, #tpu.memory_space<vmem>>, vector<224x32xbf16>
    %c0_39 = arith.constant 0 : index
    %c0_40 = arith.constant 0 : index
    %20 = vector.load %arg21[%c0_39, %c0_40] : memref<1x32xf32, #tpu.memory_space<vmem>>, vector<1x32xf32>
    %c0_41 = arith.constant 0 : index
    %c0_42 = arith.constant 0 : index
    %21 = vector.load %arg22[%c0_41, %c0_42] : memref<224x64xbf16, #tpu.memory_space<vmem>>, vector<224x64xbf16>
    %c0_43 = arith.constant 0 : index
    %c0_44 = arith.constant 0 : index
    %22 = vector.load %arg23[%c0_43, %c0_44] : memref<1x64xf32, #tpu.memory_space<vmem>>, vector<1x64xf32>
    %c0_45 = arith.constant 0 : index
    %c0_46 = arith.constant 0 : index
    %23 = vector.load %arg24[%c0_45, %c0_46] : memref<448x64xbf16, #tpu.memory_space<vmem>>, vector<448x64xbf16>
    %c0_47 = arith.constant 0 : index
    %c0_48 = arith.constant 0 : index
    %24 = vector.load %arg25[%c0_47, %c0_48] : memref<1x64xf32, #tpu.memory_space<vmem>>, vector<1x64xf32>
    %c0_49 = arith.constant 0 : index
    %c0_50 = arith.constant 0 : index
    %25 = vector.load %arg26[%c0_49, %c0_50] : memref<32x64xbf16, #tpu.memory_space<vmem>>, vector<32x64xbf16>
    %c0_51 = arith.constant 0 : index
    %c0_52 = arith.constant 0 : index
    %26 = vector.load %arg27[%c0_51, %c0_52] : memref<1x64xf32, #tpu.memory_space<vmem>>, vector<1x64xf32>
    %c0_53 = arith.constant 0 : index
    %c0_54 = arith.constant 0 : index
    %27 = vector.load %arg28[%c0_53, %c0_54] : memref<448x64xbf16, #tpu.memory_space<vmem>>, vector<448x64xbf16>
    %c0_55 = arith.constant 0 : index
    %c0_56 = arith.constant 0 : index
    %28 = vector.load %arg29[%c0_55, %c0_56] : memref<1x64xf32, #tpu.memory_space<vmem>>, vector<1x64xf32>
    %c0_57 = arith.constant 0 : index
    %c0_58 = arith.constant 0 : index
    %29 = vector.load %arg30[%c0_57, %c0_58] : memref<448x64xbf16, #tpu.memory_space<vmem>>, vector<448x64xbf16>
    %c0_59 = arith.constant 0 : index
    %c0_60 = arith.constant 0 : index
    %30 = vector.load %arg31[%c0_59, %c0_60] : memref<1x64xf32, #tpu.memory_space<vmem>>, vector<1x64xf32>
    %c0_61 = arith.constant 0 : index
    %c0_62 = arith.constant 0 : index
    %31 = vector.load %arg32[%c0_61, %c0_62] : memref<64x16xbf16, #tpu.memory_space<vmem>>, vector<64x16xbf16>
    %c0_63 = arith.constant 0 : index
    %c0_64 = arith.constant 0 : index
    %32 = vector.load %arg33[%c0_63, %c0_64] : memref<1x16xf32, #tpu.memory_space<vmem>>, vector<1x16xf32>
    %33 = vector.extract_strided_slice %0 {offsets = [0, 0], sizes = [16, 1], strides = [1, 1]} : vector<32x1xf32> to vector<16x1xf32>
    %cst = arith.constant 0.000000e+00 : f32
    %34 = vector.broadcast %cst : f32 to vector<3x1xf32>
    %35 = tpu.concatenate %34, %33, %34 in 0 : vector<3x1xf32>, vector<16x1xf32>, vector<3x1xf32> -> vector<22x1xf32>
    %36 = vector.extract_strided_slice %35 {offsets = [0, 0], sizes = [16, 1], strides = [1, 1]} : vector<22x1xf32> to vector<16x1xf32>
    %37 = vector.extract_strided_slice %35 {offsets = [1, 0], sizes = [16, 1], strides = [1, 1]} : vector<22x1xf32> to vector<16x1xf32>
    %38 = vector.extract_strided_slice %35 {offsets = [2, 0], sizes = [16, 1], strides = [1, 1]} : vector<22x1xf32> to vector<16x1xf32>
    %39 = vector.extract_strided_slice %35 {offsets = [3, 0], sizes = [16, 1], strides = [1, 1]} : vector<22x1xf32> to vector<16x1xf32>
    %40 = vector.extract_strided_slice %35 {offsets = [4, 0], sizes = [16, 1], strides = [1, 1]} : vector<22x1xf32> to vector<16x1xf32>
    %41 = vector.extract_strided_slice %35 {offsets = [5, 0], sizes = [16, 1], strides = [1, 1]} : vector<22x1xf32> to vector<16x1xf32>
    %42 = vector.extract_strided_slice %35 {offsets = [6, 0], sizes = [16, 1], strides = [1, 1]} : vector<22x1xf32> to vector<16x1xf32>
    %43 = tpu.concatenate %36, %37, %38, %39, %40, %41, %42 in 1 : vector<16x1xf32>, vector<16x1xf32>, vector<16x1xf32>, vector<16x1xf32>, vector<16x1xf32>, vector<16x1xf32>, vector<16x1xf32> -> vector<16x7xf32>
    %44 = vector.extract_strided_slice %0 {offsets = [16, 0], sizes = [16, 1], strides = [1, 1]} : vector<32x1xf32> to vector<16x1xf32>
    %cst_65 = arith.constant 0.000000e+00 : f32
    %45 = vector.broadcast %cst_65 : f32 to vector<3x1xf32>
    %46 = tpu.concatenate %45, %44, %45 in 0 : vector<3x1xf32>, vector<16x1xf32>, vector<3x1xf32> -> vector<22x1xf32>
    %47 = vector.extract_strided_slice %46 {offsets = [0, 0], sizes = [16, 1], strides = [1, 1]} : vector<22x1xf32> to vector<16x1xf32>
    %48 = vector.extract_strided_slice %46 {offsets = [1, 0], sizes = [16, 1], strides = [1, 1]} : vector<22x1xf32> to vector<16x1xf32>
    %49 = vector.extract_strided_slice %46 {offsets = [2, 0], sizes = [16, 1], strides = [1, 1]} : vector<22x1xf32> to vector<16x1xf32>
    %50 = vector.extract_strided_slice %46 {offsets = [3, 0], sizes = [16, 1], strides = [1, 1]} : vector<22x1xf32> to vector<16x1xf32>
    %51 = vector.extract_strided_slice %46 {offsets = [4, 0], sizes = [16, 1], strides = [1, 1]} : vector<22x1xf32> to vector<16x1xf32>
    %52 = vector.extract_strided_slice %46 {offsets = [5, 0], sizes = [16, 1], strides = [1, 1]} : vector<22x1xf32> to vector<16x1xf32>
    %53 = vector.extract_strided_slice %46 {offsets = [6, 0], sizes = [16, 1], strides = [1, 1]} : vector<22x1xf32> to vector<16x1xf32>
    %54 = tpu.concatenate %47, %48, %49, %50, %51, %52, %53 in 1 : vector<16x1xf32>, vector<16x1xf32>, vector<16x1xf32>, vector<16x1xf32>, vector<16x1xf32>, vector<16x1xf32>, vector<16x1xf32> -> vector<16x7xf32>
    %55 = tpu.concatenate %43, %54 in 0 : vector<16x7xf32>, vector<16x7xf32> -> vector<32x7xf32>
    %56 = arith.truncf %55 : vector<32x7xf32> to vector<32x7xbf16>
    %cst_66 = arith.constant dense<0.000000e+00> : vector<32x16xf32>
    %57 = tpu.matmul %56, %1, %cst_66 {dimension_numbers = #tpu.dot_dimension_numbers<[1], [0], [0], [1], [0, 0, 1, 1], [], []>} : vector<32x7xbf16>, vector<7x16xbf16>, vector<32x16xf32> -> vector<32x16xf32>
    %58 = vector.broadcast %2 : vector<1x16xf32> to vector<32x16xf32>
    %59 = arith.addf %57, %58 : vector<32x16xf32>
    %cst_67 = arith.constant 0.000000e+00 : f32
    %60 = vector.broadcast %cst_67 : f32 to vector<32x16xf32>
    %61 = arith.maximumf %59, %60 : vector<32x16xf32>
    %62 = arith.truncf %0 : vector<32x1xf32> to vector<32x1xbf16>
    %cst_68 = arith.constant dense<0.000000e+00> : vector<32x16xf32>
    %63 = tpu.matmul %62, %5, %cst_68 {dimension_numbers = #tpu.dot_dimension_numbers<[1], [0], [0], [1], [0, 0, 1, 1], [], []>} : vector<32x1xbf16>, vector<1x16xbf16>, vector<32x16xf32> -> vector<32x16xf32>
    %64 = vector.broadcast %6 : vector<1x16xf32> to vector<32x16xf32>
    %65 = arith.addf %63, %64 : vector<32x16xf32>
    %66 = vector.extract_strided_slice %61 {offsets = [0, 0], sizes = [16, 16], strides = [1, 1]} : vector<32x16xf32> to vector<16x16xf32>
    %cst_69 = arith.constant 0.000000e+00 : f32
    %67 = vector.broadcast %cst_69 : f32 to vector<3x16xf32>
    %68 = tpu.concatenate %67, %66, %67 in 0 : vector<3x16xf32>, vector<16x16xf32>, vector<3x16xf32> -> vector<22x16xf32>
    %69 = vector.extract_strided_slice %68 {offsets = [0, 0], sizes = [16, 16], strides = [1, 1]} : vector<22x16xf32> to vector<16x16xf32>
    %70 = vector.extract_strided_slice %68 {offsets = [1, 0], sizes = [16, 16], strides = [1, 1]} : vector<22x16xf32> to vector<16x16xf32>
    %71 = vector.extract_strided_slice %68 {offsets = [2, 0], sizes = [16, 16], strides = [1, 1]} : vector<22x16xf32> to vector<16x16xf32>
    %72 = vector.extract_strided_slice %68 {offsets = [3, 0], sizes = [16, 16], strides = [1, 1]} : vector<22x16xf32> to vector<16x16xf32>
    %73 = vector.extract_strided_slice %68 {offsets = [4, 0], sizes = [16, 16], strides = [1, 1]} : vector<22x16xf32> to vector<16x16xf32>
    %74 = vector.extract_strided_slice %68 {offsets = [5, 0], sizes = [16, 16], strides = [1, 1]} : vector<22x16xf32> to vector<16x16xf32>
    %75 = vector.extract_strided_slice %68 {offsets = [6, 0], sizes = [16, 16], strides = [1, 1]} : vector<22x16xf32> to vector<16x16xf32>
    %76 = tpu.concatenate %69, %70, %71, %72, %73, %74, %75 in 1 : vector<16x16xf32>, vector<16x16xf32>, vector<16x16xf32>, vector<16x16xf32>, vector<16x16xf32>, vector<16x16xf32>, vector<16x16xf32> -> vector<16x112xf32>
    %77 = vector.extract_strided_slice %61 {offsets = [16, 0], sizes = [16, 16], strides = [1, 1]} : vector<32x16xf32> to vector<16x16xf32>
    %cst_70 = arith.constant 0.000000e+00 : f32
    %78 = vector.broadcast %cst_70 : f32 to vector<3x16xf32>
    %79 = tpu.concatenate %78, %77, %78 in 0 : vector<3x16xf32>, vector<16x16xf32>, vector<3x16xf32> -> vector<22x16xf32>
    %80 = vector.extract_strided_slice %79 {offsets = [0, 0], sizes = [16, 16], strides = [1, 1]} : vector<22x16xf32> to vector<16x16xf32>
    %81 = vector.extract_strided_slice %79 {offsets = [1, 0], sizes = [16, 16], strides = [1, 1]} : vector<22x16xf32> to vector<16x16xf32>
    %82 = vector.extract_strided_slice %79 {offsets = [2, 0], sizes = [16, 16], strides = [1, 1]} : vector<22x16xf32> to vector<16x16xf32>
    %83 = vector.extract_strided_slice %79 {offsets = [3, 0], sizes = [16, 16], strides = [1, 1]} : vector<22x16xf32> to vector<16x16xf32>
    %84 = vector.extract_strided_slice %79 {offsets = [4, 0], sizes = [16, 16], strides = [1, 1]} : vector<22x16xf32> to vector<16x16xf32>
    %85 = vector.extract_strided_slice %79 {offsets = [5, 0], sizes = [16, 16], strides = [1, 1]} : vector<22x16xf32> to vector<16x16xf32>
    %86 = vector.extract_strided_slice %79 {offsets = [6, 0], sizes = [16, 16], strides = [1, 1]} : vector<22x16xf32> to vector<16x16xf32>
    %87 = tpu.concatenate %80, %81, %82, %83, %84, %85, %86 in 1 : vector<16x16xf32>, vector<16x16xf32>, vector<16x16xf32>, vector<16x16xf32>, vector<16x16xf32>, vector<16x16xf32>, vector<16x16xf32> -> vector<16x112xf32>
    %88 = tpu.concatenate %76, %87 in 0 : vector<16x112xf32>, vector<16x112xf32> -> vector<32x112xf32>
    %89 = arith.truncf %88 : vector<32x112xf32> to vector<32x112xbf16>
    %cst_71 = arith.constant dense<0.000000e+00> : vector<32x16xf32>
    %90 = tpu.matmul %89, %3, %cst_71 {dimension_numbers = #tpu.dot_dimension_numbers<[1], [0], [0], [1], [0, 0, 1, 1], [], []>} : vector<32x112xbf16>, vector<112x16xbf16>, vector<32x16xf32> -> vector<32x16xf32>
    %91 = vector.broadcast %4 : vector<1x16xf32> to vector<32x16xf32>
    %92 = arith.addf %90, %91 : vector<32x16xf32>
    %93 = arith.addf %92, %65 : vector<32x16xf32>
    %cst_72 = arith.constant 0.000000e+00 : f32
    %94 = vector.broadcast %cst_72 : f32 to vector<32x16xf32>
    %95 = arith.maximumf %93, %94 : vector<32x16xf32>
    %96 = vector.extract_strided_slice %95 {offsets = [0, 0], sizes = [16, 16], strides = [1, 1]} : vector<32x16xf32> to vector<16x16xf32>
    %cst_73 = arith.constant 0.000000e+00 : f32
    %97 = vector.broadcast %cst_73 : f32 to vector<3x16xf32>
    %98 = tpu.concatenate %97, %96, %97 in 0 : vector<3x16xf32>, vector<16x16xf32>, vector<3x16xf32> -> vector<22x16xf32>
    %99 = vector.extract_strided_slice %98 {offsets = [0, 0], sizes = [16, 16], strides = [1, 1]} : vector<22x16xf32> to vector<16x16xf32>
    %100 = vector.extract_strided_slice %98 {offsets = [1, 0], sizes = [16, 16], strides = [1, 1]} : vector<22x16xf32> to vector<16x16xf32>
    %101 = vector.extract_strided_slice %98 {offsets = [2, 0], sizes = [16, 16], strides = [1, 1]} : vector<22x16xf32> to vector<16x16xf32>
    %102 = vector.extract_strided_slice %98 {offsets = [3, 0], sizes = [16, 16], strides = [1, 1]} : vector<22x16xf32> to vector<16x16xf32>
    %103 = vector.extract_strided_slice %98 {offsets = [4, 0], sizes = [16, 16], strides = [1, 1]} : vector<22x16xf32> to vector<16x16xf32>
    %104 = vector.extract_strided_slice %98 {offsets = [5, 0], sizes = [16, 16], strides = [1, 1]} : vector<22x16xf32> to vector<16x16xf32>
    %105 = vector.extract_strided_slice %98 {offsets = [6, 0], sizes = [16, 16], strides = [1, 1]} : vector<22x16xf32> to vector<16x16xf32>
    %106 = tpu.concatenate %99, %100, %101, %102, %103, %104, %105 in 1 : vector<16x16xf32>, vector<16x16xf32>, vector<16x16xf32>, vector<16x16xf32>, vector<16x16xf32>, vector<16x16xf32>, vector<16x16xf32> -> vector<16x112xf32>
    %107 = vector.extract_strided_slice %95 {offsets = [16, 0], sizes = [16, 16], strides = [1, 1]} : vector<32x16xf32> to vector<16x16xf32>
    %cst_74 = arith.constant 0.000000e+00 : f32
    %108 = vector.broadcast %cst_74 : f32 to vector<3x16xf32>
    %109 = tpu.concatenate %108, %107, %108 in 0 : vector<3x16xf32>, vector<16x16xf32>, vector<3x16xf32> -> vector<22x16xf32>
    %110 = vector.extract_strided_slice %109 {offsets = [0, 0], sizes = [16, 16], strides = [1, 1]} : vector<22x16xf32> to vector<16x16xf32>
    %111 = vector.extract_strided_slice %109 {offsets = [1, 0], sizes = [16, 16], strides = [1, 1]} : vector<22x16xf32> to vector<16x16xf32>
    %112 = vector.extract_strided_slice %109 {offsets = [2, 0], sizes = [16, 16], strides = [1, 1]} : vector<22x16xf32> to vector<16x16xf32>
    %113 = vector.extract_strided_slice %109 {offsets = [3, 0], sizes = [16, 16], strides = [1, 1]} : vector<22x16xf32> to vector<16x16xf32>
    %114 = vector.extract_strided_slice %109 {offsets = [4, 0], sizes = [16, 16], strides = [1, 1]} : vector<22x16xf32> to vector<16x16xf32>
    %115 = vector.extract_strided_slice %109 {offsets = [5, 0], sizes = [16, 16], strides = [1, 1]} : vector<22x16xf32> to vector<16x16xf32>
    %116 = vector.extract_strided_slice %109 {offsets = [6, 0], sizes = [16, 16], strides = [1, 1]} : vector<22x16xf32> to vector<16x16xf32>
    %117 = tpu.concatenate %110, %111, %112, %113, %114, %115, %116 in 1 : vector<16x16xf32>, vector<16x16xf32>, vector<16x16xf32>, vector<16x16xf32>, vector<16x16xf32>, vector<16x16xf32>, vector<16x16xf32> -> vector<16x112xf32>
    %118 = tpu.concatenate %106, %117 in 0 : vector<16x112xf32>, vector<16x112xf32> -> vector<32x112xf32>
    %119 = arith.truncf %118 : vector<32x112xf32> to vector<32x112xbf16>
    %cst_75 = arith.constant dense<0.000000e+00> : vector<32x16xf32>
    %120 = tpu.matmul %119, %7, %cst_75 {dimension_numbers = #tpu.dot_dimension_numbers<[1], [0], [0], [1], [0, 0, 1, 1], [], []>} : vector<32x112xbf16>, vector<112x16xbf16>, vector<32x16xf32> -> vector<32x16xf32>
    %121 = vector.broadcast %8 : vector<1x16xf32> to vector<32x16xf32>
    %122 = arith.addf %120, %121 : vector<32x16xf32>
    %cst_76 = arith.constant 0.000000e+00 : f32
    %123 = vector.broadcast %cst_76 : f32 to vector<32x16xf32>
    %124 = arith.maximumf %122, %123 : vector<32x16xf32>
    %125 = vector.extract_strided_slice %124 {offsets = [0, 0], sizes = [16, 16], strides = [1, 1]} : vector<32x16xf32> to vector<16x16xf32>
    %cst_77 = arith.constant 0.000000e+00 : f32
    %126 = vector.broadcast %cst_77 : f32 to vector<3x16xf32>
    %127 = tpu.concatenate %126, %125, %126 in 0 : vector<3x16xf32>, vector<16x16xf32>, vector<3x16xf32> -> vector<22x16xf32>
    %128 = vector.extract_strided_slice %127 {offsets = [0, 0], sizes = [16, 16], strides = [1, 1]} : vector<22x16xf32> to vector<16x16xf32>
    %129 = vector.extract_strided_slice %127 {offsets = [1, 0], sizes = [16, 16], strides = [1, 1]} : vector<22x16xf32> to vector<16x16xf32>
    %130 = vector.extract_strided_slice %127 {offsets = [2, 0], sizes = [16, 16], strides = [1, 1]} : vector<22x16xf32> to vector<16x16xf32>
    %131 = vector.extract_strided_slice %127 {offsets = [3, 0], sizes = [16, 16], strides = [1, 1]} : vector<22x16xf32> to vector<16x16xf32>
    %132 = vector.extract_strided_slice %127 {offsets = [4, 0], sizes = [16, 16], strides = [1, 1]} : vector<22x16xf32> to vector<16x16xf32>
    %133 = vector.extract_strided_slice %127 {offsets = [5, 0], sizes = [16, 16], strides = [1, 1]} : vector<22x16xf32> to vector<16x16xf32>
    %134 = vector.extract_strided_slice %127 {offsets = [6, 0], sizes = [16, 16], strides = [1, 1]} : vector<22x16xf32> to vector<16x16xf32>
    %135 = tpu.concatenate %128, %129, %130, %131, %132, %133, %134 in 1 : vector<16x16xf32>, vector<16x16xf32>, vector<16x16xf32>, vector<16x16xf32>, vector<16x16xf32>, vector<16x16xf32>, vector<16x16xf32> -> vector<16x112xf32>
    %136 = vector.extract_strided_slice %124 {offsets = [16, 0], sizes = [16, 16], strides = [1, 1]} : vector<32x16xf32> to vector<16x16xf32>
    %cst_78 = arith.constant 0.000000e+00 : f32
    %137 = vector.broadcast %cst_78 : f32 to vector<3x16xf32>
    %138 = tpu.concatenate %137, %136, %137 in 0 : vector<3x16xf32>, vector<16x16xf32>, vector<3x16xf32> -> vector<22x16xf32>
    %139 = vector.extract_strided_slice %138 {offsets = [0, 0], sizes = [16, 16], strides = [1, 1]} : vector<22x16xf32> to vector<16x16xf32>
    %140 = vector.extract_strided_slice %138 {offsets = [1, 0], sizes = [16, 16], strides = [1, 1]} : vector<22x16xf32> to vector<16x16xf32>
    %141 = vector.extract_strided_slice %138 {offsets = [2, 0], sizes = [16, 16], strides = [1, 1]} : vector<22x16xf32> to vector<16x16xf32>
    %142 = vector.extract_strided_slice %138 {offsets = [3, 0], sizes = [16, 16], strides = [1, 1]} : vector<22x16xf32> to vector<16x16xf32>
    %143 = vector.extract_strided_slice %138 {offsets = [4, 0], sizes = [16, 16], strides = [1, 1]} : vector<22x16xf32> to vector<16x16xf32>
    %144 = vector.extract_strided_slice %138 {offsets = [5, 0], sizes = [16, 16], strides = [1, 1]} : vector<22x16xf32> to vector<16x16xf32>
    %145 = vector.extract_strided_slice %138 {offsets = [6, 0], sizes = [16, 16], strides = [1, 1]} : vector<22x16xf32> to vector<16x16xf32>
    %146 = tpu.concatenate %139, %140, %141, %142, %143, %144, %145 in 1 : vector<16x16xf32>, vector<16x16xf32>, vector<16x16xf32>, vector<16x16xf32>, vector<16x16xf32>, vector<16x16xf32>, vector<16x16xf32> -> vector<16x112xf32>
    %147 = tpu.concatenate %135, %146 in 0 : vector<16x112xf32>, vector<16x112xf32> -> vector<32x112xf32>
    %148 = arith.truncf %147 : vector<32x112xf32> to vector<32x112xbf16>
    %cst_79 = arith.constant dense<0.000000e+00> : vector<32x16xf32>
    %149 = tpu.matmul %148, %9, %cst_79 {dimension_numbers = #tpu.dot_dimension_numbers<[1], [0], [0], [1], [0, 0, 1, 1], [], []>} : vector<32x112xbf16>, vector<112x16xbf16>, vector<32x16xf32> -> vector<32x16xf32>
    %150 = vector.broadcast %10 : vector<1x16xf32> to vector<32x16xf32>
    %151 = arith.addf %149, %150 : vector<32x16xf32>
    %152 = arith.addf %151, %95 : vector<32x16xf32>
    %cst_80 = arith.constant 0.000000e+00 : f32
    %153 = vector.broadcast %cst_80 : f32 to vector<32x16xf32>
    %154 = arith.maximumf %152, %153 : vector<32x16xf32>
    %155 = vector.extract_strided_slice %154 {offsets = [0, 0], sizes = [16, 16], strides = [1, 1]} : vector<32x16xf32> to vector<16x16xf32>
    %cst_81 = arith.constant 0.000000e+00 : f32
    %156 = vector.broadcast %cst_81 : f32 to vector<3x16xf32>
    %157 = tpu.concatenate %156, %155, %156 in 0 : vector<3x16xf32>, vector<16x16xf32>, vector<3x16xf32> -> vector<22x16xf32>
    %158 = vector.extract_strided_slice %157 {offsets = [0, 0], sizes = [16, 16], strides = [1, 1]} : vector<22x16xf32> to vector<16x16xf32>
    %159 = vector.extract_strided_slice %157 {offsets = [1, 0], sizes = [16, 16], strides = [1, 1]} : vector<22x16xf32> to vector<16x16xf32>
    %160 = vector.extract_strided_slice %157 {offsets = [2, 0], sizes = [16, 16], strides = [1, 1]} : vector<22x16xf32> to vector<16x16xf32>
    %161 = vector.extract_strided_slice %157 {offsets = [3, 0], sizes = [16, 16], strides = [1, 1]} : vector<22x16xf32> to vector<16x16xf32>
    %162 = vector.extract_strided_slice %157 {offsets = [4, 0], sizes = [16, 16], strides = [1, 1]} : vector<22x16xf32> to vector<16x16xf32>
    %163 = vector.extract_strided_slice %157 {offsets = [5, 0], sizes = [16, 16], strides = [1, 1]} : vector<22x16xf32> to vector<16x16xf32>
    %164 = vector.extract_strided_slice %157 {offsets = [6, 0], sizes = [16, 16], strides = [1, 1]} : vector<22x16xf32> to vector<16x16xf32>
    %165 = tpu.concatenate %158, %159, %160, %161, %162, %163, %164 in 1 : vector<16x16xf32>, vector<16x16xf32>, vector<16x16xf32>, vector<16x16xf32>, vector<16x16xf32>, vector<16x16xf32>, vector<16x16xf32> -> vector<16x112xf32>
    %166 = vector.extract_strided_slice %154 {offsets = [16, 0], sizes = [16, 16], strides = [1, 1]} : vector<32x16xf32> to vector<16x16xf32>
    %cst_82 = arith.constant 0.000000e+00 : f32
    %167 = vector.broadcast %cst_82 : f32 to vector<3x16xf32>
    %168 = tpu.concatenate %167, %166, %167 in 0 : vector<3x16xf32>, vector<16x16xf32>, vector<3x16xf32> -> vector<22x16xf32>
    %169 = vector.extract_strided_slice %168 {offsets = [0, 0], sizes = [16, 16], strides = [1, 1]} : vector<22x16xf32> to vector<16x16xf32>
    %170 = vector.extract_strided_slice %168 {offsets = [1, 0], sizes = [16, 16], strides = [1, 1]} : vector<22x16xf32> to vector<16x16xf32>
    %171 = vector.extract_strided_slice %168 {offsets = [2, 0], sizes = [16, 16], strides = [1, 1]} : vector<22x16xf32> to vector<16x16xf32>
    %172 = vector.extract_strided_slice %168 {offsets = [3, 0], sizes = [16, 16], strides = [1, 1]} : vector<22x16xf32> to vector<16x16xf32>
    %173 = vector.extract_strided_slice %168 {offsets = [4, 0], sizes = [16, 16], strides = [1, 1]} : vector<22x16xf32> to vector<16x16xf32>
    %174 = vector.extract_strided_slice %168 {offsets = [5, 0], sizes = [16, 16], strides = [1, 1]} : vector<22x16xf32> to vector<16x16xf32>
    %175 = vector.extract_strided_slice %168 {offsets = [6, 0], sizes = [16, 16], strides = [1, 1]} : vector<22x16xf32> to vector<16x16xf32>
    %176 = tpu.concatenate %169, %170, %171, %172, %173, %174, %175 in 1 : vector<16x16xf32>, vector<16x16xf32>, vector<16x16xf32>, vector<16x16xf32>, vector<16x16xf32>, vector<16x16xf32>, vector<16x16xf32> -> vector<16x112xf32>
    %177 = tpu.concatenate %165, %176 in 0 : vector<16x112xf32>, vector<16x112xf32> -> vector<32x112xf32>
    %178 = arith.truncf %177 : vector<32x112xf32> to vector<32x112xbf16>
    %cst_83 = arith.constant dense<0.000000e+00> : vector<32x32xf32>
    %179 = tpu.matmul %178, %11, %cst_83 {dimension_numbers = #tpu.dot_dimension_numbers<[1], [0], [0], [1], [0, 0, 1, 1], [], []>} : vector<32x112xbf16>, vector<112x32xbf16>, vector<32x32xf32> -> vector<32x32xf32>
    %180 = vector.broadcast %12 : vector<1x32xf32> to vector<32x32xf32>
    %181 = arith.addf %179, %180 : vector<32x32xf32>
    %cst_84 = arith.constant 0.000000e+00 : f32
    %182 = vector.broadcast %cst_84 : f32 to vector<32x32xf32>
    %183 = arith.maximumf %181, %182 : vector<32x32xf32>
    %184 = arith.truncf %154 : vector<32x16xf32> to vector<32x16xbf16>
    %cst_85 = arith.constant dense<0.000000e+00> : vector<32x32xf32>
    %185 = tpu.matmul %184, %15, %cst_85 {dimension_numbers = #tpu.dot_dimension_numbers<[1], [0], [0], [1], [0, 0, 1, 1], [], []>} : vector<32x16xbf16>, vector<16x32xbf16>, vector<32x32xf32> -> vector<32x32xf32>
    %186 = vector.broadcast %16 : vector<1x32xf32> to vector<32x32xf32>
    %187 = arith.addf %185, %186 : vector<32x32xf32>
    %188 = vector.extract_strided_slice %183 {offsets = [0, 0], sizes = [16, 32], strides = [1, 1]} : vector<32x32xf32> to vector<16x32xf32>
    %cst_86 = arith.constant 0.000000e+00 : f32
    %189 = vector.broadcast %cst_86 : f32 to vector<3x32xf32>
    %190 = tpu.concatenate %189, %188, %189 in 0 : vector<3x32xf32>, vector<16x32xf32>, vector<3x32xf32> -> vector<22x32xf32>
    %191 = vector.extract_strided_slice %190 {offsets = [0, 0], sizes = [16, 32], strides = [1, 1]} : vector<22x32xf32> to vector<16x32xf32>
    %192 = vector.extract_strided_slice %190 {offsets = [1, 0], sizes = [16, 32], strides = [1, 1]} : vector<22x32xf32> to vector<16x32xf32>
    %193 = vector.extract_strided_slice %190 {offsets = [2, 0], sizes = [16, 32], strides = [1, 1]} : vector<22x32xf32> to vector<16x32xf32>
    %194 = vector.extract_strided_slice %190 {offsets = [3, 0], sizes = [16, 32], strides = [1, 1]} : vector<22x32xf32> to vector<16x32xf32>
    %195 = vector.extract_strided_slice %190 {offsets = [4, 0], sizes = [16, 32], strides = [1, 1]} : vector<22x32xf32> to vector<16x32xf32>
    %196 = vector.extract_strided_slice %190 {offsets = [5, 0], sizes = [16, 32], strides = [1, 1]} : vector<22x32xf32> to vector<16x32xf32>
    %197 = vector.extract_strided_slice %190 {offsets = [6, 0], sizes = [16, 32], strides = [1, 1]} : vector<22x32xf32> to vector<16x32xf32>
    %198 = tpu.concatenate %191, %192, %193, %194, %195, %196, %197 in 1 : vector<16x32xf32>, vector<16x32xf32>, vector<16x32xf32>, vector<16x32xf32>, vector<16x32xf32>, vector<16x32xf32>, vector<16x32xf32> -> vector<16x224xf32>
    %199 = vector.extract_strided_slice %183 {offsets = [16, 0], sizes = [16, 32], strides = [1, 1]} : vector<32x32xf32> to vector<16x32xf32>
    %cst_87 = arith.constant 0.000000e+00 : f32
    %200 = vector.broadcast %cst_87 : f32 to vector<3x32xf32>
    %201 = tpu.concatenate %200, %199, %200 in 0 : vector<3x32xf32>, vector<16x32xf32>, vector<3x32xf32> -> vector<22x32xf32>
    %202 = vector.extract_strided_slice %201 {offsets = [0, 0], sizes = [16, 32], strides = [1, 1]} : vector<22x32xf32> to vector<16x32xf32>
    %203 = vector.extract_strided_slice %201 {offsets = [1, 0], sizes = [16, 32], strides = [1, 1]} : vector<22x32xf32> to vector<16x32xf32>
    %204 = vector.extract_strided_slice %201 {offsets = [2, 0], sizes = [16, 32], strides = [1, 1]} : vector<22x32xf32> to vector<16x32xf32>
    %205 = vector.extract_strided_slice %201 {offsets = [3, 0], sizes = [16, 32], strides = [1, 1]} : vector<22x32xf32> to vector<16x32xf32>
    %206 = vector.extract_strided_slice %201 {offsets = [4, 0], sizes = [16, 32], strides = [1, 1]} : vector<22x32xf32> to vector<16x32xf32>
    %207 = vector.extract_strided_slice %201 {offsets = [5, 0], sizes = [16, 32], strides = [1, 1]} : vector<22x32xf32> to vector<16x32xf32>
    %208 = vector.extract_strided_slice %201 {offsets = [6, 0], sizes = [16, 32], strides = [1, 1]} : vector<22x32xf32> to vector<16x32xf32>
    %209 = tpu.concatenate %202, %203, %204, %205, %206, %207, %208 in 1 : vector<16x32xf32>, vector<16x32xf32>, vector<16x32xf32>, vector<16x32xf32>, vector<16x32xf32>, vector<16x32xf32>, vector<16x32xf32> -> vector<16x224xf32>
    %210 = tpu.concatenate %198, %209 in 0 : vector<16x224xf32>, vector<16x224xf32> -> vector<32x224xf32>
    %211 = arith.truncf %210 : vector<32x224xf32> to vector<32x224xbf16>
    %cst_88 = arith.constant dense<0.000000e+00> : vector<32x32xf32>
    %212 = tpu.matmul %211, %13, %cst_88 {dimension_numbers = #tpu.dot_dimension_numbers<[1], [0], [0], [1], [0, 0, 1, 1], [], []>} : vector<32x224xbf16>, vector<224x32xbf16>, vector<32x32xf32> -> vector<32x32xf32>
    %213 = vector.broadcast %14 : vector<1x32xf32> to vector<32x32xf32>
    %214 = arith.addf %212, %213 : vector<32x32xf32>
    %215 = arith.addf %214, %187 : vector<32x32xf32>
    %cst_89 = arith.constant 0.000000e+00 : f32
    %216 = vector.broadcast %cst_89 : f32 to vector<32x32xf32>
    %217 = arith.maximumf %215, %216 : vector<32x32xf32>
    %218 = vector.extract_strided_slice %217 {offsets = [0, 0], sizes = [16, 32], strides = [1, 1]} : vector<32x32xf32> to vector<16x32xf32>
    %cst_90 = arith.constant 0.000000e+00 : f32
    %219 = vector.broadcast %cst_90 : f32 to vector<3x32xf32>
    %220 = tpu.concatenate %219, %218, %219 in 0 : vector<3x32xf32>, vector<16x32xf32>, vector<3x32xf32> -> vector<22x32xf32>
    %221 = vector.extract_strided_slice %220 {offsets = [0, 0], sizes = [16, 32], strides = [1, 1]} : vector<22x32xf32> to vector<16x32xf32>
    %222 = vector.extract_strided_slice %220 {offsets = [1, 0], sizes = [16, 32], strides = [1, 1]} : vector<22x32xf32> to vector<16x32xf32>
    %223 = vector.extract_strided_slice %220 {offsets = [2, 0], sizes = [16, 32], strides = [1, 1]} : vector<22x32xf32> to vector<16x32xf32>
    %224 = vector.extract_strided_slice %220 {offsets = [3, 0], sizes = [16, 32], strides = [1, 1]} : vector<22x32xf32> to vector<16x32xf32>
    %225 = vector.extract_strided_slice %220 {offsets = [4, 0], sizes = [16, 32], strides = [1, 1]} : vector<22x32xf32> to vector<16x32xf32>
    %226 = vector.extract_strided_slice %220 {offsets = [5, 0], sizes = [16, 32], strides = [1, 1]} : vector<22x32xf32> to vector<16x32xf32>
    %227 = vector.extract_strided_slice %220 {offsets = [6, 0], sizes = [16, 32], strides = [1, 1]} : vector<22x32xf32> to vector<16x32xf32>
    %228 = tpu.concatenate %221, %222, %223, %224, %225, %226, %227 in 1 : vector<16x32xf32>, vector<16x32xf32>, vector<16x32xf32>, vector<16x32xf32>, vector<16x32xf32>, vector<16x32xf32>, vector<16x32xf32> -> vector<16x224xf32>
    %229 = vector.extract_strided_slice %217 {offsets = [16, 0], sizes = [16, 32], strides = [1, 1]} : vector<32x32xf32> to vector<16x32xf32>
    %cst_91 = arith.constant 0.000000e+00 : f32
    %230 = vector.broadcast %cst_91 : f32 to vector<3x32xf32>
    %231 = tpu.concatenate %230, %229, %230 in 0 : vector<3x32xf32>, vector<16x32xf32>, vector<3x32xf32> -> vector<22x32xf32>
    %232 = vector.extract_strided_slice %231 {offsets = [0, 0], sizes = [16, 32], strides = [1, 1]} : vector<22x32xf32> to vector<16x32xf32>
    %233 = vector.extract_strided_slice %231 {offsets = [1, 0], sizes = [16, 32], strides = [1, 1]} : vector<22x32xf32> to vector<16x32xf32>
    %234 = vector.extract_strided_slice %231 {offsets = [2, 0], sizes = [16, 32], strides = [1, 1]} : vector<22x32xf32> to vector<16x32xf32>
    %235 = vector.extract_strided_slice %231 {offsets = [3, 0], sizes = [16, 32], strides = [1, 1]} : vector<22x32xf32> to vector<16x32xf32>
    %236 = vector.extract_strided_slice %231 {offsets = [4, 0], sizes = [16, 32], strides = [1, 1]} : vector<22x32xf32> to vector<16x32xf32>
    %237 = vector.extract_strided_slice %231 {offsets = [5, 0], sizes = [16, 32], strides = [1, 1]} : vector<22x32xf32> to vector<16x32xf32>
    %238 = vector.extract_strided_slice %231 {offsets = [6, 0], sizes = [16, 32], strides = [1, 1]} : vector<22x32xf32> to vector<16x32xf32>
    %239 = tpu.concatenate %232, %233, %234, %235, %236, %237, %238 in 1 : vector<16x32xf32>, vector<16x32xf32>, vector<16x32xf32>, vector<16x32xf32>, vector<16x32xf32>, vector<16x32xf32>, vector<16x32xf32> -> vector<16x224xf32>
    %240 = tpu.concatenate %228, %239 in 0 : vector<16x224xf32>, vector<16x224xf32> -> vector<32x224xf32>
    %241 = arith.truncf %240 : vector<32x224xf32> to vector<32x224xbf16>
    %cst_92 = arith.constant dense<0.000000e+00> : vector<32x32xf32>
    %242 = tpu.matmul %241, %17, %cst_92 {dimension_numbers = #tpu.dot_dimension_numbers<[1], [0], [0], [1], [0, 0, 1, 1], [], []>} : vector<32x224xbf16>, vector<224x32xbf16>, vector<32x32xf32> -> vector<32x32xf32>
    %243 = vector.broadcast %18 : vector<1x32xf32> to vector<32x32xf32>
    %244 = arith.addf %242, %243 : vector<32x32xf32>
    %cst_93 = arith.constant 0.000000e+00 : f32
    %245 = vector.broadcast %cst_93 : f32 to vector<32x32xf32>
    %246 = arith.maximumf %244, %245 : vector<32x32xf32>
    %247 = vector.extract_strided_slice %246 {offsets = [0, 0], sizes = [16, 32], strides = [1, 1]} : vector<32x32xf32> to vector<16x32xf32>
    %cst_94 = arith.constant 0.000000e+00 : f32
    %248 = vector.broadcast %cst_94 : f32 to vector<3x32xf32>
    %249 = tpu.concatenate %248, %247, %248 in 0 : vector<3x32xf32>, vector<16x32xf32>, vector<3x32xf32> -> vector<22x32xf32>
    %250 = vector.extract_strided_slice %249 {offsets = [0, 0], sizes = [16, 32], strides = [1, 1]} : vector<22x32xf32> to vector<16x32xf32>
    %251 = vector.extract_strided_slice %249 {offsets = [1, 0], sizes = [16, 32], strides = [1, 1]} : vector<22x32xf32> to vector<16x32xf32>
    %252 = vector.extract_strided_slice %249 {offsets = [2, 0], sizes = [16, 32], strides = [1, 1]} : vector<22x32xf32> to vector<16x32xf32>
    %253 = vector.extract_strided_slice %249 {offsets = [3, 0], sizes = [16, 32], strides = [1, 1]} : vector<22x32xf32> to vector<16x32xf32>
    %254 = vector.extract_strided_slice %249 {offsets = [4, 0], sizes = [16, 32], strides = [1, 1]} : vector<22x32xf32> to vector<16x32xf32>
    %255 = vector.extract_strided_slice %249 {offsets = [5, 0], sizes = [16, 32], strides = [1, 1]} : vector<22x32xf32> to vector<16x32xf32>
    %256 = vector.extract_strided_slice %249 {offsets = [6, 0], sizes = [16, 32], strides = [1, 1]} : vector<22x32xf32> to vector<16x32xf32>
    %257 = tpu.concatenate %250, %251, %252, %253, %254, %255, %256 in 1 : vector<16x32xf32>, vector<16x32xf32>, vector<16x32xf32>, vector<16x32xf32>, vector<16x32xf32>, vector<16x32xf32>, vector<16x32xf32> -> vector<16x224xf32>
    %258 = vector.extract_strided_slice %246 {offsets = [16, 0], sizes = [16, 32], strides = [1, 1]} : vector<32x32xf32> to vector<16x32xf32>
    %cst_95 = arith.constant 0.000000e+00 : f32
    %259 = vector.broadcast %cst_95 : f32 to vector<3x32xf32>
    %260 = tpu.concatenate %259, %258, %259 in 0 : vector<3x32xf32>, vector<16x32xf32>, vector<3x32xf32> -> vector<22x32xf32>
    %261 = vector.extract_strided_slice %260 {offsets = [0, 0], sizes = [16, 32], strides = [1, 1]} : vector<22x32xf32> to vector<16x32xf32>
    %262 = vector.extract_strided_slice %260 {offsets = [1, 0], sizes = [16, 32], strides = [1, 1]} : vector<22x32xf32> to vector<16x32xf32>
    %263 = vector.extract_strided_slice %260 {offsets = [2, 0], sizes = [16, 32], strides = [1, 1]} : vector<22x32xf32> to vector<16x32xf32>
    %264 = vector.extract_strided_slice %260 {offsets = [3, 0], sizes = [16, 32], strides = [1, 1]} : vector<22x32xf32> to vector<16x32xf32>
    %265 = vector.extract_strided_slice %260 {offsets = [4, 0], sizes = [16, 32], strides = [1, 1]} : vector<22x32xf32> to vector<16x32xf32>
    %266 = vector.extract_strided_slice %260 {offsets = [5, 0], sizes = [16, 32], strides = [1, 1]} : vector<22x32xf32> to vector<16x32xf32>
    %267 = vector.extract_strided_slice %260 {offsets = [6, 0], sizes = [16, 32], strides = [1, 1]} : vector<22x32xf32> to vector<16x32xf32>
    %268 = tpu.concatenate %261, %262, %263, %264, %265, %266, %267 in 1 : vector<16x32xf32>, vector<16x32xf32>, vector<16x32xf32>, vector<16x32xf32>, vector<16x32xf32>, vector<16x32xf32>, vector<16x32xf32> -> vector<16x224xf32>
    %269 = tpu.concatenate %257, %268 in 0 : vector<16x224xf32>, vector<16x224xf32> -> vector<32x224xf32>
    %270 = arith.truncf %269 : vector<32x224xf32> to vector<32x224xbf16>
    %cst_96 = arith.constant dense<0.000000e+00> : vector<32x32xf32>
    %271 = tpu.matmul %270, %19, %cst_96 {dimension_numbers = #tpu.dot_dimension_numbers<[1], [0], [0], [1], [0, 0, 1, 1], [], []>} : vector<32x224xbf16>, vector<224x32xbf16>, vector<32x32xf32> -> vector<32x32xf32>
    %272 = vector.broadcast %20 : vector<1x32xf32> to vector<32x32xf32>
    %273 = arith.addf %271, %272 : vector<32x32xf32>
    %274 = arith.addf %273, %217 : vector<32x32xf32>
    %cst_97 = arith.constant 0.000000e+00 : f32
    %275 = vector.broadcast %cst_97 : f32 to vector<32x32xf32>
    %276 = arith.maximumf %274, %275 : vector<32x32xf32>
    %277 = vector.extract_strided_slice %276 {offsets = [0, 0], sizes = [16, 32], strides = [1, 1]} : vector<32x32xf32> to vector<16x32xf32>
    %cst_98 = arith.constant 0.000000e+00 : f32
    %278 = vector.broadcast %cst_98 : f32 to vector<3x32xf32>
    %279 = tpu.concatenate %278, %277, %278 in 0 : vector<3x32xf32>, vector<16x32xf32>, vector<3x32xf32> -> vector<22x32xf32>
    %280 = vector.extract_strided_slice %279 {offsets = [0, 0], sizes = [16, 32], strides = [1, 1]} : vector<22x32xf32> to vector<16x32xf32>
    %281 = vector.extract_strided_slice %279 {offsets = [1, 0], sizes = [16, 32], strides = [1, 1]} : vector<22x32xf32> to vector<16x32xf32>
    %282 = vector.extract_strided_slice %279 {offsets = [2, 0], sizes = [16, 32], strides = [1, 1]} : vector<22x32xf32> to vector<16x32xf32>
    %283 = vector.extract_strided_slice %279 {offsets = [3, 0], sizes = [16, 32], strides = [1, 1]} : vector<22x32xf32> to vector<16x32xf32>
    %284 = vector.extract_strided_slice %279 {offsets = [4, 0], sizes = [16, 32], strides = [1, 1]} : vector<22x32xf32> to vector<16x32xf32>
    %285 = vector.extract_strided_slice %279 {offsets = [5, 0], sizes = [16, 32], strides = [1, 1]} : vector<22x32xf32> to vector<16x32xf32>
    %286 = vector.extract_strided_slice %279 {offsets = [6, 0], sizes = [16, 32], strides = [1, 1]} : vector<22x32xf32> to vector<16x32xf32>
    %287 = tpu.concatenate %280, %281, %282, %283, %284, %285, %286 in 1 : vector<16x32xf32>, vector<16x32xf32>, vector<16x32xf32>, vector<16x32xf32>, vector<16x32xf32>, vector<16x32xf32>, vector<16x32xf32> -> vector<16x224xf32>
    %288 = vector.extract_strided_slice %276 {offsets = [16, 0], sizes = [16, 32], strides = [1, 1]} : vector<32x32xf32> to vector<16x32xf32>
    %cst_99 = arith.constant 0.000000e+00 : f32
    %289 = vector.broadcast %cst_99 : f32 to vector<3x32xf32>
    %290 = tpu.concatenate %289, %288, %289 in 0 : vector<3x32xf32>, vector<16x32xf32>, vector<3x32xf32> -> vector<22x32xf32>
    %291 = vector.extract_strided_slice %290 {offsets = [0, 0], sizes = [16, 32], strides = [1, 1]} : vector<22x32xf32> to vector<16x32xf32>
    %292 = vector.extract_strided_slice %290 {offsets = [1, 0], sizes = [16, 32], strides = [1, 1]} : vector<22x32xf32> to vector<16x32xf32>
    %293 = vector.extract_strided_slice %290 {offsets = [2, 0], sizes = [16, 32], strides = [1, 1]} : vector<22x32xf32> to vector<16x32xf32>
    %294 = vector.extract_strided_slice %290 {offsets = [3, 0], sizes = [16, 32], strides = [1, 1]} : vector<22x32xf32> to vector<16x32xf32>
    %295 = vector.extract_strided_slice %290 {offsets = [4, 0], sizes = [16, 32], strides = [1, 1]} : vector<22x32xf32> to vector<16x32xf32>
    %296 = vector.extract_strided_slice %290 {offsets = [5, 0], sizes = [16, 32], strides = [1, 1]} : vector<22x32xf32> to vector<16x32xf32>
    %297 = vector.extract_strided_slice %290 {offsets = [6, 0], sizes = [16, 32], strides = [1, 1]} : vector<22x32xf32> to vector<16x32xf32>
    %298 = tpu.concatenate %291, %292, %293, %294, %295, %296, %297 in 1 : vector<16x32xf32>, vector<16x32xf32>, vector<16x32xf32>, vector<16x32xf32>, vector<16x32xf32>, vector<16x32xf32>, vector<16x32xf32> -> vector<16x224xf32>
    %299 = tpu.concatenate %287, %298 in 0 : vector<16x224xf32>, vector<16x224xf32> -> vector<32x224xf32>
    %300 = arith.truncf %299 : vector<32x224xf32> to vector<32x224xbf16>
    %cst_100 = arith.constant dense<0.000000e+00> : vector<32x64xf32>
    %301 = tpu.matmul %300, %21, %cst_100 {dimension_numbers = #tpu.dot_dimension_numbers<[1], [0], [0], [1], [0, 0, 1, 1], [], []>} : vector<32x224xbf16>, vector<224x64xbf16>, vector<32x64xf32> -> vector<32x64xf32>
    %302 = vector.broadcast %22 : vector<1x64xf32> to vector<32x64xf32>
    %303 = arith.addf %301, %302 : vector<32x64xf32>
    %cst_101 = arith.constant 0.000000e+00 : f32
    %304 = vector.broadcast %cst_101 : f32 to vector<32x64xf32>
    %305 = arith.maximumf %303, %304 : vector<32x64xf32>
    %306 = arith.truncf %276 : vector<32x32xf32> to vector<32x32xbf16>
    %cst_102 = arith.constant dense<0.000000e+00> : vector<32x64xf32>
    %307 = tpu.matmul %306, %25, %cst_102 {dimension_numbers = #tpu.dot_dimension_numbers<[1], [0], [0], [1], [0, 0, 1, 1], [], []>} : vector<32x32xbf16>, vector<32x64xbf16>, vector<32x64xf32> -> vector<32x64xf32>
    %308 = vector.broadcast %26 : vector<1x64xf32> to vector<32x64xf32>
    %309 = arith.addf %307, %308 : vector<32x64xf32>
    %310 = vector.extract_strided_slice %305 {offsets = [0, 0], sizes = [16, 64], strides = [1, 1]} : vector<32x64xf32> to vector<16x64xf32>
    %cst_103 = arith.constant 0.000000e+00 : f32
    %311 = vector.broadcast %cst_103 : f32 to vector<3x64xf32>
    %312 = tpu.concatenate %311, %310, %311 in 0 : vector<3x64xf32>, vector<16x64xf32>, vector<3x64xf32> -> vector<22x64xf32>
    %313 = vector.extract_strided_slice %312 {offsets = [0, 0], sizes = [16, 64], strides = [1, 1]} : vector<22x64xf32> to vector<16x64xf32>
    %314 = vector.extract_strided_slice %312 {offsets = [1, 0], sizes = [16, 64], strides = [1, 1]} : vector<22x64xf32> to vector<16x64xf32>
    %315 = vector.extract_strided_slice %312 {offsets = [2, 0], sizes = [16, 64], strides = [1, 1]} : vector<22x64xf32> to vector<16x64xf32>
    %316 = vector.extract_strided_slice %312 {offsets = [3, 0], sizes = [16, 64], strides = [1, 1]} : vector<22x64xf32> to vector<16x64xf32>
    %317 = vector.extract_strided_slice %312 {offsets = [4, 0], sizes = [16, 64], strides = [1, 1]} : vector<22x64xf32> to vector<16x64xf32>
    %318 = vector.extract_strided_slice %312 {offsets = [5, 0], sizes = [16, 64], strides = [1, 1]} : vector<22x64xf32> to vector<16x64xf32>
    %319 = vector.extract_strided_slice %312 {offsets = [6, 0], sizes = [16, 64], strides = [1, 1]} : vector<22x64xf32> to vector<16x64xf32>
    %320 = tpu.concatenate %313, %314, %315, %316, %317, %318, %319 in 1 : vector<16x64xf32>, vector<16x64xf32>, vector<16x64xf32>, vector<16x64xf32>, vector<16x64xf32>, vector<16x64xf32>, vector<16x64xf32> -> vector<16x448xf32>
    %321 = vector.extract_strided_slice %305 {offsets = [16, 0], sizes = [16, 64], strides = [1, 1]} : vector<32x64xf32> to vector<16x64xf32>
    %cst_104 = arith.constant 0.000000e+00 : f32
    %322 = vector.broadcast %cst_104 : f32 to vector<3x64xf32>
    %323 = tpu.concatenate %322, %321, %322 in 0 : vector<3x64xf32>, vector<16x64xf32>, vector<3x64xf32> -> vector<22x64xf32>
    %324 = vector.extract_strided_slice %323 {offsets = [0, 0], sizes = [16, 64], strides = [1, 1]} : vector<22x64xf32> to vector<16x64xf32>
    %325 = vector.extract_strided_slice %323 {offsets = [1, 0], sizes = [16, 64], strides = [1, 1]} : vector<22x64xf32> to vector<16x64xf32>
    %326 = vector.extract_strided_slice %323 {offsets = [2, 0], sizes = [16, 64], strides = [1, 1]} : vector<22x64xf32> to vector<16x64xf32>
    %327 = vector.extract_strided_slice %323 {offsets = [3, 0], sizes = [16, 64], strides = [1, 1]} : vector<22x64xf32> to vector<16x64xf32>
    %328 = vector.extract_strided_slice %323 {offsets = [4, 0], sizes = [16, 64], strides = [1, 1]} : vector<22x64xf32> to vector<16x64xf32>
    %329 = vector.extract_strided_slice %323 {offsets = [5, 0], sizes = [16, 64], strides = [1, 1]} : vector<22x64xf32> to vector<16x64xf32>
    %330 = vector.extract_strided_slice %323 {offsets = [6, 0], sizes = [16, 64], strides = [1, 1]} : vector<22x64xf32> to vector<16x64xf32>
    %331 = tpu.concatenate %324, %325, %326, %327, %328, %329, %330 in 1 : vector<16x64xf32>, vector<16x64xf32>, vector<16x64xf32>, vector<16x64xf32>, vector<16x64xf32>, vector<16x64xf32>, vector<16x64xf32> -> vector<16x448xf32>
    %332 = tpu.concatenate %320, %331 in 0 : vector<16x448xf32>, vector<16x448xf32> -> vector<32x448xf32>
    %333 = arith.truncf %332 : vector<32x448xf32> to vector<32x448xbf16>
    %cst_105 = arith.constant dense<0.000000e+00> : vector<32x64xf32>
    %334 = tpu.matmul %333, %23, %cst_105 {dimension_numbers = #tpu.dot_dimension_numbers<[1], [0], [0], [1], [0, 0, 1, 1], [], []>} : vector<32x448xbf16>, vector<448x64xbf16>, vector<32x64xf32> -> vector<32x64xf32>
    %335 = vector.broadcast %24 : vector<1x64xf32> to vector<32x64xf32>
    %336 = arith.addf %334, %335 : vector<32x64xf32>
    %337 = arith.addf %336, %309 : vector<32x64xf32>
    %cst_106 = arith.constant 0.000000e+00 : f32
    %338 = vector.broadcast %cst_106 : f32 to vector<32x64xf32>
    %339 = arith.maximumf %337, %338 : vector<32x64xf32>
    %340 = vector.extract_strided_slice %339 {offsets = [0, 0], sizes = [16, 64], strides = [1, 1]} : vector<32x64xf32> to vector<16x64xf32>
    %cst_107 = arith.constant 0.000000e+00 : f32
    %341 = vector.broadcast %cst_107 : f32 to vector<3x64xf32>
    %342 = tpu.concatenate %341, %340, %341 in 0 : vector<3x64xf32>, vector<16x64xf32>, vector<3x64xf32> -> vector<22x64xf32>
    %343 = vector.extract_strided_slice %342 {offsets = [0, 0], sizes = [16, 64], strides = [1, 1]} : vector<22x64xf32> to vector<16x64xf32>
    %344 = vector.extract_strided_slice %342 {offsets = [1, 0], sizes = [16, 64], strides = [1, 1]} : vector<22x64xf32> to vector<16x64xf32>
    %345 = vector.extract_strided_slice %342 {offsets = [2, 0], sizes = [16, 64], strides = [1, 1]} : vector<22x64xf32> to vector<16x64xf32>
    %346 = vector.extract_strided_slice %342 {offsets = [3, 0], sizes = [16, 64], strides = [1, 1]} : vector<22x64xf32> to vector<16x64xf32>
    %347 = vector.extract_strided_slice %342 {offsets = [4, 0], sizes = [16, 64], strides = [1, 1]} : vector<22x64xf32> to vector<16x64xf32>
    %348 = vector.extract_strided_slice %342 {offsets = [5, 0], sizes = [16, 64], strides = [1, 1]} : vector<22x64xf32> to vector<16x64xf32>
    %349 = vector.extract_strided_slice %342 {offsets = [6, 0], sizes = [16, 64], strides = [1, 1]} : vector<22x64xf32> to vector<16x64xf32>
    %350 = tpu.concatenate %343, %344, %345, %346, %347, %348, %349 in 1 : vector<16x64xf32>, vector<16x64xf32>, vector<16x64xf32>, vector<16x64xf32>, vector<16x64xf32>, vector<16x64xf32>, vector<16x64xf32> -> vector<16x448xf32>
    %351 = vector.extract_strided_slice %339 {offsets = [16, 0], sizes = [16, 64], strides = [1, 1]} : vector<32x64xf32> to vector<16x64xf32>
    %cst_108 = arith.constant 0.000000e+00 : f32
    %352 = vector.broadcast %cst_108 : f32 to vector<3x64xf32>
    %353 = tpu.concatenate %352, %351, %352 in 0 : vector<3x64xf32>, vector<16x64xf32>, vector<3x64xf32> -> vector<22x64xf32>
    %354 = vector.extract_strided_slice %353 {offsets = [0, 0], sizes = [16, 64], strides = [1, 1]} : vector<22x64xf32> to vector<16x64xf32>
    %355 = vector.extract_strided_slice %353 {offsets = [1, 0], sizes = [16, 64], strides = [1, 1]} : vector<22x64xf32> to vector<16x64xf32>
    %356 = vector.extract_strided_slice %353 {offsets = [2, 0], sizes = [16, 64], strides = [1, 1]} : vector<22x64xf32> to vector<16x64xf32>
    %357 = vector.extract_strided_slice %353 {offsets = [3, 0], sizes = [16, 64], strides = [1, 1]} : vector<22x64xf32> to vector<16x64xf32>
    %358 = vector.extract_strided_slice %353 {offsets = [4, 0], sizes = [16, 64], strides = [1, 1]} : vector<22x64xf32> to vector<16x64xf32>
    %359 = vector.extract_strided_slice %353 {offsets = [5, 0], sizes = [16, 64], strides = [1, 1]} : vector<22x64xf32> to vector<16x64xf32>
    %360 = vector.extract_strided_slice %353 {offsets = [6, 0], sizes = [16, 64], strides = [1, 1]} : vector<22x64xf32> to vector<16x64xf32>
    %361 = tpu.concatenate %354, %355, %356, %357, %358, %359, %360 in 1 : vector<16x64xf32>, vector<16x64xf32>, vector<16x64xf32>, vector<16x64xf32>, vector<16x64xf32>, vector<16x64xf32>, vector<16x64xf32> -> vector<16x448xf32>
    %362 = tpu.concatenate %350, %361 in 0 : vector<16x448xf32>, vector<16x448xf32> -> vector<32x448xf32>
    %363 = arith.truncf %362 : vector<32x448xf32> to vector<32x448xbf16>
    %cst_109 = arith.constant dense<0.000000e+00> : vector<32x64xf32>
    %364 = tpu.matmul %363, %27, %cst_109 {dimension_numbers = #tpu.dot_dimension_numbers<[1], [0], [0], [1], [0, 0, 1, 1], [], []>} : vector<32x448xbf16>, vector<448x64xbf16>, vector<32x64xf32> -> vector<32x64xf32>
    %365 = vector.broadcast %28 : vector<1x64xf32> to vector<32x64xf32>
    %366 = arith.addf %364, %365 : vector<32x64xf32>
    %cst_110 = arith.constant 0.000000e+00 : f32
    %367 = vector.broadcast %cst_110 : f32 to vector<32x64xf32>
    %368 = arith.maximumf %366, %367 : vector<32x64xf32>
    %369 = vector.extract_strided_slice %368 {offsets = [0, 0], sizes = [16, 64], strides = [1, 1]} : vector<32x64xf32> to vector<16x64xf32>
    %cst_111 = arith.constant 0.000000e+00 : f32
    %370 = vector.broadcast %cst_111 : f32 to vector<3x64xf32>
    %371 = tpu.concatenate %370, %369, %370 in 0 : vector<3x64xf32>, vector<16x64xf32>, vector<3x64xf32> -> vector<22x64xf32>
    %372 = vector.extract_strided_slice %371 {offsets = [0, 0], sizes = [16, 64], strides = [1, 1]} : vector<22x64xf32> to vector<16x64xf32>
    %373 = vector.extract_strided_slice %371 {offsets = [1, 0], sizes = [16, 64], strides = [1, 1]} : vector<22x64xf32> to vector<16x64xf32>
    %374 = vector.extract_strided_slice %371 {offsets = [2, 0], sizes = [16, 64], strides = [1, 1]} : vector<22x64xf32> to vector<16x64xf32>
    %375 = vector.extract_strided_slice %371 {offsets = [3, 0], sizes = [16, 64], strides = [1, 1]} : vector<22x64xf32> to vector<16x64xf32>
    %376 = vector.extract_strided_slice %371 {offsets = [4, 0], sizes = [16, 64], strides = [1, 1]} : vector<22x64xf32> to vector<16x64xf32>
    %377 = vector.extract_strided_slice %371 {offsets = [5, 0], sizes = [16, 64], strides = [1, 1]} : vector<22x64xf32> to vector<16x64xf32>
    %378 = vector.extract_strided_slice %371 {offsets = [6, 0], sizes = [16, 64], strides = [1, 1]} : vector<22x64xf32> to vector<16x64xf32>
    %379 = tpu.concatenate %372, %373, %374, %375, %376, %377, %378 in 1 : vector<16x64xf32>, vector<16x64xf32>, vector<16x64xf32>, vector<16x64xf32>, vector<16x64xf32>, vector<16x64xf32>, vector<16x64xf32> -> vector<16x448xf32>
    %380 = vector.extract_strided_slice %368 {offsets = [16, 0], sizes = [16, 64], strides = [1, 1]} : vector<32x64xf32> to vector<16x64xf32>
    %cst_112 = arith.constant 0.000000e+00 : f32
    %381 = vector.broadcast %cst_112 : f32 to vector<3x64xf32>
    %382 = tpu.concatenate %381, %380, %381 in 0 : vector<3x64xf32>, vector<16x64xf32>, vector<3x64xf32> -> vector<22x64xf32>
    %383 = vector.extract_strided_slice %382 {offsets = [0, 0], sizes = [16, 64], strides = [1, 1]} : vector<22x64xf32> to vector<16x64xf32>
    %384 = vector.extract_strided_slice %382 {offsets = [1, 0], sizes = [16, 64], strides = [1, 1]} : vector<22x64xf32> to vector<16x64xf32>
    %385 = vector.extract_strided_slice %382 {offsets = [2, 0], sizes = [16, 64], strides = [1, 1]} : vector<22x64xf32> to vector<16x64xf32>
    %386 = vector.extract_strided_slice %382 {offsets = [3, 0], sizes = [16, 64], strides = [1, 1]} : vector<22x64xf32> to vector<16x64xf32>
    %387 = vector.extract_strided_slice %382 {offsets = [4, 0], sizes = [16, 64], strides = [1, 1]} : vector<22x64xf32> to vector<16x64xf32>
    %388 = vector.extract_strided_slice %382 {offsets = [5, 0], sizes = [16, 64], strides = [1, 1]} : vector<22x64xf32> to vector<16x64xf32>
    %389 = vector.extract_strided_slice %382 {offsets = [6, 0], sizes = [16, 64], strides = [1, 1]} : vector<22x64xf32> to vector<16x64xf32>
    %390 = tpu.concatenate %383, %384, %385, %386, %387, %388, %389 in 1 : vector<16x64xf32>, vector<16x64xf32>, vector<16x64xf32>, vector<16x64xf32>, vector<16x64xf32>, vector<16x64xf32>, vector<16x64xf32> -> vector<16x448xf32>
    %391 = tpu.concatenate %379, %390 in 0 : vector<16x448xf32>, vector<16x448xf32> -> vector<32x448xf32>
    %392 = arith.truncf %391 : vector<32x448xf32> to vector<32x448xbf16>
    %cst_113 = arith.constant dense<0.000000e+00> : vector<32x64xf32>
    %393 = tpu.matmul %392, %29, %cst_113 {dimension_numbers = #tpu.dot_dimension_numbers<[1], [0], [0], [1], [0, 0, 1, 1], [], []>} : vector<32x448xbf16>, vector<448x64xbf16>, vector<32x64xf32> -> vector<32x64xf32>
    %394 = vector.broadcast %30 : vector<1x64xf32> to vector<32x64xf32>
    %395 = arith.addf %393, %394 : vector<32x64xf32>
    %396 = arith.addf %395, %339 : vector<32x64xf32>
    %cst_114 = arith.constant 0.000000e+00 : f32
    %397 = vector.broadcast %cst_114 : f32 to vector<32x64xf32>
    %398 = arith.maximumf %396, %397 : vector<32x64xf32>
    %399 = vector.extract_strided_slice %398 {offsets = [0, 0], sizes = [16, 64], strides = [1, 1]} : vector<32x64xf32> to vector<16x64xf32>
    %cst_115 = arith.constant dense<0.000000e+00> : vector<64xf32>
    %400 = vector.multi_reduction <add>, %399, %cst_115 [0] : vector<16x64xf32> to vector<64xf32>
    %401 = vector.shape_cast %400 : vector<64xf32> to vector<1x64xf32>
    %cst_116 = arith.constant 1.600000e+01 : f32
    %402 = vector.broadcast %cst_116 : f32 to vector<1x64xf32>
    %403 = arith.divf %401, %402 : vector<1x64xf32>
    %404 = vector.extract_strided_slice %398 {offsets = [16, 0], sizes = [16, 64], strides = [1, 1]} : vector<32x64xf32> to vector<16x64xf32>
    %cst_117 = arith.constant dense<0.000000e+00> : vector<64xf32>
    %405 = vector.multi_reduction <add>, %404, %cst_117 [0] : vector<16x64xf32> to vector<64xf32>
    %406 = vector.shape_cast %405 : vector<64xf32> to vector<1x64xf32>
    %cst_118 = arith.constant 1.600000e+01 : f32
    %407 = vector.broadcast %cst_118 : f32 to vector<1x64xf32>
    %408 = arith.divf %406, %407 : vector<1x64xf32>
    %409 = tpu.concatenate %403, %408 in 0 : vector<1x64xf32>, vector<1x64xf32> -> vector<2x64xf32>
    %410 = arith.truncf %409 : vector<2x64xf32> to vector<2x64xbf16>
    %cst_119 = arith.constant dense<0.000000e+00> : vector<2x16xf32>
    %411 = tpu.matmul %410, %31, %cst_119 {dimension_numbers = #tpu.dot_dimension_numbers<[1], [0], [0], [1], [0, 0, 1, 1], [], []>} : vector<2x64xbf16>, vector<64x16xbf16>, vector<2x16xf32> -> vector<2x16xf32>
    %412 = vector.broadcast %32 : vector<1x16xf32> to vector<2x16xf32>
    %413 = arith.addf %411, %412 : vector<2x16xf32>
    %c0_120 = arith.constant 0 : index
    %c0_121 = arith.constant 0 : index
    %414 = vector.load %arg34[%c0_120, %c0_121] : memref<2x16xf32, #tpu.memory_space<vmem>>, vector<2x16xf32>
    tpu.vector_store %arg34[%c0_120, %c0_121], %413 {strides = array<i32>} : memref<2x16xf32, #tpu.memory_space<vmem>>, vector<2x16xf32>,
    return
  }
  func.func @transform_0(%arg0: i32) -> (i32, i32) {
    %c0_i32 = arith.constant 0 : i32
    %c0_i32_0 = arith.constant 0 : i32
    %c0_i32_1 = arith.constant 0 : i32
    return %c0_i32, %c0_i32_0 : i32, i32
  }
  func.func @transform_1(%arg0: i32) -> (i32, i32) {
    %c0_i32 = arith.constant 0 : i32
    %c0_i32_0 = arith.constant 0 : i32
    %c0_i32_1 = arith.constant 0 : i32
    return %c0_i32, %c0_i32_0 : i32, i32
  }
  func.func @transform_2(%arg0: i32) -> (i32, i32) {
    %c0_i32 = arith.constant 0 : i32
    %c0_i32_0 = arith.constant 0 : i32
    %c0_i32_1 = arith.constant 0 : i32
    return %c0_i32, %c0_i32_0 : i32, i32
  }
  func.func @transform_3(%arg0: i32) -> (i32, i32) {
    %c0_i32 = arith.constant 0 : i32
    %c0_i32_0 = arith.constant 0 : i32
    %c0_i32_1 = arith.constant 0 : i32
    return %c0_i32, %c0_i32_0 : i32, i32
  }
  func.func @transform_4(%arg0: i32) -> (i32, i32) {
    %c0_i32 = arith.constant 0 : i32
    %c0_i32_0 = arith.constant 0 : i32
    %c0_i32_1 = arith.constant 0 : i32
    return %c0_i32, %c0_i32_0 : i32, i32
  }
  func.func @transform_5(%arg0: i32) -> (i32, i32) {
    %c0_i32 = arith.constant 0 : i32
    %c0_i32_0 = arith.constant 0 : i32
    %c0_i32_1 = arith.constant 0 : i32
    return %c0_i32, %c0_i32_0 : i32, i32
  }
  func.func @transform_6(%arg0: i32) -> (i32, i32) {
    %c0_i32 = arith.constant 0 : i32
    %c0_i32_0 = arith.constant 0 : i32
    %c0_i32_1 = arith.constant 0 : i32
    return %c0_i32, %c0_i32_0 : i32, i32
  }
  func.func @transform_7(%arg0: i32) -> (i32, i32) {
    %c0_i32 = arith.constant 0 : i32
    %c0_i32_0 = arith.constant 0 : i32
    %c0_i32_1 = arith.constant 0 : i32
    return %c0_i32, %c0_i32_0 : i32, i32
  }
  func.func @transform_8(%arg0: i32) -> (i32, i32) {
    %c0_i32 = arith.constant 0 : i32
    %c0_i32_0 = arith.constant 0 : i32
    %c0_i32_1 = arith.constant 0 : i32
    return %c0_i32, %c0_i32_0 : i32, i32
  }
  func.func @transform_9(%arg0: i32) -> (i32, i32) {
    %c0_i32 = arith.constant 0 : i32
    %c0_i32_0 = arith.constant 0 : i32
    %c0_i32_1 = arith.constant 0 : i32
    return %c0_i32, %c0_i32_0 : i32, i32
  }
  func.func @transform_10(%arg0: i32) -> (i32, i32) {
    %c0_i32 = arith.constant 0 : i32
    %c0_i32_0 = arith.constant 0 : i32
    %c0_i32_1 = arith.constant 0 : i32
    return %c0_i32, %c0_i32_0 : i32, i32
  }
  func.func @transform_11(%arg0: i32) -> (i32, i32) {
    %c0_i32 = arith.constant 0 : i32
    %c0_i32_0 = arith.constant 0 : i32
    %c0_i32_1 = arith.constant 0 : i32
    return %c0_i32, %c0_i32_0 : i32, i32
  }
  func.func @transform_12(%arg0: i32) -> (i32, i32) {
    %c0_i32 = arith.constant 0 : i32
    %c0_i32_0 = arith.constant 0 : i32
    %c0_i32_1 = arith.constant 0 : i32
    return %c0_i32, %c0_i32_0 : i32, i32
  }
  func.func @transform_13(%arg0: i32) -> (i32, i32) {
    %c0_i32 = arith.constant 0 : i32
    %c0_i32_0 = arith.constant 0 : i32
    %c0_i32_1 = arith.constant 0 : i32
    return %c0_i32, %c0_i32_0 : i32, i32
  }
  func.func @transform_14(%arg0: i32) -> (i32, i32) {
    %c0_i32 = arith.constant 0 : i32
    %c0_i32_0 = arith.constant 0 : i32
    %c0_i32_1 = arith.constant 0 : i32
    return %c0_i32, %c0_i32_0 : i32, i32
  }
  func.func @transform_15(%arg0: i32) -> (i32, i32) {
    %c0_i32 = arith.constant 0 : i32
    %c0_i32_0 = arith.constant 0 : i32
    %c0_i32_1 = arith.constant 0 : i32
    return %c0_i32, %c0_i32_0 : i32, i32
  }
  func.func @transform_16(%arg0: i32) -> (i32, i32) {
    %c0_i32 = arith.constant 0 : i32
    %c0_i32_0 = arith.constant 0 : i32
    %c0_i32_1 = arith.constant 0 : i32
    return %c0_i32, %c0_i32_0 : i32, i32
  }
  func.func @transform_17(%arg0: i32) -> (i32, i32) {
    %c0_i32 = arith.constant 0 : i32
    %c0_i32_0 = arith.constant 0 : i32
    %c0_i32_1 = arith.constant 0 : i32
    return %c0_i32, %c0_i32_0 : i32, i32
  }
  func.func @transform_18(%arg0: i32) -> (i32, i32) {
    %c0_i32 = arith.constant 0 : i32
    %c0_i32_0 = arith.constant 0 : i32
    %c0_i32_1 = arith.constant 0 : i32
    return %c0_i32, %c0_i32_0 : i32, i32
  }
  func.func @transform_19(%arg0: i32) -> (i32, i32) {
    %c0_i32 = arith.constant 0 : i32
    %c0_i32_0 = arith.constant 0 : i32
    %c0_i32_1 = arith.constant 0 : i32
    return %c0_i32, %c0_i32_0 : i32, i32
  }
  func.func @transform_20(%arg0: i32) -> (i32, i32) {
    %c0_i32 = arith.constant 0 : i32
    %c0_i32_0 = arith.constant 0 : i32
    %c0_i32_1 = arith.constant 0 : i32
    return %c0_i32, %c0_i32_0 : i32, i32
  }
  func.func @transform_21(%arg0: i32) -> (i32, i32) {
    %c0_i32 = arith.constant 0 : i32
    %c0_i32_0 = arith.constant 0 : i32
    %c0_i32_1 = arith.constant 0 : i32
    return %c0_i32, %c0_i32_0 : i32, i32
  }
  func.func @transform_22(%arg0: i32) -> (i32, i32) {
    %c0_i32 = arith.constant 0 : i32
    %c0_i32_0 = arith.constant 0 : i32
    %c0_i32_1 = arith.constant 0 : i32
    return %c0_i32, %c0_i32_0 : i32, i32
  }
  func.func @transform_23(%arg0: i32) -> (i32, i32) {
    %c0_i32 = arith.constant 0 : i32
    %c0_i32_0 = arith.constant 0 : i32
    %c0_i32_1 = arith.constant 0 : i32
    return %c0_i32, %c0_i32_0 : i32, i32
  }
  func.func @transform_24(%arg0: i32) -> (i32, i32) {
    %c0_i32 = arith.constant 0 : i32
    %c0_i32_0 = arith.constant 0 : i32
    %c0_i32_1 = arith.constant 0 : i32
    return %c0_i32, %c0_i32_0 : i32, i32
  }
  func.func @transform_25(%arg0: i32) -> (i32, i32) {
    %c0_i32 = arith.constant 0 : i32
    %c0_i32_0 = arith.constant 0 : i32
    %c0_i32_1 = arith.constant 0 : i32
    return %c0_i32, %c0_i32_0 : i32, i32
  }
  func.func @transform_26(%arg0: i32) -> (i32, i32) {
    %c0_i32 = arith.constant 0 : i32
    %c0_i32_0 = arith.constant 0 : i32
    %c0_i32_1 = arith.constant 0 : i32
    return %c0_i32, %c0_i32_0 : i32, i32
  }
  func.func @transform_27(%arg0: i32) -> (i32, i32) {
    %c0_i32 = arith.constant 0 : i32
    %c0_i32_0 = arith.constant 0 : i32
    %c0_i32_1 = arith.constant 0 : i32
    return %c0_i32, %c0_i32_0 : i32, i32
  }
  func.func @transform_28(%arg0: i32) -> (i32, i32) {
    %c0_i32 = arith.constant 0 : i32
    %c0_i32_0 = arith.constant 0 : i32
    %c0_i32_1 = arith.constant 0 : i32
    return %c0_i32, %c0_i32_0 : i32, i32
  }
  func.func @transform_29(%arg0: i32) -> (i32, i32) {
    %c0_i32 = arith.constant 0 : i32
    %c0_i32_0 = arith.constant 0 : i32
    %c0_i32_1 = arith.constant 0 : i32
    return %c0_i32, %c0_i32_0 : i32, i32
  }
  func.func @transform_30(%arg0: i32) -> (i32, i32) {
    %c0_i32 = arith.constant 0 : i32
    %c0_i32_0 = arith.constant 0 : i32
    %c0_i32_1 = arith.constant 0 : i32
    return %c0_i32, %c0_i32_0 : i32, i32
  }
  func.func @transform_31(%arg0: i32) -> (i32, i32) {
    %c0_i32 = arith.constant 0 : i32
    %c0_i32_0 = arith.constant 0 : i32
    %c0_i32_1 = arith.constant 0 : i32
    return %c0_i32, %c0_i32_0 : i32, i32
  }
  func.func @transform_32(%arg0: i32) -> (i32, i32) {
    %c0_i32 = arith.constant 0 : i32
    %c0_i32_0 = arith.constant 0 : i32
    %c0_i32_1 = arith.constant 0 : i32
    return %c0_i32, %c0_i32_0 : i32, i32
  }
  func.func @transform_33(%arg0: i32) -> (i32, i32) {
    %c0_i32 = arith.constant 0 : i32
    %c0_i32_0 = arith.constant 0 : i32
    %c0_i32_1 = arith.constant 0 : i32
    return %c0_i32, %c0_i32_0 : i32, i32
  }
}

</mosaic_0001>

<llo_original>
// kernel: tpu_custom_call.1
$region0: #{tpu_custom_call.1}
  #allocation0 [shape = 'u32[]', space=smem, size = 0x4, offset = 0x4, fixed_abs, tag = 'smem constant byte address 0x4 - core index']
  #allocation1 [shape = 'u32[72,128]{1,0:T(1,128)}', space=vmem, size = 0x9000, scoped, tag = 'internal scratch']
  %s0 = inlined_call_operand.smem [shape: u32[34], index: -1, kind: input, shape index: {}]
  %s1 = sld [smem:[%s0]]
  %s2 = scalar_lea.smem %s0, 1
  %s3 = sld [smem:[%s2]]
  %s4 = scalar_lea.smem %s0, 2
  %s5 = sld [smem:[%s4]]
  %s6 = scalar_lea.smem %s0, 3
  %s7 = sld [smem:[%s6]]
  %s8 = scalar_lea.smem %s0, 4
  %s9 = sld [smem:[%s8]]
  %s10 = scalar_lea.smem %s0, 5
  %s11 = sld [smem:[%s10]]
  %s12 = scalar_lea.smem %s0, 6
  %s13 = sld [smem:[%s12]]
  %s14 = scalar_lea.smem %s0, 7
  %s15 = sld [smem:[%s14]]
  %s16 = scalar_lea.smem %s0, 8
  %s17 = sld [smem:[%s16]]
  %s18 = scalar_lea.smem %s0, 9
  %s19 = sld [smem:[%s18]]
  %s20 = scalar_lea.smem %s0, 10
  %s21 = sld [smem:[%s20]]
  %s22 = scalar_lea.smem %s0, 11
  %s23 = sld [smem:[%s22]]
  %s24 = scalar_lea.smem %s0, 12
  %s25 = sld [smem:[%s24]]
  %s26 = scalar_lea.smem %s0, 13
  %s27 = sld [smem:[%s26]]
  %s28 = scalar_lea.smem %s0, 14
  %s29 = sld [smem:[%s28]]
  %s30 = scalar_lea.smem %s0, 15
  %s31 = sld [smem:[%s30]]
  %s32 = scalar_lea.smem %s0, 16
  %s33 = sld [smem:[%s32]]
  %s34 = scalar_lea.smem %s0, 17
  %s35 = sld [smem:[%s34]]
  %s36 = scalar_lea.smem %s0, 18
  %s37 = sld [smem:[%s36]]
  %s38 = scalar_lea.smem %s0, 19
  %s39 = sld [smem:[%s38]]
  %s40 = scalar_lea.smem %s0, 20
  %s41 = sld [smem:[%s40]]
  %s42 = scalar_lea.smem %s0, 21
  %s43 = sld [smem:[%s42]]
  %s44 = scalar_lea.smem %s0, 22
  %s45 = sld [smem:[%s44]]
  %s46 = scalar_lea.smem %s0, 23
  %s47 = sld [smem:[%s46]]
  %s48 = scalar_lea.smem %s0, 24
  %s49 = sld [smem:[%s48]]
  %s50 = scalar_lea.smem %s0, 25
  %s51 = sld [smem:[%s50]]
  %s52 = scalar_lea.smem %s0, 26
  %s53 = sld [smem:[%s52]]
  %s54 = scalar_lea.smem %s0, 27
  %s55 = sld [smem:[%s54]]
  %s56 = scalar_lea.smem %s0, 28
  %s57 = sld [smem:[%s56]]
  %s58 = scalar_lea.smem %s0, 29
  %s59 = sld [smem:[%s58]]
  %s60 = scalar_lea.smem %s0, 30
  %s61 = sld [smem:[%s60]]
  %s62 = scalar_lea.smem %s0, 31
  %s63 = sld [smem:[%s62]]
  %s64 = scalar_lea.smem %s0, 32
  %s65 = sld [smem:[%s64]]
  %s66 = scalar_lea.smem %s0, 33
  %s67 = sld [smem:[%s66]]
  %s68 = sld [smem:[#allocation0]]
  $region142: #{tpu_custom_call.1} parent=0
    _
  %s70 = ssub.s32 1, %s68
  %s71 = scalar_select 0, %s70, %s68
  $region1: #{tpu_custom_call.1} parent=0
    #allocation2 [shape = 'u8[1024]{0}', space=vmem, size = 0x400, scoped, tag = 'output window, operand 0, single buffered']
    #allocation3 [shape = 's32[1]{0}', space=sflag, size = 0x4, scoped, tag = 'scoped memory for tpu_custom_call.1']
    %72 = vsyncpa [#allocation3], 0
    // Predicated region
    $region2: #{tpu_custom_call.1} parent=1 // pred_check
      _
    $region3: #{tpu_custom_call.1} parent=1 // pred_check_branch
      %74 = sbr.rel (0) target = $region5
    $region4: #{tpu_custom_call.1} parent=1 // pred_region
      _
    $region5: #{tpu_custom_call.1} parent=1 // pred_fallthru
      _
    // Predicated region
    $region6: #{tpu_custom_call.1} parent=1 // pred_check
      _
    $region7: #{tpu_custom_call.1} parent=1 // pred_check_branch
      %76 = sbr.rel (0) target = $region9
    $region8: #{tpu_custom_call.1} parent=1 // pred_region
      _
    $region9: #{tpu_custom_call.1} parent=1 // pred_fallthru
      _
    // Predicated region
    $region10: #{tpu_custom_call.1} parent=1 // pred_check
      _
    $region11: #{tpu_custom_call.1} parent=1 // pred_check_branch
      %78 = sbr.rel (0) target = $region13
    $region12: #{tpu_custom_call.1} parent=1 // pred_region
      _
    $region13: #{tpu_custom_call.1} parent=1 // pred_fallthru
      _
    // Predicated region
    $region14: #{tpu_custom_call.1} parent=1 // pred_check
      _
    $region15: #{tpu_custom_call.1} parent=1 // pred_check_branch
      %80 = sbr.rel (0) target = $region17
    $region16: #{tpu_custom_call.1} parent=1 // pred_region
      _
    $region17: #{tpu_custom_call.1} parent=1 // pred_fallthru
      _
    // Predicated region
    $region18: #{tpu_custom_call.1} parent=1 // pred_check
      _
    $region19: #{tpu_custom_call.1} parent=1 // pred_check_branch
      %82 = sbr.rel (0) target = $region21
    $region20: #{tpu_custom_call.1} parent=1 // pred_region
      _
    $region21: #{tpu_custom_call.1} parent=1 // pred_fallthru
      _
    // Predicated region
    $region22: #{tpu_custom_call.1} parent=1 // pred_check
      _
    $region23: #{tpu_custom_call.1} parent=1 // pred_check_branch
      %84 = sbr.rel (0) target = $region25
    $region24: #{tpu_custom_call.1} parent=1 // pred_region
      _
    $region25: #{tpu_custom_call.1} parent=1 // pred_fallthru
      _
    // Predicated region
    $region26: #{tpu_custom_call.1} parent=1 // pred_check
      _
    $region27: #{tpu_custom_call.1} parent=1 // pred_check_branch
      %86 = sbr.rel (0) target = $region29
    $region28: #{tpu_custom_call.1} parent=1 // pred_region
      _
    $region29: #{tpu_custom_call.1} parent=1 // pred_fallthru
      _
    // Predicated region
    $region30: #{tpu_custom_call.1} parent=1 // pred_check
      _
    $region31: #{tpu_custom_call.1} parent=1 // pred_check_branch
      %88 = sbr.rel (0) target = $region33
    $region32: #{tpu_custom_call.1} parent=1 // pred_region
      _
    $region33: #{tpu_custom_call.1} parent=1 // pred_fallthru
      _
    // Predicated region
    $region34: #{tpu_custom_call.1} parent=1 // pred_check
      _
    $region35: #{tpu_custom_call.1} parent=1 // pred_check_branch
      %90 = sbr.rel (0) target = $region37
    $region36: #{tpu_custom_call.1} parent=1 // pred_region
      _
    $region37: #{tpu_custom_call.1} parent=1 // pred_fallthru
      _
    // Predicated region
    $region38: #{tpu_custom_call.1} parent=1 // pred_check
      _
    $region39: #{tpu_custom_call.1} parent=1 // pred_check_branch
      %92 = sbr.rel (0) target = $region41
    $region40: #{tpu_custom_call.1} parent=1 // pred_region
      _
    $region41: #{tpu_custom_call.1} parent=1 // pred_fallthru
      _
    // Predicated region
    $region42: #{tpu_custom_call.1} parent=1 // pred_check
      _
    $region43: #{tpu_custom_call.1} parent=1 // pred_check_branch
      %94 = sbr.rel (0) target = $region45
    $region44: #{tpu_custom_call.1} parent=1 // pred_region
      _
    $region45: #{tpu_custom_call.1} parent=1 // pred_fallthru
      _
    // Predicated region
    $region46: #{tpu_custom_call.1} parent=1 // pred_check
      _
    $region47: #{tpu_custom_call.1} parent=1 // pred_check_branch
      %96 = sbr.rel (0) target = $region49
    $region48: #{tpu_custom_call.1} parent=1 // pred_region
      _
    $region49: #{tpu_custom_call.1} parent=1 // pred_fallthru
      _
    // Predicated region
    $region50: #{tpu_custom_call.1} parent=1 // pred_check
      _
    $region51: #{tpu_custom_call.1} parent=1 // pred_check_branch
      %98 = sbr.rel (0) target = $region53
    $region52: #{tpu_custom_call.1} parent=1 // pred_region
      _
    $region53: #{tpu_custom_call.1} parent=1 // pred_fallthru
      _
    // Predicated region
    $region54: #{tpu_custom_call.1} parent=1 // pred_check
      _
    $region55: #{tpu_custom_call.1} parent=1 // pred_check_branch
      %100 = sbr.rel (0) target = $region57
    $region56: #{tpu_custom_call.1} parent=1 // pred_region
      _
    $region57: #{tpu_custom_call.1} parent=1 // pred_fallthru
      _
    // Predicated region
    $region58: #{tpu_custom_call.1} parent=1 // pred_check
      _
    $region59: #{tpu_custom_call.1} parent=1 // pred_check_branch
      %102 = sbr.rel (0) target = $region61
    $region60: #{tpu_custom_call.1} parent=1 // pred_region
      _
    $region61: #{tpu_custom_call.1} parent=1 // pred_fallthru
      _
    // Predicated region
    $region62: #{tpu_custom_call.1} parent=1 // pred_check
      _
    $region63: #{tpu_custom_call.1} parent=1 // pred_check_branch
      %104 = sbr.rel (0) target = $region65
    $region64: #{tpu_custom_call.1} parent=1 // pred_region
      _
    $region65: #{tpu_custom_call.1} parent=1 // pred_fallthru
      _
    // Predicated region
    $region66: #{tpu_custom_call.1} parent=1 // pred_check
      _
    $region67: #{tpu_custom_call.1} parent=1 // pred_check_branch
      %106 = sbr.rel (0) target = $region69
    $region68: #{tpu_custom_call.1} parent=1 // pred_region
      _
    $region69: #{tpu_custom_call.1} parent=1 // pred_fallthru
      _
    // Predicated region
    $region70: #{tpu_custom_call.1} parent=1 // pred_check
      _
    $region71: #{tpu_custom_call.1} parent=1 // pred_check_branch
      %108 = sbr.rel (0) target = $region73
    $region72: #{tpu_custom_call.1} parent=1 // pred_region
      _
    $region73: #{tpu_custom_call.1} parent=1 // pred_fallthru
      _
    // Predicated region
    $region74: #{tpu_custom_call.1} parent=1 // pred_check
      _
    $region75: #{tpu_custom_call.1} parent=1 // pred_check_branch
      %110 = sbr.rel (0) target = $region77
    $region76: #{tpu_custom_call.1} parent=1 // pred_region
      _
    $region77: #{tpu_custom_call.1} parent=1 // pred_fallthru
      _
    // Predicated region
    $region78: #{tpu_custom_call.1} parent=1 // pred_check
      _
    $region79: #{tpu_custom_call.1} parent=1 // pred_check_branch
      %112 = sbr.rel (0) target = $region81
    $region80: #{tpu_custom_call.1} parent=1 // pred_region
      _
    $region81: #{tpu_custom_call.1} parent=1 // pred_fallthru
      _
    // Predicated region
    $region82: #{tpu_custom_call.1} parent=1 // pred_check
      _
    $region83: #{tpu_custom_call.1} parent=1 // pred_check_branch
      %114 = sbr.rel (0) target = $region85
    $region84: #{tpu_custom_call.1} parent=1 // pred_region
      _
    $region85: #{tpu_custom_call.1} parent=1 // pred_fallthru
      _
    // Predicated region
    $region86: #{tpu_custom_call.1} parent=1 // pred_check
      _
    $region87: #{tpu_custom_call.1} parent=1 // pred_check_branch
      %116 = sbr.rel (0) target = $region89
    $region88: #{tpu_custom_call.1} parent=1 // pred_region
      _
    $region89: #{tpu_custom_call.1} parent=1 // pred_fallthru
      _
    // Predicated region
    $region90: #{tpu_custom_call.1} parent=1 // pred_check
      _
    $region91: #{tpu_custom_call.1} parent=1 // pred_check_branch
      %118 = sbr.rel (0) target = $region93
    $region92: #{tpu_custom_call.1} parent=1 // pred_region
      _
    $region93: #{tpu_custom_call.1} parent=1 // pred_fallthru
      _
    // Predicated region
    $region94: #{tpu_custom_call.1} parent=1 // pred_check
      _
    $region95: #{tpu_custom_call.1} parent=1 // pred_check_branch
      %120 = sbr.rel (0) target = $region97
    $region96: #{tpu_custom_call.1} parent=1 // pred_region
      _
    $region97: #{tpu_custom_call.1} parent=1 // pred_fallthru
      _
    // Predicated region
    $region98: #{tpu_custom_call.1} parent=1 // pred_check
      _
    $region99: #{tpu_custom_call.1} parent=1 // pred_check_branch
      %122 = sbr.rel (0) target = $region101
    $region100: #{tpu_custom_call.1} parent=1 // pred_region
      _
    $region101: #{tpu_custom_call.1} parent=1 // pred_fallthru
      _
    // Predicated region
    $region102: #{tpu_custom_call.1} parent=1 // pred_check
      _
    $region103: #{tpu_custom_call.1} parent=1 // pred_check_branch
      %124 = sbr.rel (0) target = $region105
    $region104: #{tpu_custom_call.1} parent=1 // pred_region
      _
    $region105: #{tpu_custom_call.1} parent=1 // pred_fallthru
      _
    // Predicated region
    $region106: #{tpu_custom_call.1} parent=1 // pred_check
      _
    $region107: #{tpu_custom_call.1} parent=1 // pred_check_branch
      %126 = sbr.rel (0) target = $region109
    $region108: #{tpu_custom_call.1} parent=1 // pred_region
      _
    $region109: #{tpu_custom_call.1} parent=1 // pred_fallthru
      _
    // Predicated region
    $region110: #{tpu_custom_call.1} parent=1 // pred_check
      _
    $region111: #{tpu_custom_call.1} parent=1 // pred_check_branch
      %128 = sbr.rel (0) target = $region113
    $region112: #{tpu_custom_call.1} parent=1 // pred_region
      _
    $region113: #{tpu_custom_call.1} parent=1 // pred_fallthru
      _
    // Predicated region
    $region114: #{tpu_custom_call.1} parent=1 // pred_check
      _
    $region115: #{tpu_custom_call.1} parent=1 // pred_check_branch
      %130 = sbr.rel (0) target = $region117
    $region116: #{tpu_custom_call.1} parent=1 // pred_region
      _
    $region117: #{tpu_custom_call.1} parent=1 // pred_fallthru
      _
    // Predicated region
    $region118: #{tpu_custom_call.1} parent=1 // pred_check
      _
    $region119: #{tpu_custom_call.1} parent=1 // pred_check_branch
      %132 = sbr.rel (0) target = $region121
    $region120: #{tpu_custom_call.1} parent=1 // pred_region
      _
    $region121: #{tpu_custom_call.1} parent=1 // pred_fallthru
      _
    // Predicated region
    $region122: #{tpu_custom_call.1} parent=1 // pred_check
      _
    $region123: #{tpu_custom_call.1} parent=1 // pred_check_branch
      %134 = sbr.rel (0) target = $region125
    $region124: #{tpu_custom_call.1} parent=1 // pred_region
      _
    $region125: #{tpu_custom_call.1} parent=1 // pred_fallthru
      _
    // Predicated region
    $region126: #{tpu_custom_call.1} parent=1 // pred_check
      _
    $region127: #{tpu_custom_call.1} parent=1 // pred_check_branch
      %136 = sbr.rel (0) target = $region129
    $region128: #{tpu_custom_call.1} parent=1 // pred_region
      _
    $region129: #{tpu_custom_call.1} parent=1 // pred_fallthru
      _
    // Predicated region
    $region130: #{tpu_custom_call.1} parent=1 // pred_check
      _
    $region131: #{tpu_custom_call.1} parent=1 // pred_check_branch
      %138 = sbr.rel (0) target = $region133
    $region132: #{tpu_custom_call.1} parent=1 // pred_region
      _
    $region133: #{tpu_custom_call.1} parent=1 // pred_fallthru
      _
    %v140 = vld [vmem:[%s1] sm:$0xff]
    %v141 = vld [vmem:[%s1 + $0x8] sm:$0xff]
    %v142 = vld [vmem:[%s1 + $0x10] sm:$0xff]
    %v143 = vld [vmem:[%s1 + $0x18] sm:$0xff]
    %v144 = vld [vmem:[%s3] sm:$0xf]
    %v145 = vld [vmem:[%s5] sm:$0x1]
    %v146 = vld [vmem:[%s7] sm:$0xf]
    %v147 = vld [vmem:[%s7 + $0x4] sm:$0xf]
    %v148 = vld [vmem:[%s7 + $0x8] sm:$0xf]
    %v149 = vld [vmem:[%s7 + $0xc] sm:$0xf]
    %v150 = vld [vmem:[%s7 + $0x10] sm:$0xf]
    %v151 = vld [vmem:[%s7 + $0x14] sm:$0xf]
    %v152 = vld [vmem:[%s7 + $0x18] sm:$0xf]
    %v153 = vld [vmem:[%s7 + $0x1c] sm:$0xf]
    %v154 = vld [vmem:[%s7 + $0x20] sm:$0xf]
    %v155 = vld [vmem:[%s7 + $0x24] sm:$0xf]
    %v156 = vld [vmem:[%s7 + $0x28] sm:$0xf]
    %v157 = vld [vmem:[%s7 + $0x2c] sm:$0xf]
    %v158 = vld [vmem:[%s7 + $0x30] sm:$0xf]
    %v159 = vld [vmem:[%s7 + $0x34] sm:$0xf]
    %v160 = vld [vmem:[%s9] sm:$0x1]
    %v161 = vld [vmem:[%s11] sm:$0x1]
    %v162 = vld [vmem:[%s13] sm:$0x1]
    %v163 = vld [vmem:[%s15] sm:$0xf]
    %v164 = vld [vmem:[%s15 + $0x4] sm:$0xf]
    %v165 = vld [vmem:[%s15 + $0x8] sm:$0xf]
    %v166 = vld [vmem:[%s15 + $0xc] sm:$0xf]
    %v167 = vld [vmem:[%s15 + $0x10] sm:$0xf]
    %v168 = vld [vmem:[%s15 + $0x14] sm:$0xf]
    %v169 = vld [vmem:[%s15 + $0x18] sm:$0xf]
    %v170 = vld [vmem:[%s15 + $0x1c] sm:$0xf]
    %v171 = vld [vmem:[%s15 + $0x20] sm:$0xf]
    %v172 = vld [vmem:[%s15 + $0x24] sm:$0xf]
    %v173 = vld [vmem:[%s15 + $0x28] sm:$0xf]
    %v174 = vld [vmem:[%s15 + $0x2c] sm:$0xf]
    %v175 = vld [vmem:[%s15 + $0x30] sm:$0xf]
    %v176 = vld [vmem:[%s15 + $0x34] sm:$0xf]
    %v177 = vld [vmem:[%s17] sm:$0x1]
    %v178 = vld [vmem:[%s19] sm:$0xf]
    %v179 = vld [vmem:[%s19 + $0x4] sm:$0xf]
    %v180 = vld [vmem:[%s19 + $0x8] sm:$0xf]
    %v181 = vld [vmem:[%s19 + $0xc] sm:$0xf]
    %v182 = vld [vmem:[%s19 + $0x10] sm:$0xf]
    %v183 = vld [vmem:[%s19 + $0x14] sm:$0xf]
    %v184 = vld [vmem:[%s19 + $0x18] sm:$0xf]
    %v185 = vld [vmem:[%s19 + $0x1c] sm:$0xf]
    %v186 = vld [vmem:[%s19 + $0x20] sm:$0xf]
    %v187 = vld [vmem:[%s19 + $0x24] sm:$0xf]
    %v188 = vld [vmem:[%s19 + $0x28] sm:$0xf]
    %v189 = vld [vmem:[%s19 + $0x2c] sm:$0xf]
    %v190 = vld [vmem:[%s19 + $0x30] sm:$0xf]
    %v191 = vld [vmem:[%s19 + $0x34] sm:$0xf]
    %v192 = vld [vmem:[%s21] sm:$0x1]
    %v193 = vld [vmem:[%s23] sm:$0xf]
    %v194 = vld [vmem:[%s23 + $0x4] sm:$0xf]
    %v195 = vld [vmem:[%s23 + $0x8] sm:$0xf]
    %v196 = vld [vmem:[%s23 + $0xc] sm:$0xf]
    %v197 = vld [vmem:[%s23 + $0x10] sm:$0xf]
    %v198 = vld [vmem:[%s23 + $0x14] sm:$0xf]
    %v199 = vld [vmem:[%s23 + $0x18] sm:$0xf]
    %v200 = vld [vmem:[%s23 + $0x1c] sm:$0xf]
    %v201 = vld [vmem:[%s23 + $0x20] sm:$0xf]
    %v202 = vld [vmem:[%s23 + $0x24] sm:$0xf]
    %v203 = vld [vmem:[%s23 + $0x28] sm:$0xf]
    %v204 = vld [vmem:[%s23 + $0x2c] sm:$0xf]
    %v205 = vld [vmem:[%s23 + $0x30] sm:$0xf]
    %v206 = vld [vmem:[%s23 + $0x34] sm:$0xf]
    %v207 = vld [vmem:[%s25] sm:$0x1]
    %v208 = vld [vmem:[%s27] sm:$0xf]
    %v209 = vld [vmem:[%s27 + $0x4] sm:$0xf]
    %v210 = vld [vmem:[%s27 + $0x8] sm:$0xf]
    %v211 = vld [vmem:[%s27 + $0xc] sm:$0xf]
    %v212 = vld [vmem:[%s27 + $0x10] sm:$0xf]
    %v213 = vld [vmem:[%s27 + $0x14] sm:$0xf]
    %v214 = vld [vmem:[%s27 + $0x18] sm:$0xf]
    %v215 = vld [vmem:[%s27 + $0x1c] sm:$0xf]
    %v216 = vld [vmem:[%s27 + $0x20] sm:$0xf]
    %v217 = vld [vmem:[%s27 + $0x24] sm:$0xf]
    %v218 = vld [vmem:[%s27 + $0x28] sm:$0xf]
    %v219 = vld [vmem:[%s27 + $0x2c] sm:$0xf]
    %v220 = vld [vmem:[%s27 + $0x30] sm:$0xf]
    %v221 = vld [vmem:[%s27 + $0x34] sm:$0xf]
    %v222 = vld [vmem:[%s27 + $0x38] sm:$0xf]
    %v223 = vld [vmem:[%s27 + $0x3c] sm:$0xf]
    %v224 = vld [vmem:[%s27 + $0x40] sm:$0xf]
    %v225 = vld [vmem:[%s27 + $0x44] sm:$0xf]
    %v226 = vld [vmem:[%s27 + $0x48] sm:$0xf]
    %v227 = vld [vmem:[%s27 + $0x4c] sm:$0xf]
    %v228 = vld [vmem:[%s27 + $0x50] sm:$0xf]
    %v229 = vld [vmem:[%s27 + $0x54] sm:$0xf]
    %v230 = vld [vmem:[%s27 + $0x58] sm:$0xf]
    %v231 = vld [vmem:[%s27 + $0x5c] sm:$0xf]
    %v232 = vld [vmem:[%s27 + $0x60] sm:$0xf]
    %v233 = vld [vmem:[%s27 + $0x64] sm:$0xf]
    %v234 = vld [vmem:[%s27 + $0x68] sm:$0xf]
    %v235 = vld [vmem:[%s27 + $0x6c] sm:$0xf]
    %v236 = vld [vmem:[%s29] sm:$0x1]
    %v237 = vld [vmem:[%s31] sm:$0xf]
    %v238 = vld [vmem:[%s31 + $0x4] sm:$0xf]
    %v239 = vld [vmem:[%s33] sm:$0x1]
    %v240 = vld [vmem:[%s35] sm:$0xf]
    %v241 = vld [vmem:[%s35 + $0x4] sm:$0xf]
    %v242 = vld [vmem:[%s35 + $0x8] sm:$0xf]
    %v243 = vld [vmem:[%s35 + $0xc] sm:$0xf]
    %v244 = vld [vmem:[%s35 + $0x10] sm:$0xf]
    %v245 = vld [vmem:[%s35 + $0x14] sm:$0xf]
    %v246 = vld [vmem:[%s35 + $0x18] sm:$0xf]
    %v247 = vld [vmem:[%s35 + $0x1c] sm:$0xf]
    %v248 = vld [vmem:[%s35 + $0x20] sm:$0xf]
    %v249 = vld [vmem:[%s35 + $0x24] sm:$0xf]
    %v250 = vld [vmem:[%s35 + $0x28] sm:$0xf]
    %v251 = vld [vmem:[%s35 + $0x2c] sm:$0xf]
    %v252 = vld [vmem:[%s35 + $0x30] sm:$0xf]
    %v253 = vld [vmem:[%s35 + $0x34] sm:$0xf]
    %v254 = vld [vmem:[%s35 + $0x38] sm:$0xf]
    %v255 = vld [vmem:[%s35 + $0x3c] sm:$0xf]
    %v256 = vld [vmem:[%s35 + $0x40] sm:$0xf]
    %v257 = vld [vmem:[%s35 + $0x44] sm:$0xf]
    %v258 = vld [vmem:[%s35 + $0x48] sm:$0xf]
    %v259 = vld [vmem:[%s35 + $0x4c] sm:$0xf]
    %v260 = vld [vmem:[%s35 + $0x50] sm:$0xf]
    %v261 = vld [vmem:[%s35 + $0x54] sm:$0xf]
    %v262 = vld [vmem:[%s35 + $0x58] sm:$0xf]
    %v263 = vld [vmem:[%s35 + $0x5c] sm:$0xf]
    %v264 = vld [vmem:[%s35 + $0x60] sm:$0xf]
    %v265 = vld [vmem:[%s35 + $0x64] sm:$0xf]
    %v266 = vld [vmem:[%s35 + $0x68] sm:$0xf]
    %v267 = vld [vmem:[%s35 + $0x6c] sm:$0xf]
    %v268 = vld [vmem:[%s37] sm:$0x1]
    %v269 = vld [vmem:[%s39] sm:$0xf]
    %v270 = vld [vmem:[%s39 + $0x4] sm:$0xf]
    %v271 = vld [vmem:[%s39 + $0x8] sm:$0xf]
    %v272 = vld [vmem:[%s39 + $0xc] sm:$0xf]
    %v273 = vld [vmem:[%s39 + $0x10] sm:$0xf]
    %v274 = vld [vmem:[%s39 + $0x14] sm:$0xf]
    %v275 = vld [vmem:[%s39 + $0x18] sm:$0xf]
    %v276 = vld [vmem:[%s39 + $0x1c] sm:$0xf]
    %v277 = vld [vmem:[%s39 + $0x20] sm:$0xf]
    %v278 = vld [vmem:[%s39 + $0x24] sm:$0xf]
    %v279 = vld [vmem:[%s39 + $0x28] sm:$0xf]
    %v280 = vld [vmem:[%s39 + $0x2c] sm:$0xf]
    %v281 = vld [vmem:[%s39 + $0x30] sm:$0xf]
    %v282 = vld [vmem:[%s39 + $0x34] sm:$0xf]
    %v283 = vld [vmem:[%s39 + $0x38] sm:$0xf]
    %v284 = vld [vmem:[%s39 + $0x3c] sm:$0xf]
    %v285 = vld [vmem:[%s39 + $0x40] sm:$0xf]
    %v286 = vld [vmem:[%s39 + $0x44] sm:$0xf]
    %v287 = vld [vmem:[%s39 + $0x48] sm:$0xf]
    %v288 = vld [vmem:[%s39 + $0x4c] sm:$0xf]
    %v289 = vld [vmem:[%s39 + $0x50] sm:$0xf]
    %v290 = vld [vmem:[%s39 + $0x54] sm:$0xf]
    %v291 = vld [vmem:[%s39 + $0x58] sm:$0xf]
    %v292 = vld [vmem:[%s39 + $0x5c] sm:$0xf]
    %v293 = vld [vmem:[%s39 + $0x60] sm:$0xf]
    %v294 = vld [vmem:[%s39 + $0x64] sm:$0xf]
    %v295 = vld [vmem:[%s39 + $0x68] sm:$0xf]
    %v296 = vld [vmem:[%s39 + $0x6c] sm:$0xf]
    %v297 = vld [vmem:[%s41] sm:$0x1]
    %v298 = vld [vmem:[%s43] sm:$0xf]
    %v299 = vld [vmem:[%s43 + $0x4] sm:$0xf]
    %v300 = vld [vmem:[%s43 + $0x8] sm:$0xf]
    %v301 = vld [vmem:[%s43 + $0xc] sm:$0xf]
    %v302 = vld [vmem:[%s43 + $0x10] sm:$0xf]
    %v303 = vld [vmem:[%s43 + $0x14] sm:$0xf]
    %v304 = vld [vmem:[%s43 + $0x18] sm:$0xf]
    %v305 = vld [vmem:[%s43 + $0x1c] sm:$0xf]
    %v306 = vld [vmem:[%s43 + $0x20] sm:$0xf]
    %v307 = vld [vmem:[%s43 + $0x24] sm:$0xf]
    %v308 = vld [vmem:[%s43 + $0x28] sm:$0xf]
    %v309 = vld [vmem:[%s43 + $0x2c] sm:$0xf]
    %v310 = vld [vmem:[%s43 + $0x30] sm:$0xf]
    %v311 = vld [vmem:[%s43 + $0x34] sm:$0xf]
    %v312 = vld [vmem:[%s43 + $0x38] sm:$0xf]
    %v313 = vld [vmem:[%s43 + $0x3c] sm:$0xf]
    %v314 = vld [vmem:[%s43 + $0x40] sm:$0xf]
    %v315 = vld [vmem:[%s43 + $0x44] sm:$0xf]
    %v316 = vld [vmem:[%s43 + $0x48] sm:$0xf]
    %v317 = vld [vmem:[%s43 + $0x4c] sm:$0xf]
    %v318 = vld [vmem:[%s43 + $0x50] sm:$0xf]
    %v319 = vld [vmem:[%s43 + $0x54] sm:$0xf]
    %v320 = vld [vmem:[%s43 + $0x58] sm:$0xf]
    %v321 = vld [vmem:[%s43 + $0x5c] sm:$0xf]
    %v322 = vld [vmem:[%s43 + $0x60] sm:$0xf]
    %v323 = vld [vmem:[%s43 + $0x64] sm:$0xf]
    %v324 = vld [vmem:[%s43 + $0x68] sm:$0xf]
    %v325 = vld [vmem:[%s43 + $0x6c] sm:$0xf]
    %v326 = vld [vmem:[%s45] sm:$0x1]
    %v327 = vld [vmem:[%s47] sm:$0xf]
    %v328 = vld [vmem:[%s47 + $0x4] sm:$0xf]
    %v329 = vld [vmem:[%s47 + $0x8] sm:$0xf]
    %v330 = vld [vmem:[%s47 + $0xc] sm:$0xf]
    %v331 = vld [vmem:[%s47 + $0x10] sm:$0xf]
    %v332 = vld [vmem:[%s47 + $0x14] sm:$0xf]
    %v333 = vld [vmem:[%s47 + $0x18] sm:$0xf]
    %v334 = vld [vmem:[%s47 + $0x1c] sm:$0xf]
    %v335 = vld [vmem:[%s47 + $0x20] sm:$0xf]
    %v336 = vld [vmem:[%s47 + $0x24] sm:$0xf]
    %v337 = vld [vmem:[%s47 + $0x28] sm:$0xf]
    %v338 = vld [vmem:[%s47 + $0x2c] sm:$0xf]
    %v339 = vld [vmem:[%s47 + $0x30] sm:$0xf]
    %v340 = vld [vmem:[%s47 + $0x34] sm:$0xf]
    %v341 = vld [vmem:[%s47 + $0x38] sm:$0xf]
    %v342 = vld [vmem:[%s47 + $0x3c] sm:$0xf]
    %v343 = vld [vmem:[%s47 + $0x40] sm:$0xf]
    %v344 = vld [vmem:[%s47 + $0x44] sm:$0xf]
    %v345 = vld [vmem:[%s47 + $0x48] sm:$0xf]
    %v346 = vld [vmem:[%s47 + $0x4c] sm:$0xf]
    %v347 = vld [vmem:[%s47 + $0x50] sm:$0xf]
    %v348 = vld [vmem:[%s47 + $0x54] sm:$0xf]
    %v349 = vld [vmem:[%s47 + $0x58] sm:$0xf]
    %v350 = vld [vmem:[%s47 + $0x5c] sm:$0xf]
    %v351 = vld [vmem:[%s47 + $0x60] sm:$0xf]
    %v352 = vld [vmem:[%s47 + $0x64] sm:$0xf]
    %v353 = vld [vmem:[%s47 + $0x68] sm:$0xf]
    %v354 = vld [vmem:[%s47 + $0x6c] sm:$0xf]
    %v355 = vld [vmem:[%s47 + $0x70] sm:$0xf]
    %v356 = vld [vmem:[%s47 + $0x74] sm:$0xf]
    %v357 = vld [vmem:[%s47 + $0x78] sm:$0xf]
    %v358 = vld [vmem:[%s47 + $0x7c] sm:$0xf]
    %v359 = vld [vmem:[%s47 + $0x80] sm:$0xf]
    %v360 = vld [vmem:[%s47 + $0x84] sm:$0xf]
    %v361 = vld [vmem:[%s47 + $0x88] sm:$0xf]
    %v362 = vld [vmem:[%s47 + $0x8c] sm:$0xf]
    %v363 = vld [vmem:[%s47 + $0x90] sm:$0xf]
    %v364 = vld [vmem:[%s47 + $0x94] sm:$0xf]
    %v365 = vld [vmem:[%s47 + $0x98] sm:$0xf]
    %v366 = vld [vmem:[%s47 + $0x9c] sm:$0xf]
    %v367 = vld [vmem:[%s47 + $0xa0] sm:$0xf]
    %v368 = vld [vmem:[%s47 + $0xa4] sm:$0xf]
    %v369 = vld [vmem:[%s47 + $0xa8] sm:$0xf]
    %v370 = vld [vmem:[%s47 + $0xac] sm:$0xf]
    %v371 = vld [vmem:[%s47 + $0xb0] sm:$0xf]
    %v372 = vld [vmem:[%s47 + $0xb4] sm:$0xf]
    %v373 = vld [vmem:[%s47 + $0xb8] sm:$0xf]
    %v374 = vld [vmem:[%s47 + $0xbc] sm:$0xf]
    %v375 = vld [vmem:[%s47 + $0xc0] sm:$0xf]
    %v376 = vld [vmem:[%s47 + $0xc4] sm:$0xf]
    %v377 = vld [vmem:[%s47 + $0xc8] sm:$0xf]
    %v378 = vld [vmem:[%s47 + $0xcc] sm:$0xf]
    %v379 = vld [vmem:[%s47 + $0xd0] sm:$0xf]
    %v380 = vld [vmem:[%s47 + $0xd4] sm:$0xf]
    %v381 = vld [vmem:[%s47 + $0xd8] sm:$0xf]
    %v382 = vld [vmem:[%s47 + $0xdc] sm:$0xf]
    %v383 = vld [vmem:[%s49] sm:$0x1]
    %v384 = vld [vmem:[%s51] sm:$0xf]
    %v385 = vld [vmem:[%s51 + $0x4] sm:$0xf]
    %v386 = vld [vmem:[%s51 + $0x8] sm:$0xf]
    %v387 = vld [vmem:[%s51 + $0xc] sm:$0xf]
    %v388 = vld [vmem:[%s53] sm:$0x1]
    %v389 = vld [vmem:[%s55] sm:$0xf]
    %v390 = vld [vmem:[%s55 + $0x4] sm:$0xf]
    %v391 = vld [vmem:[%s55 + $0x8] sm:$0xf]
    %v392 = vld [vmem:[%s55 + $0xc] sm:$0xf]
    %v393 = vld [vmem:[%s55 + $0x10] sm:$0xf]
    %v394 = vld [vmem:[%s55 + $0x14] sm:$0xf]
    %v395 = vld [vmem:[%s55 + $0x18] sm:$0xf]
    %v396 = vld [vmem:[%s55 + $0x1c] sm:$0xf]
    %v397 = vld [vmem:[%s55 + $0x20] sm:$0xf]
    %v398 = vld [vmem:[%s55 + $0x24] sm:$0xf]
    %v399 = vld [vmem:[%s55 + $0x28] sm:$0xf]
    %v400 = vld [vmem:[%s55 + $0x2c] sm:$0xf]
    %v401 = vld [vmem:[%s55 + $0x30] sm:$0xf]
    %v402 = vld [vmem:[%s55 + $0x34] sm:$0xf]
    %v403 = vld [vmem:[%s55 + $0x38] sm:$0xf]
    %v404 = vld [vmem:[%s55 + $0x3c] sm:$0xf]
    %v405 = vld [vmem:[%s55 + $0x40] sm:$0xf]
    %v406 = vld [vmem:[%s55 + $0x44] sm:$0xf]
    %v407 = vld [vmem:[%s55 + $0x48] sm:$0xf]
    %v408 = vld [vmem:[%s55 + $0x4c] sm:$0xf]
    %v409 = vld [vmem:[%s55 + $0x50] sm:$0xf]
    %v410 = vld [vmem:[%s55 + $0x54] sm:$0xf]
    %v411 = vld [vmem:[%s55 + $0x58] sm:$0xf]
    %v412 = vld [vmem:[%s55 + $0x5c] sm:$0xf]
    %v413 = vld [vmem:[%s55 + $0x60] sm:$0xf]
    %v414 = vld [vmem:[%s55 + $0x64] sm:$0xf]
    %v415 = vld [vmem:[%s55 + $0x68] sm:$0xf]
    %v416 = vld [vmem:[%s55 + $0x6c] sm:$0xf]
    %v417 = vld [vmem:[%s55 + $0x70] sm:$0xf]
    %v418 = vld [vmem:[%s55 + $0x74] sm:$0xf]
    %v419 = vld [vmem:[%s55 + $0x78] sm:$0xf]
    %v420 = vld [vmem:[%s55 + $0x7c] sm:$0xf]
    %v421 = vld [vmem:[%s55 + $0x80] sm:$0xf]
    %v422 = vld [vmem:[%s55 + $0x84] sm:$0xf]
    %v423 = vld [vmem:[%s55 + $0x88] sm:$0xf]
    %v424 = vld [vmem:[%s55 + $0x8c] sm:$0xf]
    %v425 = vld [vmem:[%s55 + $0x90] sm:$0xf]
    %v426 = vld [vmem:[%s55 + $0x94] sm:$0xf]
    %v427 = vld [vmem:[%s55 + $0x98] sm:$0xf]
    %v428 = vld [vmem:[%s55 + $0x9c] sm:$0xf]
    %v429 = vld [vmem:[%s55 + $0xa0] sm:$0xf]
    %v430 = vld [vmem:[%s55 + $0xa4] sm:$0xf]
    %v431 = vld [vmem:[%s55 + $0xa8] sm:$0xf]
    %v432 = vld [vmem:[%s55 + $0xac] sm:$0xf]
    %v433 = vld [vmem:[%s55 + $0xb0] sm:$0xf]
    %v434 = vld [vmem:[%s55 + $0xb4] sm:$0xf]
    %v435 = vld [vmem:[%s55 + $0xb8] sm:$0xf]
    %v436 = vld [vmem:[%s55 + $0xbc] sm:$0xf]
    %v437 = vld [vmem:[%s55 + $0xc0] sm:$0xf]
    %v438 = vld [vmem:[%s55 + $0xc4] sm:$0xf]
    %v439 = vld [vmem:[%s55 + $0xc8] sm:$0xf]
    %v440 = vld [vmem:[%s55 + $0xcc] sm:$0xf]
    %v441 = vld [vmem:[%s55 + $0xd0] sm:$0xf]
    %v442 = vld [vmem:[%s55 + $0xd4] sm:$0xf]
    %v443 = vld [vmem:[%s55 + $0xd8] sm:$0xf]
    %v444 = vld [vmem:[%s55 + $0xdc] sm:$0xf]
    %v445 = vld [vmem:[%s57] sm:$0x1]
    %v446 = vld [vmem:[%s59] sm:$0xf]
    %v447 = vld [vmem:[%s59 + $0x4] sm:$0xf]
    %v448 = vld [vmem:[%s59 + $0x8] sm:$0xf]
    %v449 = vld [vmem:[%s59 + $0xc] sm:$0xf]
    %v450 = vld [vmem:[%s59 + $0x10] sm:$0xf]
    %v451 = vld [vmem:[%s59 + $0x14] sm:$0xf]
    %v452 = vld [vmem:[%s59 + $0x18] sm:$0xf]
    %v453 = vld [vmem:[%s59 + $0x1c] sm:$0xf]
    %v454 = vld [vmem:[%s59 + $0x20] sm:$0xf]
    %v455 = vld [vmem:[%s59 + $0x24] sm:$0xf]
    %v456 = vld [vmem:[%s59 + $0x28] sm:$0xf]
    %v457 = vld [vmem:[%s59 + $0x2c] sm:$0xf]
    %v458 = vld [vmem:[%s59 + $0x30] sm:$0xf]
    %v459 = vld [vmem:[%s59 + $0x34] sm:$0xf]
    %v460 = vld [vmem:[%s59 + $0x38] sm:$0xf]
    %v461 = vld [vmem:[%s59 + $0x3c] sm:$0xf]
    %v462 = vld [vmem:[%s59 + $0x40] sm:$0xf]
    %v463 = vld [vmem:[%s59 + $0x44] sm:$0xf]
    %v464 = vld [vmem:[%s59 + $0x48] sm:$0xf]
    %v465 = vld [vmem:[%s59 + $0x4c] sm:$0xf]
    %v466 = vld [vmem:[%s59 + $0x50] sm:$0xf]
    %v467 = vld [vmem:[%s59 + $0x54] sm:$0xf]
    %v468 = vld [vmem:[%s59 + $0x58] sm:$0xf]
    %v469 = vld [vmem:[%s59 + $0x5c] sm:$0xf]
    %v470 = vld [vmem:[%s59 + $0x60] sm:$0xf]
    %v471 = vld [vmem:[%s59 + $0x64] sm:$0xf]
    %v472 = vld [vmem:[%s59 + $0x68] sm:$0xf]
    %v473 = vld [vmem:[%s59 + $0x6c] sm:$0xf]
    %v474 = vld [vmem:[%s59 + $0x70] sm:$0xf]
    %v475 = vld [vmem:[%s59 + $0x74] sm:$0xf]
    %v476 = vld [vmem:[%s59 + $0x78] sm:$0xf]
    %v477 = vld [vmem:[%s59 + $0x7c] sm:$0xf]
    %v478 = vld [vmem:[%s59 + $0x80] sm:$0xf]
    %v479 = vld [vmem:[%s59 + $0x84] sm:$0xf]
    %v480 = vld [vmem:[%s59 + $0x88] sm:$0xf]
    %v481 = vld [vmem:[%s59 + $0x8c] sm:$0xf]
    %v482 = vld [vmem:[%s59 + $0x90] sm:$0xf]
    %v483 = vld [vmem:[%s59 + $0x94] sm:$0xf]
    %v484 = vld [vmem:[%s59 + $0x98] sm:$0xf]
    %v485 = vld [vmem:[%s59 + $0x9c] sm:$0xf]
    %v486 = vld [vmem:[%s59 + $0xa0] sm:$0xf]
    %v487 = vld [vmem:[%s59 + $0xa4] sm:$0xf]
    %v488 = vld [vmem:[%s59 + $0xa8] sm:$0xf]
    %v489 = vld [vmem:[%s59 + $0xac] sm:$0xf]
    %v490 = vld [vmem:[%s59 + $0xb0] sm:$0xf]
    %v491 = vld [vmem:[%s59 + $0xb4] sm:$0xf]
    %v492 = vld [vmem:[%s59 + $0xb8] sm:$0xf]
    %v493 = vld [vmem:[%s59 + $0xbc] sm:$0xf]
    %v494 = vld [vmem:[%s59 + $0xc0] sm:$0xf]
    %v495 = vld [vmem:[%s59 + $0xc4] sm:$0xf]
    %v496 = vld [vmem:[%s59 + $0xc8] sm:$0xf]
    %v497 = vld [vmem:[%s59 + $0xcc] sm:$0xf]
    %v498 = vld [vmem:[%s59 + $0xd0] sm:$0xf]
    %v499 = vld [vmem:[%s59 + $0xd4] sm:$0xf]
    %v500 = vld [vmem:[%s59 + $0xd8] sm:$0xf]
    %v501 = vld [vmem:[%s59 + $0xdc] sm:$0xf]
    %v502 = vld [vmem:[%s61] sm:$0x1]
    %v503 = vld [vmem:[%s63] sm:$0xf]
    %v504 = vld [vmem:[%s63 + $0x4] sm:$0xf]
    %v505 = vld [vmem:[%s63 + $0x8] sm:$0xf]
    %v506 = vld [vmem:[%s63 + $0xc] sm:$0xf]
    %v507 = vld [vmem:[%s63 + $0x10] sm:$0xf]
    %v508 = vld [vmem:[%s63 + $0x14] sm:$0xf]
    %v509 = vld [vmem:[%s63 + $0x18] sm:$0xf]
    %v510 = vld [vmem:[%s63 + $0x1c] sm:$0xf]
    %v511 = vld [vmem:[%s65] sm:$0x1]
    %vm514 = vcmask 1042432
    %v515 = vrot.slane %v140, 5
    %v516 = vrot.slane %v141, 5
    %v517 = vsel %vm514, %v515, %v516
    %v521 = vsel %vm514, 0.0, %v515
    %v522 = vsel %vm514, %v516, 0.0
    %vm525 = vcmask 1046528
    %v526 = vrot.slane %v521, 1
    %v527 = vrot.slane %v517, 1
    %v528 = vsel %vm525, %v526, %v527
    %v529 = vrot.slane %v522, 1
    %v530 = vsel %vm525, %v527, %v529
    %531 = vrot.lane.b32.xlu0 %v528, 1
    %v532 = vpop.permute.xlu0 %531
    %533 = vrot.lane.b32.xlu0 %v530, 1
    %v534 = vpop.permute.xlu0 %533
    %vm537 = vcmask 1045504
    %v538 = vrot.slane %v521, 2
    %v539 = vrot.slane %v517, 2
    %v540 = vsel %vm537, %v538, %v539
    %v541 = vrot.slane %v522, 2
    %v542 = vsel %vm537, %v539, %v541
    %543 = vrot.lane.b32.xlu0 %v540, 2
    %v544 = vpop.permute.xlu0 %543
    %545 = vrot.lane.b32.xlu0 %v542, 2
    %v546 = vpop.permute.xlu0 %545
    %vm549 = vcmask 1044480
    %v550 = vrot.slane %v521, 3
    %v551 = vrot.slane %v517, 3
    %v552 = vsel %vm549, %v550, %v551
    %v553 = vrot.slane %v522, 3
    %v554 = vsel %vm549, %v551, %v553
    %555 = vrot.lane.b32.xlu0 %v552, 3
    %v556 = vpop.permute.xlu0 %555
    %557 = vrot.lane.b32.xlu0 %v554, 3
    %v558 = vpop.permute.xlu0 %557
    %vm561 = vcmask 1043456
    %v562 = vrot.slane %v521, 4
    %v563 = vrot.slane %v517, 4
    %v564 = vsel %vm561, %v562, %v563
    %v565 = vrot.slane %v522, 4
    %v566 = vsel %vm561, %v563, %v565
    %567 = vrot.lane.b32.xlu0 %v564, 4
    %v568 = vpop.permute.xlu0 %567
    %569 = vrot.lane.b32.xlu0 %v566, 4
    %v570 = vpop.permute.xlu0 %569
    %v573 = vrot.slane %v521, 5
    %v574 = vrot.slane %v517, 5
    %v575 = vsel %vm514, %v573, %v574
    %v576 = vrot.slane %v522, 5
    %v577 = vsel %vm514, %v574, %v576
    %578 = vrot.lane.b32.xlu0 %v575, 5
    %v579 = vpop.permute.xlu0 %578
    %580 = vrot.lane.b32.xlu0 %v577, 5
    %v581 = vpop.permute.xlu0 %580
    %vm584 = vcmask 1041408
    %v585 = vrot.slane %v521, 6
    %v586 = vrot.slane %v517, 6
    %v587 = vsel %vm584, %v585, %v586
    %v588 = vrot.slane %v522, 6
    %v589 = vsel %vm584, %v586, %v588
    %590 = vrot.lane.b32.xlu0 %v587, 6
    %v591 = vpop.permute.xlu0 %590
    %592 = vrot.lane.b32.xlu0 %v589, 6
    %v593 = vpop.permute.xlu0 %592
    %vm596 = vcmask 7168
    %v597 = vsel %vm596, %v521, %v532
    %v598 = vsel %vm596, %v517, %v534
    %vm599 = vcmask 15360
    %v600 = vsel %vm599, %v597, %v544
    %v601 = vsel %vm599, %v598, %v546
    %vm602 = vcmask 23552
    %v603 = vsel %vm602, %v600, %v556
    %v604 = vsel %vm602, %v601, %v558
    %vm605 = vcmask 31744
    %v606 = vsel %vm605, %v603, %v568
    %v607 = vsel %vm605, %v604, %v570
    %vm608 = vcmask 39936
    %v609 = vsel %vm608, %v606, %v579
    %v610 = vsel %vm608, %v607, %v581
    %vm611 = vcmask 48128
    %v612 = vsel %vm611, %v609, %v591
    %v613 = vsel %vm611, %v610, %v593
    %v616 = vrot.slane %v142, 5
    %v617 = vrot.slane %v143, 5
    %v618 = vsel %vm514, %v616, %v617
    %v622 = vsel %vm514, 0.0, %v616
    %v623 = vsel %vm514, %v617, 0.0
    %v626 = vrot.slane %v622, 1
    %v627 = vrot.slane %v618, 1
    %v628 = vsel %vm525, %v626, %v627
    %v629 = vrot.slane %v623, 1
    %v630 = vsel %vm525, %v627, %v629
    %631 = vrot.lane.b32.xlu0 %v628, 1
    %v632 = vpop.permute.xlu0 %631
    %633 = vrot.lane.b32.xlu0 %v630, 1
    %v634 = vpop.permute.xlu0 %633
    %v637 = vrot.slane %v622, 2
    %v638 = vrot.slane %v618, 2
    %v639 = vsel %vm537, %v637, %v638
    %v640 = vrot.slane %v623, 2
    %v641 = vsel %vm537, %v638, %v640
    %642 = vrot.lane.b32.xlu0 %v639, 2
    %v643 = vpop.permute.xlu0 %642
    %644 = vrot.lane.b32.xlu0 %v641, 2
    %v645 = vpop.permute.xlu0 %644
    %v648 = vrot.slane %v622, 3
    %v649 = vrot.slane %v618, 3
    %v650 = vsel %vm549, %v648, %v649
    %v651 = vrot.slane %v623, 3
    %v652 = vsel %vm549, %v649, %v651
    %653 = vrot.lane.b32.xlu0 %v650, 3
    %v654 = vpop.permute.xlu0 %653
    %655 = vrot.lane.b32.xlu0 %v652, 3
    %v656 = vpop.permute.xlu0 %655
    %v659 = vrot.slane %v622, 4
    %v660 = vrot.slane %v618, 4
    %v661 = vsel %vm561, %v659, %v660
    %v662 = vrot.slane %v623, 4
    %v663 = vsel %vm561, %v660, %v662
    %664 = vrot.lane.b32.xlu0 %v661, 4
    %v665 = vpop.permute.xlu0 %664
    %666 = vrot.lane.b32.xlu0 %v663, 4
    %v667 = vpop.permute.xlu0 %666
    %v670 = vrot.slane %v622, 5
    %v671 = vrot.slane %v618, 5
    %v672 = vsel %vm514, %v670, %v671
    %v673 = vrot.slane %v623, 5
    %v674 = vsel %vm514, %v671, %v673
    %675 = vrot.lane.b32.xlu0 %v672, 5
    %v676 = vpop.permute.xlu0 %675
    %677 = vrot.lane.b32.xlu0 %v674, 5
    %v678 = vpop.permute.xlu0 %677
    %v681 = vrot.slane %v622, 6
    %v682 = vrot.slane %v618, 6
    %v683 = vsel %vm584, %v681, %v682
    %v684 = vrot.slane %v623, 6
    %v685 = vsel %vm584, %v682, %v684
    %686 = vrot.lane.b32.xlu0 %v683, 6
    %v687 = vpop.permute.xlu0 %686
    %688 = vrot.lane.b32.xlu0 %v685, 6
    %v689 = vpop.permute.xlu0 %688
    %v692 = vsel %vm596, %v622, %v632
    %v693 = vsel %vm596, %v618, %v634
    %v694 = vsel %vm599, %v692, %v643
    %v695 = vsel %vm599, %v693, %v645
    %v696 = vsel %vm602, %v694, %v654
    %v697 = vsel %vm602, %v695, %v656
    %v698 = vsel %vm605, %v696, %v665
    %v699 = vsel %vm605, %v697, %v667
    %v700 = vsel %vm608, %v698, %v676
    %v701 = vsel %vm608, %v699, %v678
    %v702 = vsel %vm611, %v700, %v687
    %v703 = vsel %vm611, %v701, %v689
    %v704 = vpack.c.bf16 %v613, %v612
    %v705 = vpack.c.bf16 %v703, %v702
    %v707 = vperm.slane %v145, 0
    %vm709 = vcmask 56320
    %v711 = vsel %vm709, %v704, 0
    %v714 = vsel %vm709, %v705, 0
    %v716 = vsel %vm514, 4294967295, 65535
    %v717 = vsel %vm561, %v716, 0
    %v719 = vand.u32 %v144, %v717
    %721 = vmatpush.bf16.msra.mxu0 0
    %722 = vmatpush.bf16.msra.mxu0 0
    %723 = vmatpush.bf16.msra.mxu0 0
    %724 = vmatpush.bf16.msra.mxu0 0
    %725 = vmatpush.bf16.msra.mxu0 0
    %726 = vmatpush.bf16.msra.mxu0 0
    %727 = vmatpush.bf16.msra.mxu0 0
    %728 = vmatpush.bf16.msra.mxu0 %v719
    %729 = vmatmul.bf16.gmra.mxu0 %v711
    %v730 = vpop.f32.mrf.mxu0
    %v731 = vadd.f32 %v707, %v730
    %v732 = vpop.f32.mrf.mxu0
    %v733 = vadd.f32 %v707, %v732
    %734 = vmatmul.bf16.gmra.mxu0 %v714
    %v735 = vpop.f32.mrf.mxu0
    %v736 = vadd.f32 %v707, %v735
    %v737 = vpop.f32.mrf.mxu0
    %v738 = vadd.f32 %v707, %v737
    %739 = vdwg.mxu0
    %v740 = vmax.f32 %v731, 0.0
    %v741 = vmax.f32 %v733, 0.0
    %v742 = vmax.f32 %v736, 0.0
    %v743 = vmax.f32 %v738, 0.0
    %v744 = vpack.c.bf16 %v141, %v140
    %v745 = vpack.c.bf16 %v143, %v142
    %v747 = vperm.slane %v162, 0
    %v750 = vsel %vm596, %v744, 0
    %v753 = vsel %vm596, %v745, 0
    %vm755 = vcmask 1040384
    %v756 = vsel 0, 4294967295, 65535
    %v757 = vsel %vm755, %v756, 0
    %v759 = vand.u32 %v161, %v757
    %761 = vmatpush.bf16.msra.mxu0 0
    %762 = vmatpush.bf16.msra.mxu0 0
    %763 = vmatpush.bf16.msra.mxu0 0
    %764 = vmatpush.bf16.msra.mxu0 0
    %765 = vmatpush.bf16.msra.mxu0 0
    %766 = vmatpush.bf16.msra.mxu0 0
    %767 = vmatpush.bf16.msra.mxu0 0
    %768 = vmatpush.bf16.msra.mxu0 %v759
    %769 = vmatmul.bf16.gmra.mxu0 %v750
    %v770 = vpop.f32.mrf.mxu0
    %v771 = vadd.f32 %v747, %v770
    %v772 = vpop.f32.mrf.mxu0
    %v773 = vadd.f32 %v747, %v772
    %774 = vmatmul.bf16.gmra.mxu0 %v753
    %v775 = vpop.f32.mrf.mxu0
    %v776 = vadd.f32 %v747, %v775
    %v777 = vpop.f32.mrf.mxu0
    %v778 = vadd.f32 %v747, %v777
    %779 = vdwg.mxu0
    %v782 = vrot.slane %v740, 5
    %v783 = vrot.slane %v741, 5
    %v784 = vsel %vm514, %v782, %v783
    %v788 = vsel %vm514, 0.0, %v782
    %v789 = vsel %vm514, %v783, 0.0
    %v792 = vrot.slane %v788, 1
    %v793 = vrot.slane %v784, 1
    %v794 = vsel %vm525, %v792, %v793
    %v795 = vrot.slane %v789, 1
    %v796 = vsel %vm525, %v793, %v795
    %797 = vrot.lane.b32.xlu0 %v794, 16
    %v798 = vpop.permute.xlu0 %797
    %799 = vrot.lane.b32.xlu0 %v796, 16
    %v800 = vpop.permute.xlu0 %799
    %v803 = vrot.slane %v788, 2
    %v804 = vrot.slane %v784, 2
    %v805 = vsel %vm537, %v803, %v804
    %v806 = vrot.slane %v789, 2
    %v807 = vsel %vm537, %v804, %v806
    %808 = vrot.lane.b32.xlu0 %v805, 32
    %v809 = vpop.permute.xlu0 %808
    %810 = vrot.lane.b32.xlu0 %v807, 32
    %v811 = vpop.permute.xlu0 %810
    %v814 = vrot.slane %v788, 3
    %v815 = vrot.slane %v784, 3
    %v816 = vsel %vm549, %v814, %v815
    %v817 = vrot.slane %v789, 3
    %v818 = vsel %vm549, %v815, %v817
    %819 = vrot.lane.b32.xlu0 %v816, 48
    %v820 = vpop.permute.xlu0 %819
    %821 = vrot.lane.b32.xlu0 %v818, 48
    %v822 = vpop.permute.xlu0 %821
    %v825 = vrot.slane %v788, 4
    %v826 = vrot.slane %v784, 4
    %v827 = vsel %vm561, %v825, %v826
    %v828 = vrot.slane %v789, 4
    %v829 = vsel %vm561, %v826, %v828
    %830 = vrot.lane.b32.xlu0 %v827, 64
    %v831 = vpop.permute.xlu0 %830
    %832 = vrot.lane.b32.xlu0 %v829, 64
    %v833 = vpop.permute.xlu0 %832
    %v836 = vrot.slane %v788, 5
    %v837 = vrot.slane %v784, 5
    %v838 = vsel %vm514, %v836, %v837
    %v839 = vrot.slane %v789, 5
    %v840 = vsel %vm514, %v837, %v839
    %841 = vrot.lane.b32.xlu0 %v838, 80
    %v842 = vpop.permute.xlu0 %841
    %843 = vrot.lane.b32.xlu0 %v840, 80
    %v844 = vpop.permute.xlu0 %843
    %v847 = vrot.slane %v788, 6
    %v848 = vrot.slane %v784, 6
    %v849 = vsel %vm584, %v847, %v848
    %v850 = vrot.slane %v789, 6
    %v851 = vsel %vm584, %v848, %v850
    %852 = vrot.lane.b32.xlu0 %v849, 96
    %v853 = vpop.permute.xlu0 %852
    %854 = vrot.lane.b32.xlu0 %v851, 96
    %v855 = vpop.permute.xlu0 %854
    %vm858 = vcmask 130048
    %v859 = vsel %vm858, %v788, %v798
    %v860 = vsel %vm858, %v784, %v800
    %vm861 = vcmask 261120
    %v862 = vsel %vm861, %v859, %v809
    %v863 = vsel %vm861, %v860, %v811
    %vm864 = vcmask 392192
    %v865 = vsel %vm864, %v862, %v820
    %v866 = vsel %vm864, %v863, %v822
    %vm867 = vcmask 523264
    %v868 = vsel %vm867, %v865, %v831
    %v869 = vsel %vm867, %v866, %v833
    %vm870 = vcmask 654336
    %v871 = vsel %vm870, %v868, %v842
    %v872 = vsel %vm870, %v869, %v844
    %vm873 = vcmask 785408
    %v874 = vsel %vm873, %v871, %v853
    %v875 = vsel %vm873, %v872, %v855
    %v878 = vrot.slane %v742, 5
    %v879 = vrot.slane %v743, 5
    %v880 = vsel %vm514, %v878, %v879
    %v884 = vsel %vm514, 0.0, %v878
    %v885 = vsel %vm514, %v879, 0.0
    %v888 = vrot.slane %v884, 1
    %v889 = vrot.slane %v880, 1
    %v890 = vsel %vm525, %v888, %v889
    %v891 = vrot.slane %v885, 1
    %v892 = vsel %vm525, %v889, %v891
    %893 = vrot.lane.b32.xlu0 %v890, 16
    %v894 = vpop.permute.xlu0 %893
    %895 = vrot.lane.b32.xlu0 %v892, 16
    %v896 = vpop.permute.xlu0 %895
    %v899 = vrot.slane %v884, 2
    %v900 = vrot.slane %v880, 2
    %v901 = vsel %vm537, %v899, %v900
    %v902 = vrot.slane %v885, 2
    %v903 = vsel %vm537, %v900, %v902
    %904 = vrot.lane.b32.xlu0 %v901, 32
    %v905 = vpop.permute.xlu0 %904
    %906 = vrot.lane.b32.xlu0 %v903, 32
    %v907 = vpop.permute.xlu0 %906
    %v910 = vrot.slane %v884, 3
    %v911 = vrot.slane %v880, 3
    %v912 = vsel %vm549, %v910, %v911
    %v913 = vrot.slane %v885, 3
    %v914 = vsel %vm549, %v911, %v913
    %915 = vrot.lane.b32.xlu0 %v912, 48
    %v916 = vpop.permute.xlu0 %915
    %917 = vrot.lane.b32.xlu0 %v914, 48
    %v918 = vpop.permute.xlu0 %917
    %v921 = vrot.slane %v884, 4
    %v922 = vrot.slane %v880, 4
    %v923 = vsel %vm561, %v921, %v922
    %v924 = vrot.slane %v885, 4
    %v925 = vsel %vm561, %v922, %v924
    %926 = vrot.lane.b32.xlu0 %v923, 64
    %v927 = vpop.permute.xlu0 %926
    %928 = vrot.lane.b32.xlu0 %v925, 64
    %v929 = vpop.permute.xlu0 %928
    %v932 = vrot.slane %v884, 5
    %v933 = vrot.slane %v880, 5
    %v934 = vsel %vm514, %v932, %v933
    %v935 = vrot.slane %v885, 5
    %v936 = vsel %vm514, %v933, %v935
    %937 = vrot.lane.b32.xlu0 %v934, 80
    %v938 = vpop.permute.xlu0 %937
    %939 = vrot.lane.b32.xlu0 %v936, 80
    %v940 = vpop.permute.xlu0 %939
    %v943 = vrot.slane %v884, 6
    %v944 = vrot.slane %v880, 6
    %v945 = vsel %vm584, %v943, %v944
    %v946 = vrot.slane %v885, 6
    %v947 = vsel %vm584, %v944, %v946
    %948 = vrot.lane.b32.xlu0 %v945, 96
    %v949 = vpop.permute.xlu0 %948
    %950 = vrot.lane.b32.xlu0 %v947, 96
    %v951 = vpop.permute.xlu0 %950
    %v954 = vsel %vm858, %v884, %v894
    %v955 = vsel %vm858, %v880, %v896
    %v956 = vsel %vm861, %v954, %v905
    %v957 = vsel %vm861, %v955, %v907
    %v958 = vsel %vm864, %v956, %v916
    %v959 = vsel %vm864, %v957, %v918
    %v960 = vsel %vm867, %v958, %v927
    %v961 = vsel %vm867, %v959, %v929
    %v962 = vsel %vm870, %v960, %v938
    %v963 = vsel %vm870, %v961, %v940
    %v964 = vsel %vm873, %v962, %v949
    %v965 = vsel %vm873, %v963, %v951
    %v966 = vpack.c.bf16 %v875, %v874
    %v967 = vpack.c.bf16 %v965, %v964
    %v969 = vperm.slane %v160, 0
    %v985 = vunpack.c.l.b16 %v146
    %v986 = vunpack.c.l.b16 %v147
    %v987 = vunpack.c.l.b16 %v148
    %v988 = vunpack.c.l.b16 %v149
    %v989 = vunpack.c.l.b16 %v150
    %v990 = vunpack.c.l.b16 %v151
    %v991 = vunpack.c.l.b16 %v152
    %v992 = vunpack.c.l.b16 %v153
    %v993 = vunpack.c.l.b16 %v154
    %v994 = vunpack.c.l.b16 %v155
    %v995 = vunpack.c.l.b16 %v156
    %v996 = vunpack.c.l.b16 %v157
    %v997 = vunpack.c.l.b16 %v158
    %v998 = vunpack.c.l.b16 %v159
    %v999 = vpack.c.b16 %v986, %v985
    %v1000 = vpack.c.b16 %v988, %v987
    %v1001 = vpack.c.b16 %v990, %v989
    %v1002 = vpack.c.b16 %v992, %v991
    %v1003 = vpack.c.b16 %v994, %v993
    %v1004 = vpack.c.b16 %v996, %v995
    %v1005 = vpack.c.b16 %v998, %v997
    %vm1013 = vcmask 916480
    %v1015 = vsel %vm1013, %v966, 0
    %v1018 = vsel %vm1013, %v967, 0
    %1020 = vmatpush.bf16.msra.mxu0 0
    %1021 = vmatpush.bf16.msra.mxu0 %v1005
    %1022 = vmatpush.bf16.msra.mxu0 %v1004
    %1023 = vmatpush.bf16.msra.mxu0 %v1003
    %1024 = vmatpush.bf16.msra.mxu0 %v1002
    %1025 = vmatpush.bf16.msra.mxu0 %v1001
    %1026 = vmatpush.bf16.msra.mxu0 %v1000
    %1027 = vmatpush.bf16.msra.mxu0 %v999
    %1028 = vmatmul.bf16.gmra.mxu0 %v1015
    %v1029 = vpop.f32.mrf.mxu0
    %v1030 = vadd.f32 %v969, %v1029
    %v1031 = vpop.f32.mrf.mxu0
    %v1032 = vadd.f32 %v969, %v1031
    %1033 = vmatmul.bf16.gmra.mxu0 %v1018
    %v1034 = vpop.f32.mrf.mxu0
    %v1035 = vadd.f32 %v969, %v1034
    %v1036 = vpop.f32.mrf.mxu0
    %v1037 = vadd.f32 %v969, %v1036
    %1038 = vdwg.mxu0
    %v1039 = vadd.f32 %v1030, %v771
    %v1040 = vadd.f32 %v1032, %v773
    %v1041 = vadd.f32 %v1035, %v776
    %v1042 = vadd.f32 %v1037, %v778
    %v1043 = vmax.f32 %v1039, 0.0
    %v1044 = vmax.f32 %v1040, 0.0
    %v1045 = vmax.f32 %v1041, 0.0
    %v1046 = vmax.f32 %v1042, 0.0
    %v1049 = vrot.slane %v1043, 5
    %v1050 = vrot.slane %v1044, 5
    %v1051 = vsel %vm514, %v1049, %v1050
    %v1055 = vsel %vm514, 0.0, %v1049
    %v1056 = vsel %vm514, %v1050, 0.0
    %v1059 = vrot.slane %v1055, 1
    %v1060 = vrot.slane %v1051, 1
    %v1061 = vsel %vm525, %v1059, %v1060
    %v1062 = vrot.slane %v1056, 1
    %v1063 = vsel %vm525, %v1060, %v1062
    %1064 = vrot.lane.b32.xlu0 %v1061, 16
    %v1065 = vpop.permute.xlu0 %1064
    %1066 = vrot.lane.b32.xlu0 %v1063, 16
    %v1067 = vpop.permute.xlu0 %1066
    %v1070 = vrot.slane %v1055, 2
    %v1071 = vrot.slane %v1051, 2
    %v1072 = vsel %vm537, %v1070, %v1071
    %v1073 = vrot.slane %v1056, 2
    %v1074 = vsel %vm537, %v1071, %v1073
    %1075 = vrot.lane.b32.xlu0 %v1072, 32
    %v1076 = vpop.permute.xlu0 %1075
    %1077 = vrot.lane.b32.xlu0 %v1074, 32
    %v1078 = vpop.permute.xlu0 %1077
    %v1081 = vrot.slane %v1055, 3
    %v1082 = vrot.slane %v1051, 3
    %v1083 = vsel %vm549, %v1081, %v1082
    %v1084 = vrot.slane %v1056, 3
    %v1085 = vsel %vm549, %v1082, %v1084
    %1086 = vrot.lane.b32.xlu0 %v1083, 48
    %v1087 = vpop.permute.xlu0 %1086
    %1088 = vrot.lane.b32.xlu0 %v1085, 48
    %v1089 = vpop.permute.xlu0 %1088
    %v1092 = vrot.slane %v1055, 4
    %v1093 = vrot.slane %v1051, 4
    %v1094 = vsel %vm561, %v1092, %v1093
    %v1095 = vrot.slane %v1056, 4
    %v1096 = vsel %vm561, %v1093, %v1095
    %1097 = vrot.lane.b32.xlu0 %v1094, 64
    %v1098 = vpop.permute.xlu0 %1097
    %1099 = vrot.lane.b32.xlu0 %v1096, 64
    %v1100 = vpop.permute.xlu0 %1099
    %v1103 = vrot.slane %v1055, 5
    %v1104 = vrot.slane %v1051, 5
    %v1105 = vsel %vm514, %v1103, %v1104
    %v1106 = vrot.slane %v1056, 5
    %v1107 = vsel %vm514, %v1104, %v1106
    %1108 = vrot.lane.b32.xlu0 %v1105, 80
    %v1109 = vpop.permute.xlu0 %1108
    %1110 = vrot.lane.b32.xlu0 %v1107, 80
    %v1111 = vpop.permute.xlu0 %1110
    %v1114 = vrot.slane %v1055, 6
    %v1115 = vrot.slane %v1051, 6
    %v1116 = vsel %vm584, %v1114, %v1115
    %v1117 = vrot.slane %v1056, 6
    %v1118 = vsel %vm584, %v1115, %v1117
    %1119 = vrot.lane.b32.xlu0 %v1116, 96
    %v1120 = vpop.permute.xlu0 %1119
    %1121 = vrot.lane.b32.xlu0 %v1118, 96
    %v1122 = vpop.permute.xlu0 %1121
    %v1125 = vsel %vm858, %v1055, %v1065
    %v1126 = vsel %vm858, %v1051, %v1067
    %v1127 = vsel %vm861, %v1125, %v1076
    %v1128 = vsel %vm861, %v1126, %v1078
    %v1129 = vsel %vm864, %v1127, %v1087
    %v1130 = vsel %vm864, %v1128, %v1089
    %v1131 = vsel %vm867, %v1129, %v1098
    %v1132 = vsel %vm867, %v1130, %v1100
    %v1133 = vsel %vm870, %v1131, %v1109
    %v1134 = vsel %vm870, %v1132, %v1111
    %v1135 = vsel %vm873, %v1133, %v1120
    %v1136 = vsel %vm873, %v1134, %v1122
    %v1139 = vrot.slane %v1045, 5
    %v1140 = vrot.slane %v1046, 5
    %v1141 = vsel %vm514, %v1139, %v1140
    %v1145 = vsel %vm514, 0.0, %v1139
    %v1146 = vsel %vm514, %v1140, 0.0
    %v1149 = vrot.slane %v1145, 1
    %v1150 = vrot.slane %v1141, 1
    %v1151 = vsel %vm525, %v1149, %v1150
    %v1152 = vrot.slane %v1146, 1
    %v1153 = vsel %vm525, %v1150, %v1152
    %1154 = vrot.lane.b32.xlu0 %v1151, 16
    %v1155 = vpop.permute.xlu0 %1154
    %1156 = vrot.lane.b32.xlu0 %v1153, 16
    %v1157 = vpop.permute.xlu0 %1156
    %v1160 = vrot.slane %v1145, 2
    %v1161 = vrot.slane %v1141, 2
    %v1162 = vsel %vm537, %v1160, %v1161
    %v1163 = vrot.slane %v1146, 2
    %v1164 = vsel %vm537, %v1161, %v1163
    %1165 = vrot.lane.b32.xlu0 %v1162, 32
    %v1166 = vpop.permute.xlu0 %1165
    %1167 = vrot.lane.b32.xlu0 %v1164, 32
    %v1168 = vpop.permute.xlu0 %1167
    %v1171 = vrot.slane %v1145, 3
    %v1172 = vrot.slane %v1141, 3
    %v1173 = vsel %vm549, %v1171, %v1172
    %v1174 = vrot.slane %v1146, 3
    %v1175 = vsel %vm549, %v1172, %v1174
    %1176 = vrot.lane.b32.xlu0 %v1173, 48
    %v1177 = vpop.permute.xlu0 %1176
    %1178 = vrot.lane.b32.xlu0 %v1175, 48
    %v1179 = vpop.permute.xlu0 %1178
    %v1182 = vrot.slane %v1145, 4
    %v1183 = vrot.slane %v1141, 4
    %v1184 = vsel %vm561, %v1182, %v1183
    %v1185 = vrot.slane %v1146, 4
    %v1186 = vsel %vm561, %v1183, %v1185
    %1187 = vrot.lane.b32.xlu0 %v1184, 64
    %v1188 = vpop.permute.xlu0 %1187
    %1189 = vrot.lane.b32.xlu0 %v1186, 64
    %v1190 = vpop.permute.xlu0 %1189
    %v1193 = vrot.slane %v1145, 5
    %v1194 = vrot.slane %v1141, 5
    %v1195 = vsel %vm514, %v1193, %v1194
    %v1196 = vrot.slane %v1146, 5
    %v1197 = vsel %vm514, %v1194, %v1196
    %1198 = vrot.lane.b32.xlu0 %v1195, 80
    %v1199 = vpop.permute.xlu0 %1198
    %1200 = vrot.lane.b32.xlu0 %v1197, 80
    %v1201 = vpop.permute.xlu0 %1200
    %v1204 = vrot.slane %v1145, 6
    %v1205 = vrot.slane %v1141, 6
    %v1206 = vsel %vm584, %v1204, %v1205
    %v1207 = vrot.slane %v1146, 6
    %v1208 = vsel %vm584, %v1205, %v1207
    %1209 = vrot.lane.b32.xlu0 %v1206, 96
    %v1210 = vpop.permute.xlu0 %1209
    %1211 = vrot.lane.b32.xlu0 %v1208, 96
    %v1212 = vpop.permute.xlu0 %1211
    %v1215 = vsel %vm858, %v1145, %v1155
    %v1216 = vsel %vm858, %v1141, %v1157
    %v1217 = vsel %vm861, %v1215, %v1166
    %v1218 = vsel %vm861, %v1216, %v1168
    %v1219 = vsel %vm864, %v1217, %v1177
    %v1220 = vsel %vm864, %v1218, %v1179
    %v1221 = vsel %vm867, %v1219, %v1188
    %v1222 = vsel %vm867, %v1220, %v1190
    %v1223 = vsel %vm870, %v1221, %v1199
    %v1224 = vsel %vm870, %v1222, %v1201
    %v1225 = vsel %vm873, %v1223, %v1210
    %v1226 = vsel %vm873, %v1224, %v1212
    %v1227 = vpack.c.bf16 %v1136, %v1135
    %v1228 = vpack.c.bf16 %v1226, %v1225
    %v1230 = vperm.slane %v177, 0
    %v1246 = vunpack.c.l.b16 %v163
    %v1247 = vunpack.c.l.b16 %v164
    %v1248 = vunpack.c.l.b16 %v165
    %v1249 = vunpack.c.l.b16 %v166
    %v1250 = vunpack.c.l.b16 %v167
    %v1251 = vunpack.c.l.b16 %v168
    %v1252 = vunpack.c.l.b16 %v169
    %v1253 = vunpack.c.l.b16 %v170
    %v1254 = vunpack.c.l.b16 %v171
    %v1255 = vunpack.c.l.b16 %v172
    %v1256 = vunpack.c.l.b16 %v173
    %v1257 = vunpack.c.l.b16 %v174
    %v1258 = vunpack.c.l.b16 %v175
    %v1259 = vunpack.c.l.b16 %v176
    %v1260 = vpack.c.b16 %v1247, %v1246
    %v1261 = vpack.c.b16 %v1249, %v1248
    %v1262 = vpack.c.b16 %v1251, %v1250
    %v1263 = vpack.c.b16 %v1253, %v1252
    %v1264 = vpack.c.b16 %v1255, %v1254
    %v1265 = vpack.c.b16 %v1257, %v1256
    %v1266 = vpack.c.b16 %v1259, %v1258
    %v1275 = vsel %vm1013, %v1227, 0
    %v1278 = vsel %vm1013, %v1228, 0
    %1280 = vmatpush.bf16.msra.mxu0 0
    %1281 = vmatpush.bf16.msra.mxu0 %v1266
    %1282 = vmatpush.bf16.msra.mxu0 %v1265
    %1283 = vmatpush.bf16.msra.mxu0 %v1264
    %1284 = vmatpush.bf16.msra.mxu0 %v1263
    %1285 = vmatpush.bf16.msra.mxu0 %v1262
    %1286 = vmatpush.bf16.msra.mxu0 %v1261
    %1287 = vmatpush.bf16.msra.mxu0 %v1260
    %1288 = vmatmul.bf16.gmra.mxu0 %v1275
    %v1289 = vpop.f32.mrf.mxu0
    %v1290 = vadd.f32 %v1230, %v1289
    %v1291 = vpop.f32.mrf.mxu0
    %v1292 = vadd.f32 %v1230, %v1291
    %1293 = vmatmul.bf16.gmra.mxu0 %v1278
    %v1294 = vpop.f32.mrf.mxu0
    %v1295 = vadd.f32 %v1230, %v1294
    %v1296 = vpop.f32.mrf.mxu0
    %v1297 = vadd.f32 %v1230, %v1296
    %1298 = vdwg.mxu0
    %v1299 = vmax.f32 %v1290, 0.0
    %v1300 = vmax.f32 %v1292, 0.0
    %v1301 = vmax.f32 %v1295, 0.0
    %v1302 = vmax.f32 %v1297, 0.0
    %v1305 = vrot.slane %v1299, 5
    %v1306 = vrot.slane %v1300, 5
    %v1307 = vsel %vm514, %v1305, %v1306
    %v1311 = vsel %vm514, 0.0, %v1305
    %v1312 = vsel %vm514, %v1306, 0.0
    %v1315 = vrot.slane %v1311, 1
    %v1316 = vrot.slane %v1307, 1
    %v1317 = vsel %vm525, %v1315, %v1316
    %v1318 = vrot.slane %v1312, 1
    %v1319 = vsel %vm525, %v1316, %v1318
    %1320 = vrot.lane.b32.xlu0 %v1317, 16
    %v1321 = vpop.permute.xlu0 %1320
    %1322 = vrot.lane.b32.xlu0 %v1319, 16
    %v1323 = vpop.permute.xlu0 %1322
    %v1326 = vrot.slane %v1311, 2
    %v1327 = vrot.slane %v1307, 2
    %v1328 = vsel %vm537, %v1326, %v1327
    %v1329 = vrot.slane %v1312, 2
    %v1330 = vsel %vm537, %v1327, %v1329
    %1331 = vrot.lane.b32.xlu0 %v1328, 32
    %v1332 = vpop.permute.xlu0 %1331
    %1333 = vrot.lane.b32.xlu0 %v1330, 32
    %v1334 = vpop.permute.xlu0 %1333
    %v1337 = vrot.slane %v1311, 3
    %v1338 = vrot.slane %v1307, 3
    %v1339 = vsel %vm549, %v1337, %v1338
    %v1340 = vrot.slane %v1312, 3
    %v1341 = vsel %vm549, %v1338, %v1340
    %1342 = vrot.lane.b32.xlu0 %v1339, 48
    %v1343 = vpop.permute.xlu0 %1342
    %1344 = vrot.lane.b32.xlu0 %v1341, 48
    %v1345 = vpop.permute.xlu0 %1344
    %v1348 = vrot.slane %v1311, 4
    %v1349 = vrot.slane %v1307, 4
    %v1350 = vsel %vm561, %v1348, %v1349
    %v1351 = vrot.slane %v1312, 4
    %v1352 = vsel %vm561, %v1349, %v1351
    %1353 = vrot.lane.b32.xlu0 %v1350, 64
    %v1354 = vpop.permute.xlu0 %1353
    %1355 = vrot.lane.b32.xlu0 %v1352, 64
    %v1356 = vpop.permute.xlu0 %1355
    %v1359 = vrot.slane %v1311, 5
    %v1360 = vrot.slane %v1307, 5
    %v1361 = vsel %vm514, %v1359, %v1360
    %v1362 = vrot.slane %v1312, 5
    %v1363 = vsel %vm514, %v1360, %v1362
    %1364 = vrot.lane.b32.xlu0 %v1361, 80
    %v1365 = vpop.permute.xlu0 %1364
    %1366 = vrot.lane.b32.xlu0 %v1363, 80
    %v1367 = vpop.permute.xlu0 %1366
    %v1370 = vrot.slane %v1311, 6
    %v1371 = vrot.slane %v1307, 6
    %v1372 = vsel %vm584, %v1370, %v1371
    %v1373 = vrot.slane %v1312, 6
    %v1374 = vsel %vm584, %v1371, %v1373
    %1375 = vrot.lane.b32.xlu0 %v1372, 96
    %v1376 = vpop.permute.xlu0 %1375
    %1377 = vrot.lane.b32.xlu0 %v1374, 96
    %v1378 = vpop.permute.xlu0 %1377
    %v1381 = vsel %vm858, %v1311, %v1321
    %v1382 = vsel %vm858, %v1307, %v1323
    %v1383 = vsel %vm861, %v1381, %v1332
    %v1384 = vsel %vm861, %v1382, %v1334
    %v1385 = vsel %vm864, %v1383, %v1343
    %v1386 = vsel %vm864, %v1384, %v1345
    %v1387 = vsel %vm867, %v1385, %v1354
    %v1388 = vsel %vm867, %v1386, %v1356
    %v1389 = vsel %vm870, %v1387, %v1365
    %v1390 = vsel %vm870, %v1388, %v1367
    %v1391 = vsel %vm873, %v1389, %v1376
    %v1392 = vsel %vm873, %v1390, %v1378
    %v1395 = vrot.slane %v1301, 5
    %v1396 = vrot.slane %v1302, 5
    %v1397 = vsel %vm514, %v1395, %v1396
    %v1401 = vsel %vm514, 0.0, %v1395
    %v1402 = vsel %vm514, %v1396, 0.0
    %v1405 = vrot.slane %v1401, 1
    %v1406 = vrot.slane %v1397, 1
    %v1407 = vsel %vm525, %v1405, %v1406
    %v1408 = vrot.slane %v1402, 1
    %v1409 = vsel %vm525, %v1406, %v1408
    %1410 = vrot.lane.b32.xlu0 %v1407, 16
    %v1411 = vpop.permute.xlu0 %1410
    %1412 = vrot.lane.b32.xlu0 %v1409, 16
    %v1413 = vpop.permute.xlu0 %1412
    %v1416 = vrot.slane %v1401, 2
    %v1417 = vrot.slane %v1397, 2
    %v1418 = vsel %vm537, %v1416, %v1417
    %v1419 = vrot.slane %v1402, 2
    %v1420 = vsel %vm537, %v1417, %v1419
    %1421 = vrot.lane.b32.xlu0 %v1418, 32
    %v1422 = vpop.permute.xlu0 %1421
    %1423 = vrot.lane.b32.xlu0 %v1420, 32
    %v1424 = vpop.permute.xlu0 %1423
    %v1427 = vrot.slane %v1401, 3
    %v1428 = vrot.slane %v1397, 3
    %v1429 = vsel %vm549, %v1427, %v1428
    %v1430 = vrot.slane %v1402, 3
    %v1431 = vsel %vm549, %v1428, %v1430
    %1432 = vrot.lane.b32.xlu0 %v1429, 48
    %v1433 = vpop.permute.xlu0 %1432
    %1434 = vrot.lane.b32.xlu0 %v1431, 48
    %v1435 = vpop.permute.xlu0 %1434
    %v1438 = vrot.slane %v1401, 4
    %v1439 = vrot.slane %v1397, 4
    %v1440 = vsel %vm561, %v1438, %v1439
    %v1441 = vrot.slane %v1402, 4
    %v1442 = vsel %vm561, %v1439, %v1441
    %1443 = vrot.lane.b32.xlu0 %v1440, 64
    %v1444 = vpop.permute.xlu0 %1443
    %1445 = vrot.lane.b32.xlu0 %v1442, 64
    %v1446 = vpop.permute.xlu0 %1445
    %v1449 = vrot.slane %v1401, 5
    %v1450 = vrot.slane %v1397, 5
    %v1451 = vsel %vm514, %v1449, %v1450
    %v1452 = vrot.slane %v1402, 5
    %v1453 = vsel %vm514, %v1450, %v1452
    %1454 = vrot.lane.b32.xlu0 %v1451, 80
    %v1455 = vpop.permute.xlu0 %1454
    %1456 = vrot.lane.b32.xlu0 %v1453, 80
    %v1457 = vpop.permute.xlu0 %1456
    %v1460 = vrot.slane %v1401, 6
    %v1461 = vrot.slane %v1397, 6
    %v1462 = vsel %vm584, %v1460, %v1461
    %v1463 = vrot.slane %v1402, 6
    %v1464 = vsel %vm584, %v1461, %v1463
    %1465 = vrot.lane.b32.xlu0 %v1462, 96
    %v1466 = vpop.permute.xlu0 %1465
    %1467 = vrot.lane.b32.xlu0 %v1464, 96
    %v1468 = vpop.permute.xlu0 %1467
    %v1471 = vsel %vm858, %v1401, %v1411
    %v1472 = vsel %vm858, %v1397, %v1413
    %v1473 = vsel %vm861, %v1471, %v1422
    %v1474 = vsel %vm861, %v1472, %v1424
    %v1475 = vsel %vm864, %v1473, %v1433
    %v1476 = vsel %vm864, %v1474, %v1435
    %v1477 = vsel %vm867, %v1475, %v1444
    %v1478 = vsel %vm867, %v1476, %v1446
    %v1479 = vsel %vm870, %v1477, %v1455
    %v1480 = vsel %vm870, %v1478, %v1457
    %v1481 = vsel %vm873, %v1479, %v1466
    %v1482 = vsel %vm873, %v1480, %v1468
    %v1483 = vpack.c.bf16 %v1392, %v1391
    %v1484 = vpack.c.bf16 %v1482, %v1481
    %v1486 = vperm.slane %v192, 0
    %v1502 = vunpack.c.l.b16 %v178
    %v1503 = vunpack.c.l.b16 %v179
    %v1504 = vunpack.c.l.b16 %v180
    %v1505 = vunpack.c.l.b16 %v181
    %v1506 = vunpack.c.l.b16 %v182
    %v1507 = vunpack.c.l.b16 %v183
    %v1508 = vunpack.c.l.b16 %v184
    %v1509 = vunpack.c.l.b16 %v185
    %v1510 = vunpack.c.l.b16 %v186
    %v1511 = vunpack.c.l.b16 %v187
    %v1512 = vunpack.c.l.b16 %v188
    %v1513 = vunpack.c.l.b16 %v189
    %v1514 = vunpack.c.l.b16 %v190
    %v1515 = vunpack.c.l.b16 %v191
    %v1516 = vpack.c.b16 %v1503, %v1502
    %v1517 = vpack.c.b16 %v1505, %v1504
    %v1518 = vpack.c.b16 %v1507, %v1506
    %v1519 = vpack.c.b16 %v1509, %v1508
    %v1520 = vpack.c.b16 %v1511, %v1510
    %v1521 = vpack.c.b16 %v1513, %v1512
    %v1522 = vpack.c.b16 %v1515, %v1514
    %v1531 = vsel %vm1013, %v1483, 0
    %v1534 = vsel %vm1013, %v1484, 0
    %1536 = vmatpush.bf16.msra.mxu0 0
    %1537 = vmatpush.bf16.msra.mxu0 %v1522
    %1538 = vmatpush.bf16.msra.mxu0 %v1521
    %1539 = vmatpush.bf16.msra.mxu0 %v1520
    %1540 = vmatpush.bf16.msra.mxu0 %v1519
    %1541 = vmatpush.bf16.msra.mxu0 %v1518
    %1542 = vmatpush.bf16.msra.mxu0 %v1517
    %1543 = vmatpush.bf16.msra.mxu0 %v1516
    %1544 = vmatmul.bf16.gmra.mxu0 %v1531
    %v1545 = vpop.f32.mrf.mxu0
    %v1546 = vadd.f32 %v1486, %v1545
    %v1547 = vpop.f32.mrf.mxu0
    %v1548 = vadd.f32 %v1486, %v1547
    %1549 = vmatmul.bf16.gmra.mxu0 %v1534
    %v1550 = vpop.f32.mrf.mxu0
    %v1551 = vadd.f32 %v1486, %v1550
    %v1552 = vpop.f32.mrf.mxu0
    %v1553 = vadd.f32 %v1486, %v1552
    %1554 = vdwg.mxu0
    %v1555 = vadd.f32 %v1546, %v1043
    %v1556 = vadd.f32 %v1548, %v1044
    %v1557 = vadd.f32 %v1551, %v1045
    %v1558 = vadd.f32 %v1553, %v1046
    %v1559 = vmax.f32 %v1555, 0.0
    %v1560 = vmax.f32 %v1556, 0.0
    %v1561 = vmax.f32 %v1557, 0.0
    %v1562 = vmax.f32 %v1558, 0.0
    %v1565 = vrot.slane %v1559, 5
    %v1566 = vrot.slane %v1560, 5
    %v1567 = vsel %vm514, %v1565, %v1566
    %v1571 = vsel %vm514, 0.0, %v1565
    %v1572 = vsel %vm514, %v1566, 0.0
    %v1575 = vrot.slane %v1571, 1
    %v1576 = vrot.slane %v1567, 1
    %v1577 = vsel %vm525, %v1575, %v1576
    %v1578 = vrot.slane %v1572, 1
    %v1579 = vsel %vm525, %v1576, %v1578
    %1580 = vrot.lane.b32.xlu0 %v1577, 16
    %v1581 = vpop.permute.xlu0 %1580
    %1582 = vrot.lane.b32.xlu0 %v1579, 16
    %v1583 = vpop.permute.xlu0 %1582
    %v1586 = vrot.slane %v1571, 2
    %v1587 = vrot.slane %v1567, 2
    %v1588 = vsel %vm537, %v1586, %v1587
    %v1589 = vrot.slane %v1572, 2
    %v1590 = vsel %vm537, %v1587, %v1589
    %1591 = vrot.lane.b32.xlu0 %v1588, 32
    %v1592 = vpop.permute.xlu0 %1591
    %1593 = vrot.lane.b32.xlu0 %v1590, 32
    %v1594 = vpop.permute.xlu0 %1593
    %v1597 = vrot.slane %v1571, 3
    %v1598 = vrot.slane %v1567, 3
    %v1599 = vsel %vm549, %v1597, %v1598
    %v1600 = vrot.slane %v1572, 3
    %v1601 = vsel %vm549, %v1598, %v1600
    %1602 = vrot.lane.b32.xlu0 %v1599, 48
    %v1603 = vpop.permute.xlu0 %1602
    %1604 = vrot.lane.b32.xlu0 %v1601, 48
    %v1605 = vpop.permute.xlu0 %1604
    %v1608 = vrot.slane %v1571, 4
    %v1609 = vrot.slane %v1567, 4
    %v1610 = vsel %vm561, %v1608, %v1609
    %v1611 = vrot.slane %v1572, 4
    %v1612 = vsel %vm561, %v1609, %v1611
    %1613 = vrot.lane.b32.xlu0 %v1610, 64
    %v1614 = vpop.permute.xlu0 %1613
    %1615 = vrot.lane.b32.xlu0 %v1612, 64
    %v1616 = vpop.permute.xlu0 %1615
    %v1619 = vrot.slane %v1571, 5
    %v1620 = vrot.slane %v1567, 5
    %v1621 = vsel %vm514, %v1619, %v1620
    %v1622 = vrot.slane %v1572, 5
    %v1623 = vsel %vm514, %v1620, %v1622
    %1624 = vrot.lane.b32.xlu0 %v1621, 80
    %v1625 = vpop.permute.xlu0 %1624
    %1626 = vrot.lane.b32.xlu0 %v1623, 80
    %v1627 = vpop.permute.xlu0 %1626
    %v1630 = vrot.slane %v1571, 6
    %v1631 = vrot.slane %v1567, 6
    %v1632 = vsel %vm584, %v1630, %v1631
    %v1633 = vrot.slane %v1572, 6
    %v1634 = vsel %vm584, %v1631, %v1633
    %1635 = vrot.lane.b32.xlu0 %v1632, 96
    %v1636 = vpop.permute.xlu0 %1635
    %1637 = vrot.lane.b32.xlu0 %v1634, 96
    %v1638 = vpop.permute.xlu0 %1637
    %v1641 = vsel %vm858, %v1571, %v1581
    %v1642 = vsel %vm858, %v1567, %v1583
    %v1643 = vsel %vm861, %v1641, %v1592
    %v1644 = vsel %vm861, %v1642, %v1594
    %v1645 = vsel %vm864, %v1643, %v1603
    %v1646 = vsel %vm864, %v1644, %v1605
    %v1647 = vsel %vm867, %v1645, %v1614
    %v1648 = vsel %vm867, %v1646, %v1616
    %v1649 = vsel %vm870, %v1647, %v1625
    %v1650 = vsel %vm870, %v1648, %v1627
    %v1651 = vsel %vm873, %v1649, %v1636
    %v1652 = vsel %vm873, %v1650, %v1638
    %v1655 = vrot.slane %v1561, 5
    %v1656 = vrot.slane %v1562, 5
    %v1657 = vsel %vm514, %v1655, %v1656
    %v1661 = vsel %vm514, 0.0, %v1655
    %v1662 = vsel %vm514, %v1656, 0.0
    %v1665 = vrot.slane %v1661, 1
    %v1666 = vrot.slane %v1657, 1
    %v1667 = vsel %vm525, %v1665, %v1666
    %v1668 = vrot.slane %v1662, 1
    %v1669 = vsel %vm525, %v1666, %v1668
    %1670 = vrot.lane.b32.xlu0 %v1667, 16
    %v1671 = vpop.permute.xlu0 %1670
    %1672 = vrot.lane.b32.xlu0 %v1669, 16
    %v1673 = vpop.permute.xlu0 %1672
    %v1676 = vrot.slane %v1661, 2
    %v1677 = vrot.slane %v1657, 2
    %v1678 = vsel %vm537, %v1676, %v1677
    %v1679 = vrot.slane %v1662, 2
    %v1680 = vsel %vm537, %v1677, %v1679
    %1681 = vrot.lane.b32.xlu0 %v1678, 32
    %v1682 = vpop.permute.xlu0 %1681
    %1683 = vrot.lane.b32.xlu0 %v1680, 32
    %v1684 = vpop.permute.xlu0 %1683
    %v1687 = vrot.slane %v1661, 3
    %v1688 = vrot.slane %v1657, 3
    %v1689 = vsel %vm549, %v1687, %v1688
    %v1690 = vrot.slane %v1662, 3
    %v1691 = vsel %vm549, %v1688, %v1690
    %1692 = vrot.lane.b32.xlu0 %v1689, 48
    %v1693 = vpop.permute.xlu0 %1692
    %1694 = vrot.lane.b32.xlu0 %v1691, 48
    %v1695 = vpop.permute.xlu0 %1694
    %v1698 = vrot.slane %v1661, 4
    %v1699 = vrot.slane %v1657, 4
    %v1700 = vsel %vm561, %v1698, %v1699
    %v1701 = vrot.slane %v1662, 4
    %v1702 = vsel %vm561, %v1699, %v1701
    %1703 = vrot.lane.b32.xlu0 %v1700, 64
    %v1704 = vpop.permute.xlu0 %1703
    %1705 = vrot.lane.b32.xlu0 %v1702, 64
    %v1706 = vpop.permute.xlu0 %1705
    %v1709 = vrot.slane %v1661, 5
    %v1710 = vrot.slane %v1657, 5
    %v1711 = vsel %vm514, %v1709, %v1710
    %v1712 = vrot.slane %v1662, 5
    %v1713 = vsel %vm514, %v1710, %v1712
    %1714 = vrot.lane.b32.xlu0 %v1711, 80
    %v1715 = vpop.permute.xlu0 %1714
    %1716 = vrot.lane.b32.xlu0 %v1713, 80
    %v1717 = vpop.permute.xlu0 %1716
    %v1720 = vrot.slane %v1661, 6
    %v1721 = vrot.slane %v1657, 6
    %v1722 = vsel %vm584, %v1720, %v1721
    %v1723 = vrot.slane %v1662, 6
    %v1724 = vsel %vm584, %v1721, %v1723
    %1725 = vrot.lane.b32.xlu0 %v1722, 96
    %v1726 = vpop.permute.xlu0 %1725
    %1727 = vrot.lane.b32.xlu0 %v1724, 96
    %v1728 = vpop.permute.xlu0 %1727
    %v1731 = vsel %vm858, %v1661, %v1671
    %v1732 = vsel %vm858, %v1657, %v1673
    %v1733 = vsel %vm861, %v1731, %v1682
    %v1734 = vsel %vm861, %v1732, %v1684
    %v1735 = vsel %vm864, %v1733, %v1693
    %v1736 = vsel %vm864, %v1734, %v1695
    %v1737 = vsel %vm867, %v1735, %v1704
    %v1738 = vsel %vm867, %v1736, %v1706
    %v1739 = vsel %vm870, %v1737, %v1715
    %v1740 = vsel %vm870, %v1738, %v1717
    %v1741 = vsel %vm873, %v1739, %v1726
    %v1742 = vsel %vm873, %v1740, %v1728
    %v1743 = vpack.c.bf16 %v1652, %v1651
    %v1744 = vpack.c.bf16 %v1742, %v1741
    %v1746 = vperm.slane %v207, 0
    %v1762 = vunpack.c.l.b16 %v193
    %v1763 = vunpack.c.l.b16 %v194
    %v1764 = vunpack.c.l.b16 %v195
    %v1765 = vunpack.c.l.b16 %v196
    %v1766 = vunpack.c.l.b16 %v197
    %v1767 = vunpack.c.l.b16 %v198
    %v1768 = vunpack.c.l.b16 %v199
    %v1769 = vunpack.c.l.b16 %v200
    %v1770 = vunpack.c.l.b16 %v201
    %v1771 = vunpack.c.l.b16 %v202
    %v1772 = vunpack.c.l.b16 %v203
    %v1773 = vunpack.c.l.b16 %v204
    %v1774 = vunpack.c.l.b16 %v205
    %v1775 = vunpack.c.l.b16 %v206
    %v1776 = vpack.c.b16 %v1763, %v1762
    %v1777 = vpack.c.b16 %v1765, %v1764
    %v1778 = vpack.c.b16 %v1767, %v1766
    %v1779 = vpack.c.b16 %v1769, %v1768
    %v1780 = vpack.c.b16 %v1771, %v1770
    %v1781 = vpack.c.b16 %v1773, %v1772
    %v1782 = vpack.c.b16 %v1775, %v1774
    %v1791 = vsel %vm1013, %v1743, 0
    %v1794 = vsel %vm1013, %v1744, 0
    %1796 = vmatpush.bf16.msra.mxu0 0
    %1797 = vmatpush.bf16.msra.mxu0 %v1782
    %1798 = vmatpush.bf16.msra.mxu0 %v1781
    %1799 = vmatpush.bf16.msra.mxu0 %v1780
    %1800 = vmatpush.bf16.msra.mxu0 %v1779
    %1801 = vmatpush.bf16.msra.mxu0 %v1778
    %1802 = vmatpush.bf16.msra.mxu0 %v1777
    %1803 = vmatpush.bf16.msra.mxu0 %v1776
    %1804 = vmatmul.bf16.gmra.mxu0 %v1791
    %v1805 = vpop.f32.mrf.mxu0
    %v1806 = vadd.f32 %v1746, %v1805
    %v1807 = vpop.f32.mrf.mxu0
    %v1808 = vadd.f32 %v1746, %v1807
    %1809 = vmatmul.bf16.gmra.mxu0 %v1794
    %v1810 = vpop.f32.mrf.mxu0
    %v1811 = vadd.f32 %v1746, %v1810
    %v1812 = vpop.f32.mrf.mxu0
    %v1813 = vadd.f32 %v1746, %v1812
    %1814 = vdwg.mxu0
    %v1815 = vmax.f32 %v1806, 0.0
    %v1816 = vmax.f32 %v1808, 0.0
    %v1817 = vmax.f32 %v1811, 0.0
    %v1818 = vmax.f32 %v1813, 0.0
    %v1819 = vpack.c.bf16 %v1560, %v1559
    %v1820 = vpack.c.bf16 %v1562, %v1561
    %v1822 = vperm.slane %v239, 0
    %v1826 = vunpack.c.l.b16 %v237
    %v1827 = vunpack.c.l.b16 %v238
    %v1828 = vpack.c.b16 %v1827, %v1826
    %v1831 = vsel %vm858, %v1819, 0
    %v1834 = vsel %vm858, %v1820, 0
    %1836 = vmatpush.bf16.msra.mxu0 0
    %1837 = vmatpush.bf16.msra.mxu0 0
    %1838 = vmatpush.bf16.msra.mxu0 0
    %1839 = vmatpush.bf16.msra.mxu0 0
    %1840 = vmatpush.bf16.msra.mxu0 0
    %1841 = vmatpush.bf16.msra.mxu0 0
    %1842 = vmatpush.bf16.msra.mxu0 0
    %1843 = vmatpush.bf16.msra.mxu0 %v1828
    %1844 = vmatmul.bf16.gmra.mxu0 %v1831
    %v1845 = vpop.f32.mrf.mxu0
    %v1846 = vadd.f32 %v1822, %v1845
    %v1847 = vpop.f32.mrf.mxu0
    %v1848 = vadd.f32 %v1822, %v1847
    %1849 = vmatmul.bf16.gmra.mxu0 %v1834
    %v1850 = vpop.f32.mrf.mxu0
    %v1851 = vadd.f32 %v1822, %v1850
    %v1852 = vpop.f32.mrf.mxu0
    %v1853 = vadd.f32 %v1822, %v1852
    %1854 = vdwg.mxu0
    %v1857 = vrot.slane %v1815, 5
    %v1858 = vrot.slane %v1816, 5
    %v1859 = vsel %vm514, %v1857, %v1858
    %v1863 = vsel %vm514, 0.0, %v1857
    %v1864 = vsel %vm514, %v1858, 0.0
    %v1867 = vrot.slane %v1863, 1
    %v1868 = vrot.slane %v1859, 1
    %v1869 = vsel %vm525, %v1867, %v1868
    %v1870 = vrot.slane %v1864, 1
    %v1871 = vsel %vm525, %v1868, %v1870
    %1872 = vrot.lane.b32.xlu0 %v1869, 32
    %v1873 = vpop.permute.xlu0 %1872
    %1874 = vrot.lane.b32.xlu0 %v1871, 32
    %v1875 = vpop.permute.xlu0 %1874
    %v1878 = vrot.slane %v1863, 2
    %v1879 = vrot.slane %v1859, 2
    %v1880 = vsel %vm537, %v1878, %v1879
    %v1881 = vrot.slane %v1864, 2
    %v1882 = vsel %vm537, %v1879, %v1881
    %1883 = vrot.lane.b32.xlu0 %v1880, 64
    %v1884 = vpop.permute.xlu0 %1883
    %1885 = vrot.lane.b32.xlu0 %v1882, 64
    %v1886 = vpop.permute.xlu0 %1885
    %v1889 = vrot.slane %v1863, 3
    %v1890 = vrot.slane %v1859, 3
    %v1891 = vsel %vm549, %v1889, %v1890
    %v1892 = vrot.slane %v1864, 3
    %v1893 = vsel %vm549, %v1890, %v1892
    %1894 = vrot.lane.b32.xlu0 %v1891, 96
    %v1895 = vpop.permute.xlu0 %1894
    %1896 = vrot.lane.b32.xlu0 %v1893, 96
    %v1897 = vpop.permute.xlu0 %1896
    %v1900 = vrot.slane %v1863, 4
    %v1901 = vrot.slane %v1859, 4
    %v1902 = vsel %vm561, %v1900, %v1901
    %v1903 = vrot.slane %v1864, 4
    %v1904 = vsel %vm561, %v1901, %v1903
    %v1907 = vrot.slane %v1863, 5
    %v1908 = vrot.slane %v1859, 5
    %v1909 = vsel %vm514, %v1907, %v1908
    %v1910 = vrot.slane %v1864, 5
    %v1911 = vsel %vm514, %v1908, %v1910
    %1912 = vrot.lane.b32.xlu0 %v1909, 32
    %v1913 = vpop.permute.xlu0 %1912
    %1914 = vrot.lane.b32.xlu0 %v1911, 32
    %v1915 = vpop.permute.xlu0 %1914
    %v1918 = vrot.slane %v1863, 6
    %v1919 = vrot.slane %v1859, 6
    %v1920 = vsel %vm584, %v1918, %v1919
    %v1921 = vrot.slane %v1864, 6
    %v1922 = vsel %vm584, %v1919, %v1921
    %1923 = vrot.lane.b32.xlu0 %v1920, 64
    %v1924 = vpop.permute.xlu0 %1923
    %1925 = vrot.lane.b32.xlu0 %v1922, 64
    %v1926 = vpop.permute.xlu0 %1925
    %v1929 = vsel %vm861, %v1863, %v1873
    %v1930 = vsel %vm861, %v1859, %v1875
    %v1931 = vsel %vm867, %v1929, %v1884
    %v1932 = vsel %vm867, %v1930, %v1886
    %v1933 = vsel %vm873, %v1931, %v1895
    %v1934 = vsel %vm873, %v1932, %v1897
    %v1935 = vsel %vm861, %v1902, %v1913
    %v1936 = vsel %vm861, %v1904, %v1915
    %v1937 = vsel %vm867, %v1935, %v1924
    %v1938 = vsel %vm867, %v1936, %v1926
    %v1941 = vrot.slane %v1817, 5
    %v1942 = vrot.slane %v1818, 5
    %v1943 = vsel %vm514, %v1941, %v1942
    %v1947 = vsel %vm514, 0.0, %v1941
    %v1948 = vsel %vm514, %v1942, 0.0
    %v1951 = vrot.slane %v1947, 1
    %v1952 = vrot.slane %v1943, 1
    %v1953 = vsel %vm525, %v1951, %v1952
    %v1954 = vrot.slane %v1948, 1
    %v1955 = vsel %vm525, %v1952, %v1954
    %1956 = vrot.lane.b32.xlu0 %v1953, 32
    %v1957 = vpop.permute.xlu0 %1956
    %1958 = vrot.lane.b32.xlu0 %v1955, 32
    %v1959 = vpop.permute.xlu0 %1958
    %v1962 = vrot.slane %v1947, 2
    %v1963 = vrot.slane %v1943, 2
    %v1964 = vsel %vm537, %v1962, %v1963
    %v1965 = vrot.slane %v1948, 2
    %v1966 = vsel %vm537, %v1963, %v1965
    %1967 = vrot.lane.b32.xlu0 %v1964, 64
    %v1968 = vpop.permute.xlu0 %1967
    %1969 = vrot.lane.b32.xlu0 %v1966, 64
    %v1970 = vpop.permute.xlu0 %1969
    %v1973 = vrot.slane %v1947, 3
    %v1974 = vrot.slane %v1943, 3
    %v1975 = vsel %vm549, %v1973, %v1974
    %v1976 = vrot.slane %v1948, 3
    %v1977 = vsel %vm549, %v1974, %v1976
    %1978 = vrot.lane.b32.xlu0 %v1975, 96
    %v1979 = vpop.permute.xlu0 %1978
    %1980 = vrot.lane.b32.xlu0 %v1977, 96
    %v1981 = vpop.permute.xlu0 %1980
    %v1984 = vrot.slane %v1947, 4
    %v1985 = vrot.slane %v1943, 4
    %v1986 = vsel %vm561, %v1984, %v1985
    %v1987 = vrot.slane %v1948, 4
    %v1988 = vsel %vm561, %v1985, %v1987
    %v1991 = vrot.slane %v1947, 5
    %v1992 = vrot.slane %v1943, 5
    %v1993 = vsel %vm514, %v1991, %v1992
    %v1994 = vrot.slane %v1948, 5
    %v1995 = vsel %vm514, %v1992, %v1994
    %1996 = vrot.lane.b32.xlu0 %v1993, 32
    %v1997 = vpop.permute.xlu0 %1996
    %1998 = vrot.lane.b32.xlu0 %v1995, 32
    %v1999 = vpop.permute.xlu0 %1998
    %v2002 = vrot.slane %v1947, 6
    %v2003 = vrot.slane %v1943, 6
    %v2004 = vsel %vm584, %v2002, %v2003
    %v2005 = vrot.slane %v1948, 6
    %v2006 = vsel %vm584, %v2003, %v2005
    %2007 = vrot.lane.b32.xlu0 %v2004, 64
    %v2008 = vpop.permute.xlu0 %2007
    %2009 = vrot.lane.b32.xlu0 %v2006, 64
    %v2010 = vpop.permute.xlu0 %2009
    %v2013 = vsel %vm861, %v1947, %v1957
    %v2014 = vsel %vm861, %v1943, %v1959
    %v2015 = vsel %vm867, %v2013, %v1968
    %v2016 = vsel %vm867, %v2014, %v1970
    %v2017 = vsel %vm873, %v2015, %v1979
    %v2018 = vsel %vm873, %v2016, %v1981
    %v2019 = vsel %vm861, %v1986, %v1997
    %v2020 = vsel %vm861, %v1988, %v1999
    %v2021 = vsel %vm867, %v2019, %v2008
    %v2022 = vsel %vm867, %v2020, %v2010
    %v2023 = vpack.c.bf16 %v1934, %v1933
    %v2024 = vpack.c.bf16 %v1938, %v1937
    %v2025 = vpack.c.bf16 %v2018, %v2017
    %v2026 = vpack.c.bf16 %v2022, %v2021
    %v2028 = vperm.slane %v236, 0
    %v2058 = vunpack.c.l.b16 %v208
    %v2059 = vunpack.c.l.b16 %v209
    %v2060 = vunpack.c.l.b16 %v210
    %v2061 = vunpack.c.l.b16 %v211
    %v2062 = vunpack.c.l.b16 %v212
    %v2063 = vunpack.c.l.b16 %v213
    %v2064 = vunpack.c.l.b16 %v214
    %v2065 = vunpack.c.l.b16 %v215
    %v2066 = vunpack.c.l.b16 %v216
    %v2067 = vunpack.c.l.b16 %v217
    %v2068 = vunpack.c.l.b16 %v218
    %v2069 = vunpack.c.l.b16 %v219
    %v2070 = vunpack.c.l.b16 %v220
    %v2071 = vunpack.c.l.b16 %v221
    %v2072 = vunpack.c.l.b16 %v222
    %v2073 = vunpack.c.l.b16 %v223
    %v2074 = vunpack.c.l.b16 %v224
    %v2075 = vunpack.c.l.b16 %v225
    %v2076 = vunpack.c.l.b16 %v226
    %v2077 = vunpack.c.l.b16 %v227
    %v2078 = vunpack.c.l.b16 %v228
    %v2079 = vunpack.c.l.b16 %v229
    %v2080 = vunpack.c.l.b16 %v230
    %v2081 = vunpack.c.l.b16 %v231
    %v2082 = vunpack.c.l.b16 %v232
    %v2083 = vunpack.c.l.b16 %v233
    %v2084 = vunpack.c.l.b16 %v234
    %v2085 = vunpack.c.l.b16 %v235
    %v2086 = vpack.c.b16 %v2059, %v2058
    %v2087 = vpack.c.b16 %v2061, %v2060
    %v2088 = vpack.c.b16 %v2063, %v2062
    %v2089 = vpack.c.b16 %v2065, %v2064
    %v2090 = vpack.c.b16 %v2067, %v2066
    %v2091 = vpack.c.b16 %v2069, %v2068
    %v2092 = vpack.c.b16 %v2071, %v2070
    %v2093 = vpack.c.b16 %v2073, %v2072
    %v2094 = vpack.c.b16 %v2075, %v2074
    %v2095 = vpack.c.b16 %v2077, %v2076
    %v2096 = vpack.c.b16 %v2079, %v2078
    %v2097 = vpack.c.b16 %v2081, %v2080
    %v2098 = vpack.c.b16 %v2083, %v2082
    %v2099 = vpack.c.b16 %v2085, %v2084
    %v2115 = vsel %vm873, %v2024, 0
    %v2118 = vsel %vm873, %v2026, 0
    %2120 = vmatpush.bf16.msra.mxu0 %v2093
    %2121 = vmatpush.bf16.msra.mxu0 %v2092
    %2122 = vmatpush.bf16.msra.mxu0 %v2091
    %2123 = vmatpush.bf16.msra.mxu0 %v2090
    %2124 = vmatpush.bf16.msra.mxu0 %v2089
    %2125 = vmatpush.bf16.msra.mxu0 %v2088
    %2126 = vmatpush.bf16.msra.mxu0 %v2087
    %2127 = vmatpush.bf16.msra.mxu0 %v2086
    %2128 = vmatmul.bf16.gmra.mxu0 %v2023
    %v2129 = vpop.f32.mrf.mxu0
    %v2130 = vadd.f32 %v2028, %v2129
    %v2131 = vpop.f32.mrf.mxu0
    %v2132 = vadd.f32 %v2028, %v2131
    %2133 = vmatmul.bf16.gmra.mxu0 %v2025
    %v2134 = vpop.f32.mrf.mxu0
    %v2135 = vadd.f32 %v2028, %v2134
    %v2136 = vpop.f32.mrf.mxu0
    %v2137 = vadd.f32 %v2028, %v2136
    %2138 = vdwg.mxu0
    %2139 = vmatpush.bf16.msra.mxu0 0
    %2140 = vmatpush.bf16.msra.mxu0 0
    %2141 = vmatpush.bf16.msra.mxu0 %v2099
    %2142 = vmatpush.bf16.msra.mxu0 %v2098
    %2143 = vmatpush.bf16.msra.mxu0 %v2097
    %2144 = vmatpush.bf16.msra.mxu0 %v2096
    %2145 = vmatpush.bf16.msra.mxu0 %v2095
    %2146 = vmatpush.bf16.msra.mxu0 %v2094
    %2147 = vmatmul.bf16.gmra.mxu0 %v2115
    %v2148 = vpop.f32.mrf.mxu0
    %v2149 = vadd.f32 %v2130, %v2148
    %v2150 = vpop.f32.mrf.mxu0
    %v2151 = vadd.f32 %v2132, %v2150
    %2152 = vmatmul.bf16.gmra.mxu0 %v2118
    %v2153 = vpop.f32.mrf.mxu0
    %v2154 = vadd.f32 %v2135, %v2153
    %v2155 = vpop.f32.mrf.mxu0
    %v2156 = vadd.f32 %v2137, %v2155
    %2157 = vdwg.mxu0
    %v2158 = vadd.f32 %v2149, %v1846
    %v2159 = vadd.f32 %v2151, %v1848
    %v2160 = vadd.f32 %v2154, %v1851
    %v2161 = vadd.f32 %v2156, %v1853
    %v2162 = vmax.f32 %v2158, 0.0
    %v2163 = vmax.f32 %v2159, 0.0
    %v2164 = vmax.f32 %v2160, 0.0
    %v2165 = vmax.f32 %v2161, 0.0
    %v2168 = vrot.slane %v2162, 5
    %v2169 = vrot.slane %v2163, 5
    %v2170 = vsel %vm514, %v2168, %v2169
    %v2174 = vsel %vm514, 0.0, %v2168
    %v2175 = vsel %vm514, %v2169, 0.0
    %v2178 = vrot.slane %v2174, 1
    %v2179 = vrot.slane %v2170, 1
    %v2180 = vsel %vm525, %v2178, %v2179
    %v2181 = vrot.slane %v2175, 1
    %v2182 = vsel %vm525, %v2179, %v2181
    %2183 = vrot.lane.b32.xlu0 %v2180, 32
    %v2184 = vpop.permute.xlu0 %2183
    %2185 = vrot.lane.b32.xlu0 %v2182, 32
    %v2186 = vpop.permute.xlu0 %2185
    %v2189 = vrot.slane %v2174, 2
    %v2190 = vrot.slane %v2170, 2
    %v2191 = vsel %vm537, %v2189, %v2190
    %v2192 = vrot.slane %v2175, 2
    %v2193 = vsel %vm537, %v2190, %v2192
    %2194 = vrot.lane.b32.xlu0 %v2191, 64
    %v2195 = vpop.permute.xlu0 %2194
    %2196 = vrot.lane.b32.xlu0 %v2193, 64
    %v2197 = vpop.permute.xlu0 %2196
    %v2200 = vrot.slane %v2174, 3
    %v2201 = vrot.slane %v2170, 3
    %v2202 = vsel %vm549, %v2200, %v2201
    %v2203 = vrot.slane %v2175, 3
    %v2204 = vsel %vm549, %v2201, %v2203
    %2205 = vrot.lane.b32.xlu0 %v2202, 96
    %v2206 = vpop.permute.xlu0 %2205
    %2207 = vrot.lane.b32.xlu0 %v2204, 96
    %v2208 = vpop.permute.xlu0 %2207
    %v2211 = vrot.slane %v2174, 4
    %v2212 = vrot.slane %v2170, 4
    %v2213 = vsel %vm561, %v2211, %v2212
    %v2214 = vrot.slane %v2175, 4
    %v2215 = vsel %vm561, %v2212, %v2214
    %v2218 = vrot.slane %v2174, 5
    %v2219 = vrot.slane %v2170, 5
    %v2220 = vsel %vm514, %v2218, %v2219
    %v2221 = vrot.slane %v2175, 5
    %v2222 = vsel %vm514, %v2219, %v2221
    %2223 = vrot.lane.b32.xlu0 %v2220, 32
    %v2224 = vpop.permute.xlu0 %2223
    %2225 = vrot.lane.b32.xlu0 %v2222, 32
    %v2226 = vpop.permute.xlu0 %2225
    %v2229 = vrot.slane %v2174, 6
    %v2230 = vrot.slane %v2170, 6
    %v2231 = vsel %vm584, %v2229, %v2230
    %v2232 = vrot.slane %v2175, 6
    %v2233 = vsel %vm584, %v2230, %v2232
    %2234 = vrot.lane.b32.xlu0 %v2231, 64
    %v2235 = vpop.permute.xlu0 %2234
    %2236 = vrot.lane.b32.xlu0 %v2233, 64
    %v2237 = vpop.permute.xlu0 %2236
    %v2240 = vsel %vm861, %v2174, %v2184
    %v2241 = vsel %vm861, %v2170, %v2186
    %v2242 = vsel %vm867, %v2240, %v2195
    %v2243 = vsel %vm867, %v2241, %v2197
    %v2244 = vsel %vm873, %v2242, %v2206
    %v2245 = vsel %vm873, %v2243, %v2208
    %v2246 = vsel %vm861, %v2213, %v2224
    %v2247 = vsel %vm861, %v2215, %v2226
    %v2248 = vsel %vm867, %v2246, %v2235
    %v2249 = vsel %vm867, %v2247, %v2237
    %v2252 = vrot.slane %v2164, 5
    %v2253 = vrot.slane %v2165, 5
    %v2254 = vsel %vm514, %v2252, %v2253
    %v2258 = vsel %vm514, 0.0, %v2252
    %v2259 = vsel %vm514, %v2253, 0.0
    %v2262 = vrot.slane %v2258, 1
    %v2263 = vrot.slane %v2254, 1
    %v2264 = vsel %vm525, %v2262, %v2263
    %v2265 = vrot.slane %v2259, 1
    %v2266 = vsel %vm525, %v2263, %v2265
    %2267 = vrot.lane.b32.xlu0 %v2264, 32
    %v2268 = vpop.permute.xlu0 %2267
    %2269 = vrot.lane.b32.xlu0 %v2266, 32
    %v2270 = vpop.permute.xlu0 %2269
    %v2273 = vrot.slane %v2258, 2
    %v2274 = vrot.slane %v2254, 2
    %v2275 = vsel %vm537, %v2273, %v2274
    %v2276 = vrot.slane %v2259, 2
    %v2277 = vsel %vm537, %v2274, %v2276
    %2278 = vrot.lane.b32.xlu0 %v2275, 64
    %v2279 = vpop.permute.xlu0 %2278
    %2280 = vrot.lane.b32.xlu0 %v2277, 64
    %v2281 = vpop.permute.xlu0 %2280
    %v2284 = vrot.slane %v2258, 3
    %v2285 = vrot.slane %v2254, 3
    %v2286 = vsel %vm549, %v2284, %v2285
    %v2287 = vrot.slane %v2259, 3
    %v2288 = vsel %vm549, %v2285, %v2287
    %2289 = vrot.lane.b32.xlu0 %v2286, 96
    %v2290 = vpop.permute.xlu0 %2289
    %2291 = vrot.lane.b32.xlu0 %v2288, 96
    %v2292 = vpop.permute.xlu0 %2291
    %v2295 = vrot.slane %v2258, 4
    %v2296 = vrot.slane %v2254, 4
    %v2297 = vsel %vm561, %v2295, %v2296
    %v2298 = vrot.slane %v2259, 4
    %v2299 = vsel %vm561, %v2296, %v2298
    %v2302 = vrot.slane %v2258, 5
    %v2303 = vrot.slane %v2254, 5
    %v2304 = vsel %vm514, %v2302, %v2303
    %v2305 = vrot.slane %v2259, 5
    %v2306 = vsel %vm514, %v2303, %v2305
    %2307 = vrot.lane.b32.xlu0 %v2304, 32
    %v2308 = vpop.permute.xlu0 %2307
    %2309 = vrot.lane.b32.xlu0 %v2306, 32
    %v2310 = vpop.permute.xlu0 %2309
    %v2313 = vrot.slane %v2258, 6
    %v2314 = vrot.slane %v2254, 6
    %v2315 = vsel %vm584, %v2313, %v2314
    %v2316 = vrot.slane %v2259, 6
    %v2317 = vsel %vm584, %v2314, %v2316
    %2318 = vrot.lane.b32.xlu0 %v2315, 64
    %v2319 = vpop.permute.xlu0 %2318
    %2320 = vrot.lane.b32.xlu0 %v2317, 64
    %v2321 = vpop.permute.xlu0 %2320
    %v2324 = vsel %vm861, %v2258, %v2268
    %v2325 = vsel %vm861, %v2254, %v2270
    %v2326 = vsel %vm867, %v2324, %v2279
    %v2327 = vsel %vm867, %v2325, %v2281
    %v2328 = vsel %vm873, %v2326, %v2290
    %v2329 = vsel %vm873, %v2327, %v2292
    %v2330 = vsel %vm861, %v2297, %v2308
    %v2331 = vsel %vm861, %v2299, %v2310
    %v2332 = vsel %vm867, %v2330, %v2319
    %v2333 = vsel %vm867, %v2331, %v2321
    %v2334 = vpack.c.bf16 %v2245, %v2244
    %v2335 = vpack.c.bf16 %v2249, %v2248
    %v2336 = vpack.c.bf16 %v2329, %v2328
    %v2337 = vpack.c.bf16 %v2333, %v2332
    %v2339 = vperm.slane %v268, 0
    %v2369 = vunpack.c.l.b16 %v240
    %v2370 = vunpack.c.l.b16 %v241
    %v2371 = vunpack.c.l.b16 %v242
    %v2372 = vunpack.c.l.b16 %v243
    %v2373 = vunpack.c.l.b16 %v244
    %v2374 = vunpack.c.l.b16 %v245
    %v2375 = vunpack.c.l.b16 %v246
    %v2376 = vunpack.c.l.b16 %v247
    %v2377 = vunpack.c.l.b16 %v248
    %v2378 = vunpack.c.l.b16 %v249
    %v2379 = vunpack.c.l.b16 %v250
    %v2380 = vunpack.c.l.b16 %v251
    %v2381 = vunpack.c.l.b16 %v252
    %v2382 = vunpack.c.l.b16 %v253
    %v2383 = vunpack.c.l.b16 %v254
    %v2384 = vunpack.c.l.b16 %v255
    %v2385 = vunpack.c.l.b16 %v256
    %v2386 = vunpack.c.l.b16 %v257
    %v2387 = vunpack.c.l.b16 %v258
    %v2388 = vunpack.c.l.b16 %v259
    %v2389 = vunpack.c.l.b16 %v260
    %v2390 = vunpack.c.l.b16 %v261
    %v2391 = vunpack.c.l.b16 %v262
    %v2392 = vunpack.c.l.b16 %v263
    %v2393 = vunpack.c.l.b16 %v264
    %v2394 = vunpack.c.l.b16 %v265
    %v2395 = vunpack.c.l.b16 %v266
    %v2396 = vunpack.c.l.b16 %v267
    %v2397 = vpack.c.b16 %v2370, %v2369
    %v2398 = vpack.c.b16 %v2372, %v2371
    %v2399 = vpack.c.b16 %v2374, %v2373
    %v2400 = vpack.c.b16 %v2376, %v2375
    %v2401 = vpack.c.b16 %v2378, %v2377
    %v2402 = vpack.c.b16 %v2380, %v2379
    %v2403 = vpack.c.b16 %v2382, %v2381
    %v2404 = vpack.c.b16 %v2384, %v2383
    %v2405 = vpack.c.b16 %v2386, %v2385
    %v2406 = vpack.c.b16 %v2388, %v2387
    %v2407 = vpack.c.b16 %v2390, %v2389
    %v2408 = vpack.c.b16 %v2392, %v2391
    %v2409 = vpack.c.b16 %v2394, %v2393
    %v2410 = vpack.c.b16 %v2396, %v2395
    %v2426 = vsel %vm873, %v2335, 0
    %v2429 = vsel %vm873, %v2337, 0
    %2431 = vmatpush.bf16.msra.mxu0 %v2404
    %2432 = vmatpush.bf16.msra.mxu0 %v2403
    %2433 = vmatpush.bf16.msra.mxu0 %v2402
    %2434 = vmatpush.bf16.msra.mxu0 %v2401
    %2435 = vmatpush.bf16.msra.mxu0 %v2400
    %2436 = vmatpush.bf16.msra.mxu0 %v2399
    %2437 = vmatpush.bf16.msra.mxu0 %v2398
    %2438 = vmatpush.bf16.msra.mxu0 %v2397
    %2439 = vmatmul.bf16.gmra.mxu0 %v2334
    %v2440 = vpop.f32.mrf.mxu0
    %v2441 = vadd.f32 %v2339, %v2440
    %v2442 = vpop.f32.mrf.mxu0
    %v2443 = vadd.f32 %v2339, %v2442
    %2444 = vmatmul.bf16.gmra.mxu0 %v2336
    %v2445 = vpop.f32.mrf.mxu0
    %v2446 = vadd.f32 %v2339, %v2445
    %v2447 = vpop.f32.mrf.mxu0
    %v2448 = vadd.f32 %v2339, %v2447
    %2449 = vdwg.mxu0
    %2450 = vmatpush.bf16.msra.mxu0 0
    %2451 = vmatpush.bf16.msra.mxu0 0
    %2452 = vmatpush.bf16.msra.mxu0 %v2410
    %2453 = vmatpush.bf16.msra.mxu0 %v2409
    %2454 = vmatpush.bf16.msra.mxu0 %v2408
    %2455 = vmatpush.bf16.msra.mxu0 %v2407
    %2456 = vmatpush.bf16.msra.mxu0 %v2406
    %2457 = vmatpush.bf16.msra.mxu0 %v2405
    %2458 = vmatmul.bf16.gmra.mxu0 %v2426
    %v2459 = vpop.f32.mrf.mxu0
    %v2460 = vadd.f32 %v2441, %v2459
    %v2461 = vpop.f32.mrf.mxu0
    %v2462 = vadd.f32 %v2443, %v2461
    %2463 = vmatmul.bf16.gmra.mxu0 %v2429
    %v2464 = vpop.f32.mrf.mxu0
    %v2465 = vadd.f32 %v2446, %v2464
    %v2466 = vpop.f32.mrf.mxu0
    %v2467 = vadd.f32 %v2448, %v2466
    %2468 = vdwg.mxu0
    %v2469 = vmax.f32 %v2460, 0.0
    %v2470 = vmax.f32 %v2462, 0.0
    %v2471 = vmax.f32 %v2465, 0.0
    %v2472 = vmax.f32 %v2467, 0.0
    %v2475 = vrot.slane %v2469, 5
    %v2476 = vrot.slane %v2470, 5
    %v2477 = vsel %vm514, %v2475, %v2476
    %v2481 = vsel %vm514, 0.0, %v2475
    %v2482 = vsel %vm514, %v2476, 0.0
    %v2485 = vrot.slane %v2481, 1
    %v2486 = vrot.slane %v2477, 1
    %v2487 = vsel %vm525, %v2485, %v2486
    %v2488 = vrot.slane %v2482, 1
    %v2489 = vsel %vm525, %v2486, %v2488
    %2490 = vrot.lane.b32.xlu0 %v2487, 32
    %v2491 = vpop.permute.xlu0 %2490
    %2492 = vrot.lane.b32.xlu0 %v2489, 32
    %v2493 = vpop.permute.xlu0 %2492
    %v2496 = vrot.slane %v2481, 2
    %v2497 = vrot.slane %v2477, 2
    %v2498 = vsel %vm537, %v2496, %v2497
    %v2499 = vrot.slane %v2482, 2
    %v2500 = vsel %vm537, %v2497, %v2499
    %2501 = vrot.lane.b32.xlu0 %v2498, 64
    %v2502 = vpop.permute.xlu0 %2501
    %2503 = vrot.lane.b32.xlu0 %v2500, 64
    %v2504 = vpop.permute.xlu0 %2503
    %v2507 = vrot.slane %v2481, 3
    %v2508 = vrot.slane %v2477, 3
    %v2509 = vsel %vm549, %v2507, %v2508
    %v2510 = vrot.slane %v2482, 3
    %v2511 = vsel %vm549, %v2508, %v2510
    %2512 = vrot.lane.b32.xlu0 %v2509, 96
    %v2513 = vpop.permute.xlu0 %2512
    %2514 = vrot.lane.b32.xlu0 %v2511, 96
    %v2515 = vpop.permute.xlu0 %2514
    %v2518 = vrot.slane %v2481, 4
    %v2519 = vrot.slane %v2477, 4
    %v2520 = vsel %vm561, %v2518, %v2519
    %v2521 = vrot.slane %v2482, 4
    %v2522 = vsel %vm561, %v2519, %v2521
    %v2525 = vrot.slane %v2481, 5
    %v2526 = vrot.slane %v2477, 5
    %v2527 = vsel %vm514, %v2525, %v2526
    %v2528 = vrot.slane %v2482, 5
    %v2529 = vsel %vm514, %v2526, %v2528
    %2530 = vrot.lane.b32.xlu0 %v2527, 32
    %v2531 = vpop.permute.xlu0 %2530
    %2532 = vrot.lane.b32.xlu0 %v2529, 32
    %v2533 = vpop.permute.xlu0 %2532
    %v2536 = vrot.slane %v2481, 6
    %v2537 = vrot.slane %v2477, 6
    %v2538 = vsel %vm584, %v2536, %v2537
    %v2539 = vrot.slane %v2482, 6
    %v2540 = vsel %vm584, %v2537, %v2539
    %2541 = vrot.lane.b32.xlu0 %v2538, 64
    %v2542 = vpop.permute.xlu0 %2541
    %2543 = vrot.lane.b32.xlu0 %v2540, 64
    %v2544 = vpop.permute.xlu0 %2543
    %v2547 = vsel %vm861, %v2481, %v2491
    %v2548 = vsel %vm861, %v2477, %v2493
    %v2549 = vsel %vm867, %v2547, %v2502
    %v2550 = vsel %vm867, %v2548, %v2504
    %v2551 = vsel %vm873, %v2549, %v2513
    %v2552 = vsel %vm873, %v2550, %v2515
    %v2553 = vsel %vm861, %v2520, %v2531
    %v2554 = vsel %vm861, %v2522, %v2533
    %v2555 = vsel %vm867, %v2553, %v2542
    %v2556 = vsel %vm867, %v2554, %v2544
    %v2559 = vrot.slane %v2471, 5
    %v2560 = vrot.slane %v2472, 5
    %v2561 = vsel %vm514, %v2559, %v2560
    %v2565 = vsel %vm514, 0.0, %v2559
    %v2566 = vsel %vm514, %v2560, 0.0
    %v2569 = vrot.slane %v2565, 1
    %v2570 = vrot.slane %v2561, 1
    %v2571 = vsel %vm525, %v2569, %v2570
    %v2572 = vrot.slane %v2566, 1
    %v2573 = vsel %vm525, %v2570, %v2572
    %2574 = vrot.lane.b32.xlu0 %v2571, 32
    %v2575 = vpop.permute.xlu0 %2574
    %2576 = vrot.lane.b32.xlu0 %v2573, 32
    %v2577 = vpop.permute.xlu0 %2576
    %v2580 = vrot.slane %v2565, 2
    %v2581 = vrot.slane %v2561, 2
    %v2582 = vsel %vm537, %v2580, %v2581
    %v2583 = vrot.slane %v2566, 2
    %v2584 = vsel %vm537, %v2581, %v2583
    %2585 = vrot.lane.b32.xlu0 %v2582, 64
    %v2586 = vpop.permute.xlu0 %2585
    %2587 = vrot.lane.b32.xlu0 %v2584, 64
    %v2588 = vpop.permute.xlu0 %2587
    %v2591 = vrot.slane %v2565, 3
    %v2592 = vrot.slane %v2561, 3
    %v2593 = vsel %vm549, %v2591, %v2592
    %v2594 = vrot.slane %v2566, 3
    %v2595 = vsel %vm549, %v2592, %v2594
    %2596 = vrot.lane.b32.xlu0 %v2593, 96
    %v2597 = vpop.permute.xlu0 %2596
    %2598 = vrot.lane.b32.xlu0 %v2595, 96
    %v2599 = vpop.permute.xlu0 %2598
    %v2602 = vrot.slane %v2565, 4
    %v2603 = vrot.slane %v2561, 4
    %v2604 = vsel %vm561, %v2602, %v2603
    %v2605 = vrot.slane %v2566, 4
    %v2606 = vsel %vm561, %v2603, %v2605
    %v2609 = vrot.slane %v2565, 5
    %v2610 = vrot.slane %v2561, 5
    %v2611 = vsel %vm514, %v2609, %v2610
    %v2612 = vrot.slane %v2566, 5
    %v2613 = vsel %vm514, %v2610, %v2612
    %2614 = vrot.lane.b32.xlu0 %v2611, 32
    %v2615 = vpop.permute.xlu0 %2614
    %2616 = vrot.lane.b32.xlu0 %v2613, 32
    %v2617 = vpop.permute.xlu0 %2616
    %v2620 = vrot.slane %v2565, 6
    %v2621 = vrot.slane %v2561, 6
    %v2622 = vsel %vm584, %v2620, %v2621
    %v2623 = vrot.slane %v2566, 6
    %v2624 = vsel %vm584, %v2621, %v2623
    %2625 = vrot.lane.b32.xlu0 %v2622, 64
    %v2626 = vpop.permute.xlu0 %2625
    %2627 = vrot.lane.b32.xlu0 %v2624, 64
    %v2628 = vpop.permute.xlu0 %2627
    %v2631 = vsel %vm861, %v2565, %v2575
    %v2632 = vsel %vm861, %v2561, %v2577
    %v2633 = vsel %vm867, %v2631, %v2586
    %v2634 = vsel %vm867, %v2632, %v2588
    %v2635 = vsel %vm873, %v2633, %v2597
    %v2636 = vsel %vm873, %v2634, %v2599
    %v2637 = vsel %vm861, %v2604, %v2615
    %v2638 = vsel %vm861, %v2606, %v2617
    %v2639 = vsel %vm867, %v2637, %v2626
    %v2640 = vsel %vm867, %v2638, %v2628
    %v2641 = vpack.c.bf16 %v2552, %v2551
    %v2642 = vpack.c.bf16 %v2556, %v2555
    %v2643 = vpack.c.bf16 %v2636, %v2635
    %v2644 = vpack.c.bf16 %v2640, %v2639
    %v2646 = vperm.slane %v297, 0
    %v2676 = vunpack.c.l.b16 %v269
    %v2677 = vunpack.c.l.b16 %v270
    %v2678 = vunpack.c.l.b16 %v271
    %v2679 = vunpack.c.l.b16 %v272
    %v2680 = vunpack.c.l.b16 %v273
    %v2681 = vunpack.c.l.b16 %v274
    %v2682 = vunpack.c.l.b16 %v275
    %v2683 = vunpack.c.l.b16 %v276
    %v2684 = vunpack.c.l.b16 %v277
    %v2685 = vunpack.c.l.b16 %v278
    %v2686 = vunpack.c.l.b16 %v279
    %v2687 = vunpack.c.l.b16 %v280
    %v2688 = vunpack.c.l.b16 %v281
    %v2689 = vunpack.c.l.b16 %v282
    %v2690 = vunpack.c.l.b16 %v283
    %v2691 = vunpack.c.l.b16 %v284
    %v2692 = vunpack.c.l.b16 %v285
    %v2693 = vunpack.c.l.b16 %v286
    %v2694 = vunpack.c.l.b16 %v287
    %v2695 = vunpack.c.l.b16 %v288
    %v2696 = vunpack.c.l.b16 %v289
    %v2697 = vunpack.c.l.b16 %v290
    %v2698 = vunpack.c.l.b16 %v291
    %v2699 = vunpack.c.l.b16 %v292
    %v2700 = vunpack.c.l.b16 %v293
    %v2701 = vunpack.c.l.b16 %v294
    %v2702 = vunpack.c.l.b16 %v295
    %v2703 = vunpack.c.l.b16 %v296
    %v2704 = vpack.c.b16 %v2677, %v2676
    %v2705 = vpack.c.b16 %v2679, %v2678
    %v2706 = vpack.c.b16 %v2681, %v2680
    %v2707 = vpack.c.b16 %v2683, %v2682
    %v2708 = vpack.c.b16 %v2685, %v2684
    %v2709 = vpack.c.b16 %v2687, %v2686
    %v2710 = vpack.c.b16 %v2689, %v2688
    %v2711 = vpack.c.b16 %v2691, %v2690
    %v2712 = vpack.c.b16 %v2693, %v2692
    %v2713 = vpack.c.b16 %v2695, %v2694
    %v2714 = vpack.c.b16 %v2697, %v2696
    %v2715 = vpack.c.b16 %v2699, %v2698
    %v2716 = vpack.c.b16 %v2701, %v2700
    %v2717 = vpack.c.b16 %v2703, %v2702
    %v2733 = vsel %vm873, %v2642, 0
    %v2736 = vsel %vm873, %v2644, 0
    %2738 = vmatpush.bf16.msra.mxu0 %v2711
    %2739 = vmatpush.bf16.msra.mxu0 %v2710
    %2740 = vmatpush.bf16.msra.mxu0 %v2709
    %2741 = vmatpush.bf16.msra.mxu0 %v2708
    %2742 = vmatpush.bf16.msra.mxu0 %v2707
    %2743 = vmatpush.bf16.msra.mxu0 %v2706
    %2744 = vmatpush.bf16.msra.mxu0 %v2705
    %2745 = vmatpush.bf16.msra.mxu0 %v2704
    %2746 = vmatmul.bf16.gmra.mxu0 %v2641
    %v2747 = vpop.f32.mrf.mxu0
    %v2748 = vadd.f32 %v2646, %v2747
    %v2749 = vpop.f32.mrf.mxu0
    %v2750 = vadd.f32 %v2646, %v2749
    %2751 = vmatmul.bf16.gmra.mxu0 %v2643
    %v2752 = vpop.f32.mrf.mxu0
    %v2753 = vadd.f32 %v2646, %v2752
    %v2754 = vpop.f32.mrf.mxu0
    %v2755 = vadd.f32 %v2646, %v2754
    %2756 = vdwg.mxu0
    %2757 = vmatpush.bf16.msra.mxu0 0
    %2758 = vmatpush.bf16.msra.mxu0 0
    %2759 = vmatpush.bf16.msra.mxu0 %v2717
    %2760 = vmatpush.bf16.msra.mxu0 %v2716
    %2761 = vmatpush.bf16.msra.mxu0 %v2715
    %2762 = vmatpush.bf16.msra.mxu0 %v2714
    %2763 = vmatpush.bf16.msra.mxu0 %v2713
    %2764 = vmatpush.bf16.msra.mxu0 %v2712
    %2765 = vmatmul.bf16.gmra.mxu0 %v2733
    %v2766 = vpop.f32.mrf.mxu0
    %v2767 = vadd.f32 %v2748, %v2766
    %v2768 = vpop.f32.mrf.mxu0
    %v2769 = vadd.f32 %v2750, %v2768
    %2770 = vmatmul.bf16.gmra.mxu0 %v2736
    %v2771 = vpop.f32.mrf.mxu0
    %v2772 = vadd.f32 %v2753, %v2771
    %v2773 = vpop.f32.mrf.mxu0
    %v2774 = vadd.f32 %v2755, %v2773
    %2775 = vdwg.mxu0
    %v2776 = vadd.f32 %v2767, %v2162
    %v2777 = vadd.f32 %v2769, %v2163
    %v2778 = vadd.f32 %v2772, %v2164
    %v2779 = vadd.f32 %v2774, %v2165
    %v2780 = vmax.f32 %v2776, 0.0
    %v2781 = vmax.f32 %v2777, 0.0
    %v2782 = vmax.f32 %v2778, 0.0
    %v2783 = vmax.f32 %v2779, 0.0
    %v2786 = vrot.slane %v2780, 5
    %v2787 = vrot.slane %v2781, 5
    %v2788 = vsel %vm514, %v2786, %v2787
    %v2792 = vsel %vm514, 0.0, %v2786
    %v2793 = vsel %vm514, %v2787, 0.0
    %v2796 = vrot.slane %v2792, 1
    %v2797 = vrot.slane %v2788, 1
    %v2798 = vsel %vm525, %v2796, %v2797
    %v2799 = vrot.slane %v2793, 1
    %v2800 = vsel %vm525, %v2797, %v2799
    %2801 = vrot.lane.b32.xlu0 %v2798, 32
    %v2802 = vpop.permute.xlu0 %2801
    %2803 = vrot.lane.b32.xlu0 %v2800, 32
    %v2804 = vpop.permute.xlu0 %2803
    %v2807 = vrot.slane %v2792, 2
    %v2808 = vrot.slane %v2788, 2
    %v2809 = vsel %vm537, %v2807, %v2808
    %v2810 = vrot.slane %v2793, 2
    %v2811 = vsel %vm537, %v2808, %v2810
    %2812 = vrot.lane.b32.xlu0 %v2809, 64
    %v2813 = vpop.permute.xlu0 %2812
    %2814 = vrot.lane.b32.xlu0 %v2811, 64
    %v2815 = vpop.permute.xlu0 %2814
    %v2818 = vrot.slane %v2792, 3
    %v2819 = vrot.slane %v2788, 3
    %v2820 = vsel %vm549, %v2818, %v2819
    %v2821 = vrot.slane %v2793, 3
    %v2822 = vsel %vm549, %v2819, %v2821
    %2823 = vrot.lane.b32.xlu0 %v2820, 96
    %v2824 = vpop.permute.xlu0 %2823
    %2825 = vrot.lane.b32.xlu0 %v2822, 96
    %v2826 = vpop.permute.xlu0 %2825
    %v2829 = vrot.slane %v2792, 4
    %v2830 = vrot.slane %v2788, 4
    %v2831 = vsel %vm561, %v2829, %v2830
    %v2832 = vrot.slane %v2793, 4
    %v2833 = vsel %vm561, %v2830, %v2832
    %v2836 = vrot.slane %v2792, 5
    %v2837 = vrot.slane %v2788, 5
    %v2838 = vsel %vm514, %v2836, %v2837
    %v2839 = vrot.slane %v2793, 5
    %v2840 = vsel %vm514, %v2837, %v2839
    %2841 = vrot.lane.b32.xlu0 %v2838, 32
    %v2842 = vpop.permute.xlu0 %2841
    %2843 = vrot.lane.b32.xlu0 %v2840, 32
    %v2844 = vpop.permute.xlu0 %2843
    %v2847 = vrot.slane %v2792, 6
    %v2848 = vrot.slane %v2788, 6
    %v2849 = vsel %vm584, %v2847, %v2848
    %v2850 = vrot.slane %v2793, 6
    %v2851 = vsel %vm584, %v2848, %v2850
    %2852 = vrot.lane.b32.xlu0 %v2849, 64
    %v2853 = vpop.permute.xlu0 %2852
    %2854 = vrot.lane.b32.xlu0 %v2851, 64
    %v2855 = vpop.permute.xlu0 %2854
    %v2858 = vsel %vm861, %v2792, %v2802
    %v2859 = vsel %vm861, %v2788, %v2804
    %v2860 = vsel %vm867, %v2858, %v2813
    %v2861 = vsel %vm867, %v2859, %v2815
    %v2862 = vsel %vm873, %v2860, %v2824
    %v2863 = vsel %vm873, %v2861, %v2826
    %v2864 = vsel %vm861, %v2831, %v2842
    %v2865 = vsel %vm861, %v2833, %v2844
    %v2866 = vsel %vm867, %v2864, %v2853
    %v2867 = vsel %vm867, %v2865, %v2855
    %v2870 = vrot.slane %v2782, 5
    %v2871 = vrot.slane %v2783, 5
    %v2872 = vsel %vm514, %v2870, %v2871
    %v2876 = vsel %vm514, 0.0, %v2870
    %v2877 = vsel %vm514, %v2871, 0.0
    %v2880 = vrot.slane %v2876, 1
    %v2881 = vrot.slane %v2872, 1
    %v2882 = vsel %vm525, %v2880, %v2881
    %v2883 = vrot.slane %v2877, 1
    %v2884 = vsel %vm525, %v2881, %v2883
    %2885 = vrot.lane.b32.xlu0 %v2882, 32
    %v2886 = vpop.permute.xlu0 %2885
    %2887 = vrot.lane.b32.xlu0 %v2884, 32
    %v2888 = vpop.permute.xlu0 %2887
    %v2891 = vrot.slane %v2876, 2
    %v2892 = vrot.slane %v2872, 2
    %v2893 = vsel %vm537, %v2891, %v2892
    %v2894 = vrot.slane %v2877, 2
    %v2895 = vsel %vm537, %v2892, %v2894
    %2896 = vrot.lane.b32.xlu0 %v2893, 64
    %v2897 = vpop.permute.xlu0 %2896
    %2898 = vrot.lane.b32.xlu0 %v2895, 64
    %v2899 = vpop.permute.xlu0 %2898
    %v2902 = vrot.slane %v2876, 3
    %v2903 = vrot.slane %v2872, 3
    %v2904 = vsel %vm549, %v2902, %v2903
    %v2905 = vrot.slane %v2877, 3
    %v2906 = vsel %vm549, %v2903, %v2905
    %2907 = vrot.lane.b32.xlu0 %v2904, 96
    %v2908 = vpop.permute.xlu0 %2907
    %2909 = vrot.lane.b32.xlu0 %v2906, 96
    %v2910 = vpop.permute.xlu0 %2909
    %v2913 = vrot.slane %v2876, 4
    %v2914 = vrot.slane %v2872, 4
    %v2915 = vsel %vm561, %v2913, %v2914
    %v2916 = vrot.slane %v2877, 4
    %v2917 = vsel %vm561, %v2914, %v2916
    %v2920 = vrot.slane %v2876, 5
    %v2921 = vrot.slane %v2872, 5
    %v2922 = vsel %vm514, %v2920, %v2921
    %v2923 = vrot.slane %v2877, 5
    %v2924 = vsel %vm514, %v2921, %v2923
    %2925 = vrot.lane.b32.xlu0 %v2922, 32
    %v2926 = vpop.permute.xlu0 %2925
    %2927 = vrot.lane.b32.xlu0 %v2924, 32
    %v2928 = vpop.permute.xlu0 %2927
    %v2931 = vrot.slane %v2876, 6
    %v2932 = vrot.slane %v2872, 6
    %v2933 = vsel %vm584, %v2931, %v2932
    %v2934 = vrot.slane %v2877, 6
    %v2935 = vsel %vm584, %v2932, %v2934
    %2936 = vrot.lane.b32.xlu0 %v2933, 64
    %v2937 = vpop.permute.xlu0 %2936
    %2938 = vrot.lane.b32.xlu0 %v2935, 64
    %v2939 = vpop.permute.xlu0 %2938
    %v2942 = vsel %vm861, %v2876, %v2886
    %v2943 = vsel %vm861, %v2872, %v2888
    %v2944 = vsel %vm867, %v2942, %v2897
    %v2945 = vsel %vm867, %v2943, %v2899
    %v2946 = vsel %vm873, %v2944, %v2908
    %v2947 = vsel %vm873, %v2945, %v2910
    %v2948 = vsel %vm861, %v2915, %v2926
    %v2949 = vsel %vm861, %v2917, %v2928
    %v2950 = vsel %vm867, %v2948, %v2937
    %v2951 = vsel %vm867, %v2949, %v2939
    %v2952 = vpack.c.bf16 %v2863, %v2862
    %v2953 = vpack.c.bf16 %v2867, %v2866
    %v2954 = vpack.c.bf16 %v2947, %v2946
    %v2955 = vpack.c.bf16 %v2951, %v2950
    %v2957 = vperm.slane %v326, 0
    %v2987 = vunpack.c.l.b16 %v298
    %v2988 = vunpack.c.l.b16 %v299
    %v2989 = vunpack.c.l.b16 %v300
    %v2990 = vunpack.c.l.b16 %v301
    %v2991 = vunpack.c.l.b16 %v302
    %v2992 = vunpack.c.l.b16 %v303
    %v2993 = vunpack.c.l.b16 %v304
    %v2994 = vunpack.c.l.b16 %v305
    %v2995 = vunpack.c.l.b16 %v306
    %v2996 = vunpack.c.l.b16 %v307
    %v2997 = vunpack.c.l.b16 %v308
    %v2998 = vunpack.c.l.b16 %v309
    %v2999 = vunpack.c.l.b16 %v310
    %v3000 = vunpack.c.l.b16 %v311
    %v3001 = vunpack.c.l.b16 %v312
    %v3002 = vunpack.c.l.b16 %v313
    %v3003 = vunpack.c.l.b16 %v314
    %v3004 = vunpack.c.l.b16 %v315
    %v3005 = vunpack.c.l.b16 %v316
    %v3006 = vunpack.c.l.b16 %v317
    %v3007 = vunpack.c.l.b16 %v318
    %v3008 = vunpack.c.l.b16 %v319
    %v3009 = vunpack.c.l.b16 %v320
    %v3010 = vunpack.c.l.b16 %v321
    %v3011 = vunpack.c.l.b16 %v322
    %v3012 = vunpack.c.l.b16 %v323
    %v3013 = vunpack.c.l.b16 %v324
    %v3014 = vunpack.c.l.b16 %v325
    %v3015 = vpack.c.b16 %v2988, %v2987
    %v3016 = vpack.c.b16 %v2990, %v2989
    %v3017 = vpack.c.b16 %v2992, %v2991
    %v3018 = vpack.c.b16 %v2994, %v2993
    %v3019 = vpack.c.b16 %v2996, %v2995
    %v3020 = vpack.c.b16 %v2998, %v2997
    %v3021 = vpack.c.b16 %v3000, %v2999
    %v3022 = vpack.c.b16 %v3002, %v3001
    %v3023 = vpack.c.b16 %v3004, %v3003
    %v3024 = vpack.c.b16 %v3006, %v3005
    %v3025 = vpack.c.b16 %v3008, %v3007
    %v3026 = vpack.c.b16 %v3010, %v3009
    %v3027 = vpack.c.b16 %v3012, %v3011
    %v3028 = vpack.c.b16 %v3014, %v3013
    %v3044 = vsel %vm873, %v2953, 0
    %v3047 = vsel %vm873, %v2955, 0
    %3049 = vmatpush.bf16.msra.mxu0 %v3022
    %3050 = vmatpush.bf16.msra.mxu0 %v3021
    %3051 = vmatpush.bf16.msra.mxu0 %v3020
    %3052 = vmatpush.bf16.msra.mxu0 %v3019
    %3053 = vmatpush.bf16.msra.mxu0 %v3018
    %3054 = vmatpush.bf16.msra.mxu0 %v3017
    %3055 = vmatpush.bf16.msra.mxu0 %v3016
    %3056 = vmatpush.bf16.msra.mxu0 %v3015
    %3057 = vmatmul.bf16.gmra.mxu0 %v2952
    %v3058 = vpop.f32.mrf.mxu0
    %v3059 = vadd.f32 %v2957, %v3058
    %v3060 = vpop.f32.mrf.mxu0
    %v3061 = vadd.f32 %v2957, %v3060
    %3062 = vmatmul.bf16.gmra.mxu0 %v2954
    %v3063 = vpop.f32.mrf.mxu0
    %v3064 = vadd.f32 %v2957, %v3063
    %v3065 = vpop.f32.mrf.mxu0
    %v3066 = vadd.f32 %v2957, %v3065
    %3067 = vdwg.mxu0
    %3068 = vmatpush.bf16.msra.mxu0 0
    %3069 = vmatpush.bf16.msra.mxu0 0
    %3070 = vmatpush.bf16.msra.mxu0 %v3028
    %3071 = vmatpush.bf16.msra.mxu0 %v3027
    %3072 = vmatpush.bf16.msra.mxu0 %v3026
    %3073 = vmatpush.bf16.msra.mxu0 %v3025
    %3074 = vmatpush.bf16.msra.mxu0 %v3024
    %3075 = vmatpush.bf16.msra.mxu0 %v3023
    %3076 = vmatmul.bf16.gmra.mxu0 %v3044
    %v3077 = vpop.f32.mrf.mxu0
    %v3078 = vadd.f32 %v3059, %v3077
    %v3079 = vpop.f32.mrf.mxu0
    %v3080 = vadd.f32 %v3061, %v3079
    %3081 = vmatmul.bf16.gmra.mxu0 %v3047
    %v3082 = vpop.f32.mrf.mxu0
    %v3083 = vadd.f32 %v3064, %v3082
    %v3084 = vpop.f32.mrf.mxu0
    %v3085 = vadd.f32 %v3066, %v3084
    %3086 = vdwg.mxu0
    %v3087 = vmax.f32 %v3078, 0.0
    %v3088 = vmax.f32 %v3080, 0.0
    %v3089 = vmax.f32 %v3083, 0.0
    %v3090 = vmax.f32 %v3085, 0.0
    %v3091 = vpack.c.bf16 %v2781, %v2780
    %v3092 = vpack.c.bf16 %v2783, %v2782
    %v3094 = vperm.slane %v388, 0
    %v3100 = vunpack.c.l.b16 %v384
    %v3101 = vunpack.c.l.b16 %v385
    %v3102 = vunpack.c.l.b16 %v386
    %v3103 = vunpack.c.l.b16 %v387
    %v3104 = vpack.c.b16 %v3101, %v3100
    %v3105 = vpack.c.b16 %v3103, %v3102
    %v3109 = vsel %vm861, %v3091, 0
    %v3112 = vsel %vm861, %v3092, 0
    %3114 = vmatpush.bf16.msra.mxu0 0
    %3115 = vmatpush.bf16.msra.mxu0 0
    %3116 = vmatpush.bf16.msra.mxu0 0
    %3117 = vmatpush.bf16.msra.mxu0 0
    %3118 = vmatpush.bf16.msra.mxu0 0
    %3119 = vmatpush.bf16.msra.mxu0 0
    %3120 = vmatpush.bf16.msra.mxu0 %v3105
    %3121 = vmatpush.bf16.msra.mxu0 %v3104
    %3122 = vmatmul.bf16.gmra.mxu0 %v3109
    %v3123 = vpop.f32.mrf.mxu0
    %v3124 = vadd.f32 %v3094, %v3123
    %v3125 = vpop.f32.mrf.mxu0
    %v3126 = vadd.f32 %v3094, %v3125
    %3127 = vmatmul.bf16.gmra.mxu0 %v3112
    %v3128 = vpop.f32.mrf.mxu0
    %v3129 = vadd.f32 %v3094, %v3128
    %v3130 = vpop.f32.mrf.mxu0
    %v3131 = vadd.f32 %v3094, %v3130
    %3132 = vdwg.mxu0
    %v3135 = vrot.slane %v3087, 5
    %v3136 = vrot.slane %v3088, 5
    %v3137 = vsel %vm514, %v3135, %v3136
    %v3141 = vsel %vm514, 0.0, %v3135
    %v3142 = vsel %vm514, %v3136, 0.0
    %v3145 = vrot.slane %v3141, 1
    %v3146 = vrot.slane %v3137, 1
    %v3147 = vsel %vm525, %v3145, %v3146
    %v3148 = vrot.slane %v3142, 1
    %v3149 = vsel %vm525, %v3146, %v3148
    %3150 = vrot.lane.b32.xlu0 %v3147, 64
    %v3151 = vpop.permute.xlu0 %3150
    %3152 = vrot.lane.b32.xlu0 %v3149, 64
    %v3153 = vpop.permute.xlu0 %3152
    %v3156 = vrot.slane %v3141, 2
    %v3157 = vrot.slane %v3137, 2
    %v3158 = vsel %vm537, %v3156, %v3157
    %v3159 = vrot.slane %v3142, 2
    %v3160 = vsel %vm537, %v3157, %v3159
    %v3163 = vrot.slane %v3141, 3
    %v3164 = vrot.slane %v3137, 3
    %v3165 = vsel %vm549, %v3163, %v3164
    %v3166 = vrot.slane %v3142, 3
    %v3167 = vsel %vm549, %v3164, %v3166
    %3168 = vrot.lane.b32.xlu0 %v3165, 64
    %v3169 = vpop.permute.xlu0 %3168
    %3170 = vrot.lane.b32.xlu0 %v3167, 64
    %v3171 = vpop.permute.xlu0 %3170
    %v3174 = vrot.slane %v3141, 4
    %v3175 = vrot.slane %v3137, 4
    %v3176 = vsel %vm561, %v3174, %v3175
    %v3177 = vrot.slane %v3142, 4
    %v3178 = vsel %vm561, %v3175, %v3177
    %v3181 = vrot.slane %v3141, 5
    %v3182 = vrot.slane %v3137, 5
    %v3183 = vsel %vm514, %v3181, %v3182
    %v3184 = vrot.slane %v3142, 5
    %v3185 = vsel %vm514, %v3182, %v3184
    %3186 = vrot.lane.b32.xlu0 %v3183, 64
    %v3187 = vpop.permute.xlu0 %3186
    %3188 = vrot.lane.b32.xlu0 %v3185, 64
    %v3189 = vpop.permute.xlu0 %3188
    %v3192 = vrot.slane %v3141, 6
    %v3193 = vrot.slane %v3137, 6
    %v3194 = vsel %vm584, %v3192, %v3193
    %v3195 = vrot.slane %v3142, 6
    %v3196 = vsel %vm584, %v3193, %v3195
    %v3199 = vsel %vm867, %v3141, %v3151
    %v3200 = vsel %vm867, %v3137, %v3153
    %v3201 = vsel %vm867, %v3158, %v3169
    %v3202 = vsel %vm867, %v3160, %v3171
    %v3203 = vsel %vm867, %v3176, %v3187
    %v3204 = vsel %vm867, %v3178, %v3189
    %v3207 = vrot.slane %v3089, 5
    %v3208 = vrot.slane %v3090, 5
    %v3209 = vsel %vm514, %v3207, %v3208
    %v3213 = vsel %vm514, 0.0, %v3207
    %v3214 = vsel %vm514, %v3208, 0.0
    %v3217 = vrot.slane %v3213, 1
    %v3218 = vrot.slane %v3209, 1
    %v3219 = vsel %vm525, %v3217, %v3218
    %v3220 = vrot.slane %v3214, 1
    %v3221 = vsel %vm525, %v3218, %v3220
    %3222 = vrot.lane.b32.xlu0 %v3219, 64
    %v3223 = vpop.permute.xlu0 %3222
    %3224 = vrot.lane.b32.xlu0 %v3221, 64
    %v3225 = vpop.permute.xlu0 %3224
    %v3228 = vrot.slane %v3213, 2
    %v3229 = vrot.slane %v3209, 2
    %v3230 = vsel %vm537, %v3228, %v3229
    %v3231 = vrot.slane %v3214, 2
    %v3232 = vsel %vm537, %v3229, %v3231
    %v3235 = vrot.slane %v3213, 3
    %v3236 = vrot.slane %v3209, 3
    %v3237 = vsel %vm549, %v3235, %v3236
    %v3238 = vrot.slane %v3214, 3
    %v3239 = vsel %vm549, %v3236, %v3238
    %3240 = vrot.lane.b32.xlu0 %v3237, 64
    %v3241 = vpop.permute.xlu0 %3240
    %3242 = vrot.lane.b32.xlu0 %v3239, 64
    %v3243 = vpop.permute.xlu0 %3242
    %v3246 = vrot.slane %v3213, 4
    %v3247 = vrot.slane %v3209, 4
    %v3248 = vsel %vm561, %v3246, %v3247
    %v3249 = vrot.slane %v3214, 4
    %v3250 = vsel %vm561, %v3247, %v3249
    %v3253 = vrot.slane %v3213, 5
    %v3254 = vrot.slane %v3209, 5
    %v3255 = vsel %vm514, %v3253, %v3254
    %v3256 = vrot.slane %v3214, 5
    %v3257 = vsel %vm514, %v3254, %v3256
    %3258 = vrot.lane.b32.xlu0 %v3255, 64
    %v3259 = vpop.permute.xlu0 %3258
    %3260 = vrot.lane.b32.xlu0 %v3257, 64
    %v3261 = vpop.permute.xlu0 %3260
    %v3264 = vrot.slane %v3213, 6
    %v3265 = vrot.slane %v3209, 6
    %v3266 = vsel %vm584, %v3264, %v3265
    %v3267 = vrot.slane %v3214, 6
    %v3268 = vsel %vm584, %v3265, %v3267
    %v3271 = vsel %vm867, %v3213, %v3223
    %v3272 = vsel %vm867, %v3209, %v3225
    %v3273 = vsel %vm867, %v3230, %v3241
    %v3274 = vsel %vm867, %v3232, %v3243
    %v3275 = vsel %vm867, %v3248, %v3259
    %v3276 = vsel %vm867, %v3250, %v3261
    %v3277 = vpack.c.bf16 %v3200, %v3199
    %v3278 = vpack.c.bf16 %v3202, %v3201
    %v3279 = vpack.c.bf16 %v3204, %v3203
    %v3280 = vpack.c.bf16 %v3196, %v3194
    %v3281 = vpack.c.bf16 %v3272, %v3271
    %v3282 = vpack.c.bf16 %v3274, %v3273
    %v3283 = vpack.c.bf16 %v3276, %v3275
    %v3284 = vpack.c.bf16 %v3268, %v3266
    %v3286 = vperm.slane %v383, 0
    %v3344 = vunpack.c.l.b16 %v327
    %v3345 = vunpack.c.l.b16 %v328
    %v3346 = vunpack.c.l.b16 %v329
    %v3347 = vunpack.c.l.b16 %v330
    %v3348 = vunpack.c.l.b16 %v331
    %v3349 = vunpack.c.l.b16 %v332
    %v3350 = vunpack.c.l.b16 %v333
    %v3351 = vunpack.c.l.b16 %v334
    %v3352 = vunpack.c.l.b16 %v335
    %v3353 = vunpack.c.l.b16 %v336
    %v3354 = vunpack.c.l.b16 %v337
    %v3355 = vunpack.c.l.b16 %v338
    %v3356 = vunpack.c.l.b16 %v339
    %v3357 = vunpack.c.l.b16 %v340
    %v3358 = vunpack.c.l.b16 %v341
    %v3359 = vunpack.c.l.b16 %v342
    %v3360 = vunpack.c.l.b16 %v343
    %v3361 = vunpack.c.l.b16 %v344
    %v3362 = vunpack.c.l.b16 %v345
    %v3363 = vunpack.c.l.b16 %v346
    %v3364 = vunpack.c.l.b16 %v347
    %v3365 = vunpack.c.l.b16 %v348
    %v3366 = vunpack.c.l.b16 %v349
    %v3367 = vunpack.c.l.b16 %v350
    %v3368 = vunpack.c.l.b16 %v351
    %v3369 = vunpack.c.l.b16 %v352
    %v3370 = vunpack.c.l.b16 %v353
    %v3371 = vunpack.c.l.b16 %v354
    %v3372 = vunpack.c.l.b16 %v355
    %v3373 = vunpack.c.l.b16 %v356
    %v3374 = vunpack.c.l.b16 %v357
    %v3375 = vunpack.c.l.b16 %v358
    %v3376 = vunpack.c.l.b16 %v359
    %v3377 = vunpack.c.l.b16 %v360
    %v3378 = vunpack.c.l.b16 %v361
    %v3379 = vunpack.c.l.b16 %v362
    %v3380 = vunpack.c.l.b16 %v363
    %v3381 = vunpack.c.l.b16 %v364
    %v3382 = vunpack.c.l.b16 %v365
    %v3383 = vunpack.c.l.b16 %v366
    %v3384 = vunpack.c.l.b16 %v367
    %v3385 = vunpack.c.l.b16 %v368
    %v3386 = vunpack.c.l.b16 %v369
    %v3387 = vunpack.c.l.b16 %v370
    %v3388 = vunpack.c.l.b16 %v371
    %v3389 = vunpack.c.l.b16 %v372
    %v3390 = vunpack.c.l.b16 %v373
    %v3391 = vunpack.c.l.b16 %v374
    %v3392 = vunpack.c.l.b16 %v375
    %v3393 = vunpack.c.l.b16 %v376
    %v3394 = vunpack.c.l.b16 %v377
    %v3395 = vunpack.c.l.b16 %v378
    %v3396 = vunpack.c.l.b16 %v379
    %v3397 = vunpack.c.l.b16 %v380
    %v3398 = vunpack.c.l.b16 %v381
    %v3399 = vunpack.c.l.b16 %v382
    %v3400 = vpack.c.b16 %v3345, %v3344
    %v3401 = vpack.c.b16 %v3347, %v3346
    %v3402 = vpack.c.b16 %v3349, %v3348
    %v3403 = vpack.c.b16 %v3351, %v3350
    %v3404 = vpack.c.b16 %v3353, %v3352
    %v3405 = vpack.c.b16 %v3355, %v3354
    %v3406 = vpack.c.b16 %v3357, %v3356
    %v3407 = vpack.c.b16 %v3359, %v3358
    %v3408 = vpack.c.b16 %v3361, %v3360
    %v3409 = vpack.c.b16 %v3363, %v3362
    %v3410 = vpack.c.b16 %v3365, %v3364
    %v3411 = vpack.c.b16 %v3367, %v3366
    %v3412 = vpack.c.b16 %v3369, %v3368
    %v3413 = vpack.c.b16 %v3371, %v3370
    %v3414 = vpack.c.b16 %v3373, %v3372
    %v3415 = vpack.c.b16 %v3375, %v3374
    %v3416 = vpack.c.b16 %v3377, %v3376
    %v3417 = vpack.c.b16 %v3379, %v3378
    %v3418 = vpack.c.b16 %v3381, %v3380
    %v3419 = vpack.c.b16 %v3383, %v3382
    %v3420 = vpack.c.b16 %v3385, %v3384
    %v3421 = vpack.c.b16 %v3387, %v3386
    %v3422 = vpack.c.b16 %v3389, %v3388
    %v3423 = vpack.c.b16 %v3391, %v3390
    %v3424 = vpack.c.b16 %v3393, %v3392
    %v3425 = vpack.c.b16 %v3395, %v3394
    %v3426 = vpack.c.b16 %v3397, %v3396
    %v3427 = vpack.c.b16 %v3399, %v3398
    %v3457 = vsel %vm867, %v3280, 0
    %v3460 = vsel %vm867, %v3284, 0
    %3462 = vmatpush.bf16.msra.mxu0 %v3407
    %3463 = vmatpush.bf16.msra.mxu0 %v3406
    %3464 = vmatpush.bf16.msra.mxu0 %v3405
    %3465 = vmatpush.bf16.msra.mxu0 %v3404
    %3466 = vmatpush.bf16.msra.mxu0 %v3403
    %3467 = vmatpush.bf16.msra.mxu0 %v3402
    %3468 = vmatpush.bf16.msra.mxu0 %v3401
    %3469 = vmatpush.bf16.msra.mxu0 %v3400
    %3470 = vmatmul.bf16.gmra.mxu0 %v3277
    %v3471 = vpop.f32.mrf.mxu0
    %v3472 = vadd.f32 %v3286, %v3471
    %v3473 = vpop.f32.mrf.mxu0
    %v3474 = vadd.f32 %v3286, %v3473
    %3475 = vmatmul.bf16.gmra.mxu0 %v3281
    %v3476 = vpop.f32.mrf.mxu0
    %v3477 = vadd.f32 %v3286, %v3476
    %v3478 = vpop.f32.mrf.mxu0
    %v3479 = vadd.f32 %v3286, %v3478
    %3480 = vdwg.mxu0
    %3481 = vmatpush.bf16.msra.mxu0 %v3415
    %3482 = vmatpush.bf16.msra.mxu0 %v3414
    %3483 = vmatpush.bf16.msra.mxu0 %v3413
    %3484 = vmatpush.bf16.msra.mxu0 %v3412
    %3485 = vmatpush.bf16.msra.mxu0 %v3411
    %3486 = vmatpush.bf16.msra.mxu0 %v3410
    %3487 = vmatpush.bf16.msra.mxu0 %v3409
    %3488 = vmatpush.bf16.msra.mxu0 %v3408
    %3489 = vmatmul.bf16.gmra.mxu0 %v3278
    %v3490 = vpop.f32.mrf.mxu0
    %v3491 = vadd.f32 %v3472, %v3490
    %v3492 = vpop.f32.mrf.mxu0
    %v3493 = vadd.f32 %v3474, %v3492
    %3494 = vmatmul.bf16.gmra.mxu0 %v3282
    %v3495 = vpop.f32.mrf.mxu0
    %v3496 = vadd.f32 %v3477, %v3495
    %v3497 = vpop.f32.mrf.mxu0
    %v3498 = vadd.f32 %v3479, %v3497
    %3499 = vdwg.mxu0
    %3500 = vmatpush.bf16.msra.mxu0 %v3423
    %3501 = vmatpush.bf16.msra.mxu0 %v3422
    %3502 = vmatpush.bf16.msra.mxu0 %v3421
    %3503 = vmatpush.bf16.msra.mxu0 %v3420
    %3504 = vmatpush.bf16.msra.mxu0 %v3419
    %3505 = vmatpush.bf16.msra.mxu0 %v3418
    %3506 = vmatpush.bf16.msra.mxu0 %v3417
    %3507 = vmatpush.bf16.msra.mxu0 %v3416
    %3508 = vmatmul.bf16.gmra.mxu0 %v3279
    %v3509 = vpop.f32.mrf.mxu0
    %v3510 = vadd.f32 %v3491, %v3509
    %v3511 = vpop.f32.mrf.mxu0
    %v3512 = vadd.f32 %v3493, %v3511
    %3513 = vmatmul.bf16.gmra.mxu0 %v3283
    %v3514 = vpop.f32.mrf.mxu0
    %v3515 = vadd.f32 %v3496, %v3514
    %v3516 = vpop.f32.mrf.mxu0
    %v3517 = vadd.f32 %v3498, %v3516
    %3518 = vdwg.mxu0
    %3519 = vmatpush.bf16.msra.mxu0 0
    %3520 = vmatpush.bf16.msra.mxu0 0
    %3521 = vmatpush.bf16.msra.mxu0 0
    %3522 = vmatpush.bf16.msra.mxu0 0
    %3523 = vmatpush.bf16.msra.mxu0 %v3427
    %3524 = vmatpush.bf16.msra.mxu0 %v3426
    %3525 = vmatpush.bf16.msra.mxu0 %v3425
    %3526 = vmatpush.bf16.msra.mxu0 %v3424
    %3527 = vmatmul.bf16.gmra.mxu0 %v3457
    %v3528 = vpop.f32.mrf.mxu0
    %v3529 = vadd.f32 %v3510, %v3528
    %v3530 = vpop.f32.mrf.mxu0
    %v3531 = vadd.f32 %v3512, %v3530
    %3532 = vmatmul.bf16.gmra.mxu0 %v3460
    %v3533 = vpop.f32.mrf.mxu0
    %v3534 = vadd.f32 %v3515, %v3533
    %v3535 = vpop.f32.mrf.mxu0
    %v3536 = vadd.f32 %v3517, %v3535
    %3537 = vdwg.mxu0
    %v3538 = vadd.f32 %v3529, %v3124
    %v3539 = vadd.f32 %v3531, %v3126
    %v3540 = vadd.f32 %v3534, %v3129
    %v3541 = vadd.f32 %v3536, %v3131
    %v3542 = vmax.f32 %v3538, 0.0
    %v3543 = vmax.f32 %v3539, 0.0
    %v3544 = vmax.f32 %v3540, 0.0
    %v3545 = vmax.f32 %v3541, 0.0
    %v3548 = vrot.slane %v3542, 5
    %v3549 = vrot.slane %v3543, 5
    %v3550 = vsel %vm514, %v3548, %v3549
    %v3554 = vsel %vm514, 0.0, %v3548
    %v3555 = vsel %vm514, %v3549, 0.0
    %v3558 = vrot.slane %v3554, 1
    %v3559 = vrot.slane %v3550, 1
    %v3560 = vsel %vm525, %v3558, %v3559
    %v3561 = vrot.slane %v3555, 1
    %v3562 = vsel %vm525, %v3559, %v3561
    %3563 = vrot.lane.b32.xlu0 %v3560, 64
    %v3564 = vpop.permute.xlu0 %3563
    %3565 = vrot.lane.b32.xlu0 %v3562, 64
    %v3566 = vpop.permute.xlu0 %3565
    %v3569 = vrot.slane %v3554, 2
    %v3570 = vrot.slane %v3550, 2
    %v3571 = vsel %vm537, %v3569, %v3570
    %v3572 = vrot.slane %v3555, 2
    %v3573 = vsel %vm537, %v3570, %v3572
    %v3576 = vrot.slane %v3554, 3
    %v3577 = vrot.slane %v3550, 3
    %v3578 = vsel %vm549, %v3576, %v3577
    %v3579 = vrot.slane %v3555, 3
    %v3580 = vsel %vm549, %v3577, %v3579
    %3581 = vrot.lane.b32.xlu0 %v3578, 64
    %v3582 = vpop.permute.xlu0 %3581
    %3583 = vrot.lane.b32.xlu0 %v3580, 64
    %v3584 = vpop.permute.xlu0 %3583
    %v3587 = vrot.slane %v3554, 4
    %v3588 = vrot.slane %v3550, 4
    %v3589 = vsel %vm561, %v3587, %v3588
    %v3590 = vrot.slane %v3555, 4
    %v3591 = vsel %vm561, %v3588, %v3590
    %v3594 = vrot.slane %v3554, 5
    %v3595 = vrot.slane %v3550, 5
    %v3596 = vsel %vm514, %v3594, %v3595
    %v3597 = vrot.slane %v3555, 5
    %v3598 = vsel %vm514, %v3595, %v3597
    %3599 = vrot.lane.b32.xlu0 %v3596, 64
    %v3600 = vpop.permute.xlu0 %3599
    %3601 = vrot.lane.b32.xlu0 %v3598, 64
    %v3602 = vpop.permute.xlu0 %3601
    %v3605 = vrot.slane %v3554, 6
    %v3606 = vrot.slane %v3550, 6
    %v3607 = vsel %vm584, %v3605, %v3606
    %v3608 = vrot.slane %v3555, 6
    %v3609 = vsel %vm584, %v3606, %v3608
    %v3612 = vsel %vm867, %v3554, %v3564
    %v3613 = vsel %vm867, %v3550, %v3566
    %v3614 = vsel %vm867, %v3571, %v3582
    %v3615 = vsel %vm867, %v3573, %v3584
    %v3616 = vsel %vm867, %v3589, %v3600
    %v3617 = vsel %vm867, %v3591, %v3602
    %v3620 = vrot.slane %v3544, 5
    %v3621 = vrot.slane %v3545, 5
    %v3622 = vsel %vm514, %v3620, %v3621
    %v3626 = vsel %vm514, 0.0, %v3620
    %v3627 = vsel %vm514, %v3621, 0.0
    %v3630 = vrot.slane %v3626, 1
    %v3631 = vrot.slane %v3622, 1
    %v3632 = vsel %vm525, %v3630, %v3631
    %v3633 = vrot.slane %v3627, 1
    %v3634 = vsel %vm525, %v3631, %v3633
    %3635 = vrot.lane.b32.xlu0 %v3632, 64
    %v3636 = vpop.permute.xlu0 %3635
    %3637 = vrot.lane.b32.xlu0 %v3634, 64
    %v3638 = vpop.permute.xlu0 %3637
    %v3641 = vrot.slane %v3626, 2
    %v3642 = vrot.slane %v3622, 2
    %v3643 = vsel %vm537, %v3641, %v3642
    %v3644 = vrot.slane %v3627, 2
    %v3645 = vsel %vm537, %v3642, %v3644
    %v3648 = vrot.slane %v3626, 3
    %v3649 = vrot.slane %v3622, 3
    %v3650 = vsel %vm549, %v3648, %v3649
    %v3651 = vrot.slane %v3627, 3
    %v3652 = vsel %vm549, %v3649, %v3651
    %3653 = vrot.lane.b32.xlu0 %v3650, 64
    %v3654 = vpop.permute.xlu0 %3653
    %3655 = vrot.lane.b32.xlu0 %v3652, 64
    %v3656 = vpop.permute.xlu0 %3655
    %v3659 = vrot.slane %v3626, 4
    %v3660 = vrot.slane %v3622, 4
    %v3661 = vsel %vm561, %v3659, %v3660
    %v3662 = vrot.slane %v3627, 4
    %v3663 = vsel %vm561, %v3660, %v3662
    %v3666 = vrot.slane %v3626, 5
    %v3667 = vrot.slane %v3622, 5
    %v3668 = vsel %vm514, %v3666, %v3667
    %v3669 = vrot.slane %v3627, 5
    %v3670 = vsel %vm514, %v3667, %v3669
    %3671 = vrot.lane.b32.xlu0 %v3668, 64
    %v3672 = vpop.permute.xlu0 %3671
    %3673 = vrot.lane.b32.xlu0 %v3670, 64
    %v3674 = vpop.permute.xlu0 %3673
    %v3677 = vrot.slane %v3626, 6
    %v3678 = vrot.slane %v3622, 6
    %v3679 = vsel %vm584, %v3677, %v3678
    %v3680 = vrot.slane %v3627, 6
    %v3681 = vsel %vm584, %v3678, %v3680
    %v3684 = vsel %vm867, %v3626, %v3636
    %v3685 = vsel %vm867, %v3622, %v3638
    %v3686 = vsel %vm867, %v3643, %v3654
    %v3687 = vsel %vm867, %v3645, %v3656
    %v3688 = vsel %vm867, %v3661, %v3672
    %v3689 = vsel %vm867, %v3663, %v3674
    %v3690 = vpack.c.bf16 %v3613, %v3612
    %v3691 = vpack.c.bf16 %v3615, %v3614
    %v3692 = vpack.c.bf16 %v3617, %v3616
    %v3693 = vpack.c.bf16 %v3609, %v3607
    %v3694 = vpack.c.bf16 %v3685, %v3684
    %v3695 = vpack.c.bf16 %v3687, %v3686
    %v3696 = vpack.c.bf16 %v3689, %v3688
    %v3697 = vpack.c.bf16 %v3681, %v3679
    %v3699 = vperm.slane %v445, 0
    %v3757 = vunpack.c.l.b16 %v389
    %v3758 = vunpack.c.l.b16 %v390
    %v3759 = vunpack.c.l.b16 %v391
    %v3760 = vunpack.c.l.b16 %v392
    %v3761 = vunpack.c.l.b16 %v393
    %v3762 = vunpack.c.l.b16 %v394
    %v3763 = vunpack.c.l.b16 %v395
    %v3764 = vunpack.c.l.b16 %v396
    %v3765 = vunpack.c.l.b16 %v397
    %v3766 = vunpack.c.l.b16 %v398
    %v3767 = vunpack.c.l.b16 %v399
    %v3768 = vunpack.c.l.b16 %v400
    %v3769 = vunpack.c.l.b16 %v401
    %v3770 = vunpack.c.l.b16 %v402
    %v3771 = vunpack.c.l.b16 %v403
    %v3772 = vunpack.c.l.b16 %v404
    %v3773 = vunpack.c.l.b16 %v405
    %v3774 = vunpack.c.l.b16 %v406
    %v3775 = vunpack.c.l.b16 %v407
    %v3776 = vunpack.c.l.b16 %v408
    %v3777 = vunpack.c.l.b16 %v409
    %v3778 = vunpack.c.l.b16 %v410
    %v3779 = vunpack.c.l.b16 %v411
    %v3780 = vunpack.c.l.b16 %v412
    %v3781 = vunpack.c.l.b16 %v413
    %v3782 = vunpack.c.l.b16 %v414
    %v3783 = vunpack.c.l.b16 %v415
    %v3784 = vunpack.c.l.b16 %v416
    %v3785 = vunpack.c.l.b16 %v417
    %v3786 = vunpack.c.l.b16 %v418
    %v3787 = vunpack.c.l.b16 %v419
    %v3788 = vunpack.c.l.b16 %v420
    %v3789 = vunpack.c.l.b16 %v421
    %v3790 = vunpack.c.l.b16 %v422
    %v3791 = vunpack.c.l.b16 %v423
    %v3792 = vunpack.c.l.b16 %v424
    %v3793 = vunpack.c.l.b16 %v425
    %v3794 = vunpack.c.l.b16 %v426
    %v3795 = vunpack.c.l.b16 %v427
    %v3796 = vunpack.c.l.b16 %v428
    %v3797 = vunpack.c.l.b16 %v429
    %v3798 = vunpack.c.l.b16 %v430
    %v3799 = vunpack.c.l.b16 %v431
    %v3800 = vunpack.c.l.b16 %v432
    %v3801 = vunpack.c.l.b16 %v433
    %v3802 = vunpack.c.l.b16 %v434
    %v3803 = vunpack.c.l.b16 %v435
    %v3804 = vunpack.c.l.b16 %v436
    %v3805 = vunpack.c.l.b16 %v437
    %v3806 = vunpack.c.l.b16 %v438
    %v3807 = vunpack.c.l.b16 %v439
    %v3808 = vunpack.c.l.b16 %v440
    %v3809 = vunpack.c.l.b16 %v441
    %v3810 = vunpack.c.l.b16 %v442
    %v3811 = vunpack.c.l.b16 %v443
    %v3812 = vunpack.c.l.b16 %v444
    %v3813 = vpack.c.b16 %v3758, %v3757
    %v3814 = vpack.c.b16 %v3760, %v3759
    %v3815 = vpack.c.b16 %v3762, %v3761
    %v3816 = vpack.c.b16 %v3764, %v3763
    %v3817 = vpack.c.b16 %v3766, %v3765
    %v3818 = vpack.c.b16 %v3768, %v3767
    %v3819 = vpack.c.b16 %v3770, %v3769
    %v3820 = vpack.c.b16 %v3772, %v3771
    %v3821 = vpack.c.b16 %v3774, %v3773
    %v3822 = vpack.c.b16 %v3776, %v3775
    %v3823 = vpack.c.b16 %v3778, %v3777
    %v3824 = vpack.c.b16 %v3780, %v3779
    %v3825 = vpack.c.b16 %v3782, %v3781
    %v3826 = vpack.c.b16 %v3784, %v3783
    %v3827 = vpack.c.b16 %v3786, %v3785
    %v3828 = vpack.c.b16 %v3788, %v3787
    %v3829 = vpack.c.b16 %v3790, %v3789
    %v3830 = vpack.c.b16 %v3792, %v3791
    %v3831 = vpack.c.b16 %v3794, %v3793
    %v3832 = vpack.c.b16 %v3796, %v3795
    %v3833 = vpack.c.b16 %v3798, %v3797
    %v3834 = vpack.c.b16 %v3800, %v3799
    %v3835 = vpack.c.b16 %v3802, %v3801
    %v3836 = vpack.c.b16 %v3804, %v3803
    %v3837 = vpack.c.b16 %v3806, %v3805
    %v3838 = vpack.c.b16 %v3808, %v3807
    %v3839 = vpack.c.b16 %v3810, %v3809
    %v3840 = vpack.c.b16 %v3812, %v3811
    %v3870 = vsel %vm867, %v3693, 0
    %v3873 = vsel %vm867, %v3697, 0
    %3875 = vmatpush.bf16.msra.mxu0 %v3820
    %3876 = vmatpush.bf16.msra.mxu0 %v3819
    %3877 = vmatpush.bf16.msra.mxu0 %v3818
    %3878 = vmatpush.bf16.msra.mxu0 %v3817
    %3879 = vmatpush.bf16.msra.mxu0 %v3816
    %3880 = vmatpush.bf16.msra.mxu0 %v3815
    %3881 = vmatpush.bf16.msra.mxu0 %v3814
    %3882 = vmatpush.bf16.msra.mxu0 %v3813
    %3883 = vmatmul.bf16.gmra.mxu0 %v3690
    %v3884 = vpop.f32.mrf.mxu0
    %v3885 = vadd.f32 %v3699, %v3884
    %v3886 = vpop.f32.mrf.mxu0
    %v3887 = vadd.f32 %v3699, %v3886
    %3888 = vmatmul.bf16.gmra.mxu0 %v3694
    %v3889 = vpop.f32.mrf.mxu0
    %v3890 = vadd.f32 %v3699, %v3889
    %v3891 = vpop.f32.mrf.mxu0
    %v3892 = vadd.f32 %v3699, %v3891
    %3893 = vdwg.mxu0
    %3894 = vmatpush.bf16.msra.mxu0 %v3828
    %3895 = vmatpush.bf16.msra.mxu0 %v3827
    %3896 = vmatpush.bf16.msra.mxu0 %v3826
    %3897 = vmatpush.bf16.msra.mxu0 %v3825
    %3898 = vmatpush.bf16.msra.mxu0 %v3824
    %3899 = vmatpush.bf16.msra.mxu0 %v3823
    %3900 = vmatpush.bf16.msra.mxu0 %v3822
    %3901 = vmatpush.bf16.msra.mxu0 %v3821
    %3902 = vmatmul.bf16.gmra.mxu0 %v3691
    %v3903 = vpop.f32.mrf.mxu0
    %v3904 = vadd.f32 %v3885, %v3903
    %v3905 = vpop.f32.mrf.mxu0
    %v3906 = vadd.f32 %v3887, %v3905
    %3907 = vmatmul.bf16.gmra.mxu0 %v3695
    %v3908 = vpop.f32.mrf.mxu0
    %v3909 = vadd.f32 %v3890, %v3908
    %v3910 = vpop.f32.mrf.mxu0
    %v3911 = vadd.f32 %v3892, %v3910
    %3912 = vdwg.mxu0
    %3913 = vmatpush.bf16.msra.mxu0 %v3836
    %3914 = vmatpush.bf16.msra.mxu0 %v3835
    %3915 = vmatpush.bf16.msra.mxu0 %v3834
    %3916 = vmatpush.bf16.msra.mxu0 %v3833
    %3917 = vmatpush.bf16.msra.mxu0 %v3832
    %3918 = vmatpush.bf16.msra.mxu0 %v3831
    %3919 = vmatpush.bf16.msra.mxu0 %v3830
    %3920 = vmatpush.bf16.msra.mxu0 %v3829
    %3921 = vmatmul.bf16.gmra.mxu0 %v3692
    %v3922 = vpop.f32.mrf.mxu0
    %v3923 = vadd.f32 %v3904, %v3922
    %v3924 = vpop.f32.mrf.mxu0
    %v3925 = vadd.f32 %v3906, %v3924
    %3926 = vmatmul.bf16.gmra.mxu0 %v3696
    %v3927 = vpop.f32.mrf.mxu0
    %v3928 = vadd.f32 %v3909, %v3927
    %v3929 = vpop.f32.mrf.mxu0
    %v3930 = vadd.f32 %v3911, %v3929
    %3931 = vdwg.mxu0
    %3932 = vmatpush.bf16.msra.mxu0 0
    %3933 = vmatpush.bf16.msra.mxu0 0
    %3934 = vmatpush.bf16.msra.mxu0 0
    %3935 = vmatpush.bf16.msra.mxu0 0
    %3936 = vmatpush.bf16.msra.mxu0 %v3840
    %3937 = vmatpush.bf16.msra.mxu0 %v3839
    %3938 = vmatpush.bf16.msra.mxu0 %v3838
    %3939 = vmatpush.bf16.msra.mxu0 %v3837
    %3940 = vmatmul.bf16.gmra.mxu0 %v3870
    %v3941 = vpop.f32.mrf.mxu0
    %v3942 = vadd.f32 %v3923, %v3941
    %v3943 = vpop.f32.mrf.mxu0
    %v3944 = vadd.f32 %v3925, %v3943
    %3945 = vmatmul.bf16.gmra.mxu0 %v3873
    %v3946 = vpop.f32.mrf.mxu0
    %v3947 = vadd.f32 %v3928, %v3946
    %v3948 = vpop.f32.mrf.mxu0
    %v3949 = vadd.f32 %v3930, %v3948
    %3950 = vdwg.mxu0
    %v3951 = vmax.f32 %v3942, 0.0
    %v3952 = vmax.f32 %v3944, 0.0
    %v3953 = vmax.f32 %v3947, 0.0
    %v3954 = vmax.f32 %v3949, 0.0
    %v3957 = vrot.slane %v3951, 5
    %v3958 = vrot.slane %v3952, 5
    %v3959 = vsel %vm514, %v3957, %v3958
    %v3963 = vsel %vm514, 0.0, %v3957
    %v3964 = vsel %vm514, %v3958, 0.0
    %v3967 = vrot.slane %v3963, 1
    %v3968 = vrot.slane %v3959, 1
    %v3969 = vsel %vm525, %v3967, %v3968
    %v3970 = vrot.slane %v3964, 1
    %v3971 = vsel %vm525, %v3968, %v3970
    %3972 = vrot.lane.b32.xlu0 %v3969, 64
    %v3973 = vpop.permute.xlu0 %3972
    %3974 = vrot.lane.b32.xlu0 %v3971, 64
    %v3975 = vpop.permute.xlu0 %3974
    %v3978 = vrot.slane %v3963, 2
    %v3979 = vrot.slane %v3959, 2
    %v3980 = vsel %vm537, %v3978, %v3979
    %v3981 = vrot.slane %v3964, 2
    %v3982 = vsel %vm537, %v3979, %v3981
    %v3985 = vrot.slane %v3963, 3
    %v3986 = vrot.slane %v3959, 3
    %v3987 = vsel %vm549, %v3985, %v3986
    %v3988 = vrot.slane %v3964, 3
    %v3989 = vsel %vm549, %v3986, %v3988
    %3990 = vrot.lane.b32.xlu0 %v3987, 64
    %v3991 = vpop.permute.xlu0 %3990
    %3992 = vrot.lane.b32.xlu0 %v3989, 64
    %v3993 = vpop.permute.xlu0 %3992
    %v3996 = vrot.slane %v3963, 4
    %v3997 = vrot.slane %v3959, 4
    %v3998 = vsel %vm561, %v3996, %v3997
    %v3999 = vrot.slane %v3964, 4
    %v4000 = vsel %vm561, %v3997, %v3999
    %v4003 = vrot.slane %v3963, 5
    %v4004 = vrot.slane %v3959, 5
    %v4005 = vsel %vm514, %v4003, %v4004
    %v4006 = vrot.slane %v3964, 5
    %v4007 = vsel %vm514, %v4004, %v4006
    %4008 = vrot.lane.b32.xlu0 %v4005, 64
    %v4009 = vpop.permute.xlu0 %4008
    %4010 = vrot.lane.b32.xlu0 %v4007, 64
    %v4011 = vpop.permute.xlu0 %4010
    %v4014 = vrot.slane %v3963, 6
    %v4015 = vrot.slane %v3959, 6
    %v4016 = vsel %vm584, %v4014, %v4015
    %v4017 = vrot.slane %v3964, 6
    %v4018 = vsel %vm584, %v4015, %v4017
    %v4021 = vsel %vm867, %v3963, %v3973
    %v4022 = vsel %vm867, %v3959, %v3975
    %v4023 = vsel %vm867, %v3980, %v3991
    %v4024 = vsel %vm867, %v3982, %v3993
    %v4025 = vsel %vm867, %v3998, %v4009
    %v4026 = vsel %vm867, %v4000, %v4011
    %v4029 = vrot.slane %v3953, 5
    %v4030 = vrot.slane %v3954, 5
    %v4031 = vsel %vm514, %v4029, %v4030
    %v4035 = vsel %vm514, 0.0, %v4029
    %v4036 = vsel %vm514, %v4030, 0.0
    %v4039 = vrot.slane %v4035, 1
    %v4040 = vrot.slane %v4031, 1
    %v4041 = vsel %vm525, %v4039, %v4040
    %v4042 = vrot.slane %v4036, 1
    %v4043 = vsel %vm525, %v4040, %v4042
    %4044 = vrot.lane.b32.xlu0 %v4041, 64
    %v4045 = vpop.permute.xlu0 %4044
    %4046 = vrot.lane.b32.xlu0 %v4043, 64
    %v4047 = vpop.permute.xlu0 %4046
    %v4050 = vrot.slane %v4035, 2
    %v4051 = vrot.slane %v4031, 2
    %v4052 = vsel %vm537, %v4050, %v4051
    %v4053 = vrot.slane %v4036, 2
    %v4054 = vsel %vm537, %v4051, %v4053
    %v4057 = vrot.slane %v4035, 3
    %v4058 = vrot.slane %v4031, 3
    %v4059 = vsel %vm549, %v4057, %v4058
    %v4060 = vrot.slane %v4036, 3
    %v4061 = vsel %vm549, %v4058, %v4060
    %4062 = vrot.lane.b32.xlu0 %v4059, 64
    %v4063 = vpop.permute.xlu0 %4062
    %4064 = vrot.lane.b32.xlu0 %v4061, 64
    %v4065 = vpop.permute.xlu0 %4064
    %v4068 = vrot.slane %v4035, 4
    %v4069 = vrot.slane %v4031, 4
    %v4070 = vsel %vm561, %v4068, %v4069
    %v4071 = vrot.slane %v4036, 4
    %v4072 = vsel %vm561, %v4069, %v4071
    %v4075 = vrot.slane %v4035, 5
    %v4076 = vrot.slane %v4031, 5
    %v4077 = vsel %vm514, %v4075, %v4076
    %v4078 = vrot.slane %v4036, 5
    %v4079 = vsel %vm514, %v4076, %v4078
    %4080 = vrot.lane.b32.xlu0 %v4077, 64
    %v4081 = vpop.permute.xlu0 %4080
    %4082 = vrot.lane.b32.xlu0 %v4079, 64
    %v4083 = vpop.permute.xlu0 %4082
    %v4086 = vrot.slane %v4035, 6
    %v4087 = vrot.slane %v4031, 6
    %v4088 = vsel %vm584, %v4086, %v4087
    %v4089 = vrot.slane %v4036, 6
    %v4090 = vsel %vm584, %v4087, %v4089
    %v4093 = vsel %vm867, %v4035, %v4045
    %v4094 = vsel %vm867, %v4031, %v4047
    %v4095 = vsel %vm867, %v4052, %v4063
    %v4096 = vsel %vm867, %v4054, %v4065
    %v4097 = vsel %vm867, %v4070, %v4081
    %v4098 = vsel %vm867, %v4072, %v4083
    %v4099 = vpack.c.bf16 %v4022, %v4021
    %v4100 = vpack.c.bf16 %v4024, %v4023
    %v4101 = vpack.c.bf16 %v4026, %v4025
    %v4102 = vpack.c.bf16 %v4018, %v4016
    %v4103 = vpack.c.bf16 %v4094, %v4093
    %v4104 = vpack.c.bf16 %v4096, %v4095
    %v4105 = vpack.c.bf16 %v4098, %v4097
    %v4106 = vpack.c.bf16 %v4090, %v4088
    %v4108 = vperm.slane %v502, 0
    %v4166 = vunpack.c.l.b16 %v446
    %v4167 = vunpack.c.l.b16 %v447
    %v4168 = vunpack.c.l.b16 %v448
    %v4169 = vunpack.c.l.b16 %v449
    %v4170 = vunpack.c.l.b16 %v450
    %v4171 = vunpack.c.l.b16 %v451
    %v4172 = vunpack.c.l.b16 %v452
    %v4173 = vunpack.c.l.b16 %v453
    %v4174 = vunpack.c.l.b16 %v454
    %v4175 = vunpack.c.l.b16 %v455
    %v4176 = vunpack.c.l.b16 %v456
    %v4177 = vunpack.c.l.b16 %v457
    %v4178 = vunpack.c.l.b16 %v458
    %v4179 = vunpack.c.l.b16 %v459
    %v4180 = vunpack.c.l.b16 %v460
    %v4181 = vunpack.c.l.b16 %v461
    %v4182 = vunpack.c.l.b16 %v462
    %v4183 = vunpack.c.l.b16 %v463
    %v4184 = vunpack.c.l.b16 %v464
    %v4185 = vunpack.c.l.b16 %v465
    %v4186 = vunpack.c.l.b16 %v466
    %v4187 = vunpack.c.l.b16 %v467
    %v4188 = vunpack.c.l.b16 %v468
    %v4189 = vunpack.c.l.b16 %v469
    %v4190 = vunpack.c.l.b16 %v470
    %v4191 = vunpack.c.l.b16 %v471
    %v4192 = vunpack.c.l.b16 %v472
    %v4193 = vunpack.c.l.b16 %v473
    %v4194 = vunpack.c.l.b16 %v474
    %v4195 = vunpack.c.l.b16 %v475
    %v4196 = vunpack.c.l.b16 %v476
    %v4197 = vunpack.c.l.b16 %v477
    %v4198 = vunpack.c.l.b16 %v478
    %v4199 = vunpack.c.l.b16 %v479
    %v4200 = vunpack.c.l.b16 %v480
    %v4201 = vunpack.c.l.b16 %v481
    %v4202 = vunpack.c.l.b16 %v482
    %v4203 = vunpack.c.l.b16 %v483
    %v4204 = vunpack.c.l.b16 %v484
    %v4205 = vunpack.c.l.b16 %v485
    %v4206 = vunpack.c.l.b16 %v486
    %v4207 = vunpack.c.l.b16 %v487
    %v4208 = vunpack.c.l.b16 %v488
    %v4209 = vunpack.c.l.b16 %v489
    %v4210 = vunpack.c.l.b16 %v490
    %v4211 = vunpack.c.l.b16 %v491
    %v4212 = vunpack.c.l.b16 %v492
    %v4213 = vunpack.c.l.b16 %v493
    %v4214 = vunpack.c.l.b16 %v494
    %v4215 = vunpack.c.l.b16 %v495
    %v4216 = vunpack.c.l.b16 %v496
    %v4217 = vunpack.c.l.b16 %v497
    %v4218 = vunpack.c.l.b16 %v498
    %v4219 = vunpack.c.l.b16 %v499
    %v4220 = vunpack.c.l.b16 %v500
    %v4221 = vunpack.c.l.b16 %v501
    %v4222 = vpack.c.b16 %v4167, %v4166
    %v4223 = vpack.c.b16 %v4169, %v4168
    %v4224 = vpack.c.b16 %v4171, %v4170
    %v4225 = vpack.c.b16 %v4173, %v4172
    %v4226 = vpack.c.b16 %v4175, %v4174
    %v4227 = vpack.c.b16 %v4177, %v4176
    %v4228 = vpack.c.b16 %v4179, %v4178
    %v4229 = vpack.c.b16 %v4181, %v4180
    %v4230 = vpack.c.b16 %v4183, %v4182
    %v4231 = vpack.c.b16 %v4185, %v4184
    %v4232 = vpack.c.b16 %v4187, %v4186
    %v4233 = vpack.c.b16 %v4189, %v4188
    %v4234 = vpack.c.b16 %v4191, %v4190
    %v4235 = vpack.c.b16 %v4193, %v4192
    %v4236 = vpack.c.b16 %v4195, %v4194
    %v4237 = vpack.c.b16 %v4197, %v4196
    %v4238 = vpack.c.b16 %v4199, %v4198
    %v4239 = vpack.c.b16 %v4201, %v4200
    %v4240 = vpack.c.b16 %v4203, %v4202
    %v4241 = vpack.c.b16 %v4205, %v4204
    %v4242 = vpack.c.b16 %v4207, %v4206
    %v4243 = vpack.c.b16 %v4209, %v4208
    %v4244 = vpack.c.b16 %v4211, %v4210
    %v4245 = vpack.c.b16 %v4213, %v4212
    %v4246 = vpack.c.b16 %v4215, %v4214
    %v4247 = vpack.c.b16 %v4217, %v4216
    %v4248 = vpack.c.b16 %v4219, %v4218
    %v4249 = vpack.c.b16 %v4221, %v4220
    %v4279 = vsel %vm867, %v4102, 0
    %v4282 = vsel %vm867, %v4106, 0
    %4284 = vmatpush.bf16.msra.mxu0 %v4229
    %4285 = vmatpush.bf16.msra.mxu0 %v4228
    %4286 = vmatpush.bf16.msra.mxu0 %v4227
    %4287 = vmatpush.bf16.msra.mxu0 %v4226
    %4288 = vmatpush.bf16.msra.mxu0 %v4225
    %4289 = vmatpush.bf16.msra.mxu0 %v4224
    %4290 = vmatpush.bf16.msra.mxu0 %v4223
    %4291 = vmatpush.bf16.msra.mxu0 %v4222
    %4292 = vmatmul.bf16.gmra.mxu0 %v4099
    %v4293 = vpop.f32.mrf.mxu0
    %v4294 = vadd.f32 %v4108, %v4293
    %v4295 = vpop.f32.mrf.mxu0
    %v4296 = vadd.f32 %v4108, %v4295
    %4297 = vmatmul.bf16.gmra.mxu0 %v4103
    %v4298 = vpop.f32.mrf.mxu0
    %v4299 = vadd.f32 %v4108, %v4298
    %v4300 = vpop.f32.mrf.mxu0
    %v4301 = vadd.f32 %v4108, %v4300
    %4302 = vdwg.mxu0
    %4303 = vmatpush.bf16.msra.mxu0 %v4237
    %4304 = vmatpush.bf16.msra.mxu0 %v4236
    %4305 = vmatpush.bf16.msra.mxu0 %v4235
    %4306 = vmatpush.bf16.msra.mxu0 %v4234
    %4307 = vmatpush.bf16.msra.mxu0 %v4233
    %4308 = vmatpush.bf16.msra.mxu0 %v4232
    %4309 = vmatpush.bf16.msra.mxu0 %v4231
    %4310 = vmatpush.bf16.msra.mxu0 %v4230
    %4311 = vmatmul.bf16.gmra.mxu0 %v4100
    %v4312 = vpop.f32.mrf.mxu0
    %v4313 = vadd.f32 %v4294, %v4312
    %v4314 = vpop.f32.mrf.mxu0
    %v4315 = vadd.f32 %v4296, %v4314
    %4316 = vmatmul.bf16.gmra.mxu0 %v4104
    %v4317 = vpop.f32.mrf.mxu0
    %v4318 = vadd.f32 %v4299, %v4317
    %v4319 = vpop.f32.mrf.mxu0
    %v4320 = vadd.f32 %v4301, %v4319
    %4321 = vdwg.mxu0
    %4322 = vmatpush.bf16.msra.mxu0 %v4245
    %4323 = vmatpush.bf16.msra.mxu0 %v4244
    %4324 = vmatpush.bf16.msra.mxu0 %v4243
    %4325 = vmatpush.bf16.msra.mxu0 %v4242
    %4326 = vmatpush.bf16.msra.mxu0 %v4241
    %4327 = vmatpush.bf16.msra.mxu0 %v4240
    %4328 = vmatpush.bf16.msra.mxu0 %v4239
    %4329 = vmatpush.bf16.msra.mxu0 %v4238
    %4330 = vmatmul.bf16.gmra.mxu0 %v4101
    %v4331 = vpop.f32.mrf.mxu0
    %v4332 = vadd.f32 %v4313, %v4331
    %v4333 = vpop.f32.mrf.mxu0
    %v4334 = vadd.f32 %v4315, %v4333
    %4335 = vmatmul.bf16.gmra.mxu0 %v4105
    %v4336 = vpop.f32.mrf.mxu0
    %v4337 = vadd.f32 %v4318, %v4336
    %v4338 = vpop.f32.mrf.mxu0
    %v4339 = vadd.f32 %v4320, %v4338
    %4340 = vdwg.mxu0
    %4341 = vmatpush.bf16.msra.mxu0 0
    %4342 = vmatpush.bf16.msra.mxu0 0
    %4343 = vmatpush.bf16.msra.mxu0 0
    %4344 = vmatpush.bf16.msra.mxu0 0
    %4345 = vmatpush.bf16.msra.mxu0 %v4249
    %4346 = vmatpush.bf16.msra.mxu0 %v4248
    %4347 = vmatpush.bf16.msra.mxu0 %v4247
    %4348 = vmatpush.bf16.msra.mxu0 %v4246
    %4349 = vmatmul.bf16.gmra.mxu0 %v4279
    %v4350 = vpop.f32.mrf.mxu0
    %v4351 = vadd.f32 %v4332, %v4350
    %v4352 = vpop.f32.mrf.mxu0
    %v4353 = vadd.f32 %v4334, %v4352
    %4354 = vmatmul.bf16.gmra.mxu0 %v4282
    %v4355 = vpop.f32.mrf.mxu0
    %v4356 = vadd.f32 %v4337, %v4355
    %v4357 = vpop.f32.mrf.mxu0
    %v4358 = vadd.f32 %v4339, %v4357
    %4359 = vdwg.mxu0
    %v4360 = vadd.f32 %v4351, %v3542
    %v4361 = vadd.f32 %v4353, %v3543
    %v4362 = vadd.f32 %v4356, %v3544
    %v4363 = vadd.f32 %v4358, %v3545
    %v4364 = vmax.f32 %v4360, 0.0
    %v4365 = vmax.f32 %v4361, 0.0
    %v4366 = vmax.f32 %v4362, 0.0
    %v4367 = vmax.f32 %v4363, 0.0
    %v4368 = vsel %vm867, %v4364, 0.0
    %v4369 = vsel %vm867, %v4365, 0.0
    %v4370 = vadd.f32 %v4368, %v4369
    %v4371 = vrot.slane %v4370, 4
    %v4372 = vadd.f32 %v4370, %v4371
    %v4373 = vrot.slane %v4372, 2
    %v4374 = vadd.f32 %v4372, %v4373
    %v4375 = vrot.slane %v4374, 1
    %v4376 = vadd.f32 %v4374, %v4375
    %v4377 = vrcp.pop 16.0
    %v4378 = vmul.f32 16.0, %v4377
    %v4379 = vsub.f32 1.0, %v4378
    %v4380 = vmul.f32 %v4377, %v4379
    %v4381 = vadd.f32 %v4377, %v4380
    %vm4382 = vweird.f32 %v4377
    %v4383 = vsel %vm4382, %v4377, %v4381
    %v4384 = vmul.f32 %v4376, %v4383
    %v4385 = vsel %vm867, %v4366, 0.0
    %v4386 = vsel %vm867, %v4367, 0.0
    %v4387 = vadd.f32 %v4385, %v4386
    %v4388 = vrot.slane %v4387, 4
    %v4389 = vadd.f32 %v4387, %v4388
    %v4390 = vrot.slane %v4389, 2
    %v4391 = vadd.f32 %v4389, %v4390
    %v4392 = vrot.slane %v4391, 1
    %v4393 = vadd.f32 %v4391, %v4392
    %v4394 = vmul.f32 %v4393, %v4383
    %v4395 = vsel %vm755, %v4384, %v4394
    %v4396 = vpack.c.bf16 %v4395, %v4395
    %v4398 = vperm.slane %v511, 0
    %v4408 = vunpack.c.l.b16 %v503
    %v4409 = vunpack.c.l.b16 %v504
    %v4410 = vunpack.c.l.b16 %v505
    %v4411 = vunpack.c.l.b16 %v506
    %v4412 = vunpack.c.l.b16 %v507
    %v4413 = vunpack.c.l.b16 %v508
    %v4414 = vunpack.c.l.b16 %v509
    %v4415 = vunpack.c.l.b16 %v510
    %v4416 = vpack.c.b16 %v4409, %v4408
    %v4417 = vpack.c.b16 %v4411, %v4410
    %v4418 = vpack.c.b16 %v4413, %v4412
    %v4419 = vpack.c.b16 %v4415, %v4414
    %v4425 = vsel %vm867, %v4396, 0
    %4427 = vmatpush.bf16.msra.mxu0 0
    %4428 = vmatpush.bf16.msra.mxu0 0
    %4429 = vmatpush.bf16.msra.mxu0 0
    %4430 = vmatpush.bf16.msra.mxu0 0
    %4431 = vmatpush.bf16.msra.mxu0 %v4419
    %4432 = vmatpush.bf16.msra.mxu0 %v4418
    %4433 = vmatpush.bf16.msra.mxu0 %v4417
    %4434 = vmatpush.bf16.msra.mxu0 %v4416
    %4435 = vmatmul.bf16.gmra.mxu0 %v4425
    %v4436 = vpop.f32.mrf.mxu0
    %v4437 = vadd.f32 %v4398, %v4436
    %v4438 = vpop.f32.mrf.mxu0
    %4439 = vdwg.mxu0
    %vm4440 = vcmask 123904
    %4441 = vst.msk [vmem:[#allocation2] sm:$0x3] %vm4440, %v4437
    // Predicated region
    $region134: #{tpu_custom_call.1} parent=1 // pred_check
      _
    $region135: #{tpu_custom_call.1} parent=1 // pred_check_branch
      %4443 = sbr.rel (0) target = $region137
    $region136: #{tpu_custom_call.1} parent=1 // pred_region
      %4445 = vsyncadd [#allocation3], 0
      %s4447 = sshll.u32 [#allocation2], 4
      %s4448 = int_to_ptr.vmem [resolvable:$true] %s4447
      %s4449 = sshll.u32 %s67, 4
      %s4450 = int_to_ptr.hbm [resolvable:$true] %s4449
      %4452 = dma.vmem_to_hbm [thread:$0]  %s4448, 32, %s4450, [#allocation3]
    $region137: #{tpu_custom_call.1} parent=1 // pred_fallthru
      _
    // Predicated region
    $region138: #{tpu_custom_call.1} parent=1 // pred_check
      _
    $region139: #{tpu_custom_call.1} parent=1 // pred_check_branch
      %4454 = sbr.rel (0) target = $region141
    $region140: #{tpu_custom_call.1} parent=1 // pred_region
      %4456 = dma.done [#allocation3], 32
    $region141: #{tpu_custom_call.1} parent=1 // pred_fallthru
      _
    %4457 = vsyncpa [#allocation3], 1

</llo_original>
